<compile_context>
chip_gen: v7x
topology: tpu7x:2x2x1
jax: 0.10.0
libtpu: 0.0.40
codegen_flags: <defaults>
</compile_context>

<pallas_src>
import functools

import jax
import jax.numpy as jnp
from jax.experimental import pallas as pl
from jax.experimental.pallas import tpu as pltpu

EPS = 1e-3
MP = 16          # padded batch rows (bf16 vregs pack (16, 128))


def _round_up(x, m):
    return (x + m - 1) // m * m


# ------------------------------ fused kernel --------------------------------

def _inception_aux_kernel(x_ref, w0_ref, b0_ref, w1_ref, b1_ref,
                          wfc_ref, bfc_ref, out_ref, act_ref, acc_ref,
                          *, n, ho, wo, ksize, stride, c0, ksteps, tk):
    """Whole InceptionAux forward.  Grid = (ksteps,) over the conv1
    contraction; only the conv1 weight tile changes between grid steps."""
    k = pl.program_id(0)

    # ---- prologue (k == 0): avg-pool + conv0(1x1)+BN+ReLU, all in VMEM ----
    @pl.when(k == 0)
    def _():
        inv = 1.0 / float(ksize * ksize)
        xv = x_ref[...]                                    # (n, H, W, cin) f32
        w0 = w0_ref[...]                                   # (cin, c0) f32
        b0 = b0_ref[...]                                   # (1, c0)   f32
        pad_rows = jnp.zeros((MP - n, tk), jnp.float32)

        for oh in range(ho):
            # separable pool: 5 row adds once per output row
            r = xv[:, oh * stride, :, :]                   # (n, W, cin)
            for i in range(1, ksize):
                r = r + xv[:, oh * stride + i, :, :]
            pieces = []
            for ow in range(wo):
                px = r[:, ow * stride, :]                  # (n, cin)
                for j in range(1, ksize):
                    px = px + r[:, ow * stride + j, :]
                px = px * inv                              # pooled pixel
                # conv0 (1x1) == per-pixel channel matmul, folded BN + ReLU
                v = jnp.dot(px, w0, preferred_element_type=jnp.float32)
                pieces.append(jnp.maximum(v + b0, 0.0))    # (n, c0)
            # conv1's im2col at 1x1 spatial output == NHWC flatten: pooled
            # row `oh` is exactly K-tile `oh` of the conv1 operand.
            slab = jnp.concatenate(pieces, axis=1)         # (n, wo*c0)
            slab = jnp.concatenate([slab, pad_rows], axis=0)   # (MP, tk)
            act_ref[oh] = slab.astype(jnp.bfloat16)
        acc_ref[...] = jnp.zeros_like(acc_ref)

    # ---- conv1 partial matmul for this K tile (weight streamed from HBM) ----
    acc_ref[...] += jnp.dot(act_ref[k], w1_ref[...],
                            preferred_element_type=jnp.float32)

    # ---- epilogue (last k): conv1 bias+ReLU, then the fused fc layer ----
    @pl.when(k == ksteps - 1)
    def _():
        z = jnp.maximum(acc_ref[...] + b1_ref[...], 0.0).astype(jnp.bfloat16)
        o = jnp.dot(z, wfc_ref[...], preferred_element_type=jnp.float32)
        out_ref[...] = o + bfc_ref[...]


# ------------------------- one-time weight preparation ----------------------

def prepare_params(params, num_classes):
    """Fold eval-mode BN into the conv weights, reshape to matmul layout,
    cast the big weights to bf16 and lane-pad the fc.  Done ONCE (not inside
    the forward path)."""
    def fold(p):
        w = p["w"]                                    # (Cout, Cin, KH, KW)
        cout = w.shape[0]
        scale = p["gamma"] / jnp.sqrt(p["var"] + EPS)
        wm = jnp.transpose(w, (2, 3, 1, 0)).reshape(-1, cout) * scale[None, :]
        b = (p["beta"] - p["mean"] * scale).reshape(1, cout)
        return wm, b

    w0, b0 = fold(params["conv0"])                    # (Cin,128),  (1,128)
    w1, b1 = fold(params["conv1"])                    # (3200,768), (1,768)
    fc = params["fc"]
    nc = fc["w"].shape[0]
    ncp = _round_up(max(nc, 128), 128)
    wfc = jnp.pad(fc["w"].T, ((0, 0), (0, ncp - nc)))
    bfc = jnp.pad(fc["b"], (0, ncp - nc)).reshape(1, ncp)
    return dict(
        w0=w0.astype(jnp.float32), b0=b0.astype(jnp.float32),
        w1=w1.astype(jnp.bfloat16), b1=b1.astype(jnp.float32),
        wfc=wfc.astype(jnp.bfloat16), bfc=bfc.astype(jnp.float32),
    )


# --------------------------------- forward ----------------------------------

def inception_aux(prep, x_nchw, *, num_classes):
    x = jnp.transpose(x_nchw, (0, 2, 3, 1)).astype(jnp.float32)  # NCHW->NHWC
    n, h, w, cin = x.shape
    ksize, stride = 5, 3
    ho = (h - ksize) // stride + 1
    wo = (w - ksize) // stride + 1
    c0 = prep["w0"].shape[1]                 # 128
    kt, c1 = prep["w1"].shape                # 3200, 768
    ncp = prep["wfc"].shape[1]               # classes padded to 128 lanes

    # conv1 (5x5 VALID) must reduce the pooled map to 1x1 so the flatten
    # matches fc's 768 inputs (torchvision feeds 17x17 spatial here).
    assert ho == 5 and wo == 5 and ho * wo * c0 == kt, (ho, wo, c0, kt)
    assert n <= MP
    ksteps, tk = ho, wo * c0                 # 5 steps x 640 (divides K)

    kern = functools.partial(
        _inception_aux_kernel, n=n, ho=ho, wo=wo, ksize=ksize, stride=stride,
        c0=c0, ksteps=ksteps, tk=tk)

    out = pl.pallas_call(
        kern,
        out_shape=jax.ShapeDtypeStruct((MP, ncp), jnp.float32),
        grid_spec=pltpu.PrefetchScalarGridSpec(
            num_scalar_prefetch=0,
            grid=(ksteps,),
            in_specs=[
                pl.BlockSpec((n, h, w, cin), lambda k: (0, 0, 0, 0)),  # input
                pl.BlockSpec((cin, c0), lambda k: (0, 0)),             # w0
                pl.BlockSpec((1, c0), lambda k: (0, 0)),               # b0
                pl.BlockSpec((tk, c1), lambda k: (k, 0)),    # w1 (streamed)
                pl.BlockSpec((1, c1), lambda k: (0, 0)),                # b1
                pl.BlockSpec((c1, ncp), lambda k: (0, 0)),              # wfc
                pl.BlockSpec((1, ncp), lambda k: (0, 0)),               # bfc
            ],
            out_specs=pl.BlockSpec((MP, ncp), lambda k: (0, 0)),
            scratch_shapes=[
                pltpu.VMEM((ksteps, MP, tk), jnp.bfloat16),  # conv1 operand
                pltpu.VMEM((MP, c1), jnp.float32),           # conv1 f32 acc
            ],
        ),
        compiler_params=pltpu.CompilerParams(
            dimension_semantics=("arbitrary",)),
        # TODO(synk): for v7x, split c1=768 into 2 "parallel" output tiles so
        # both TensorCores get work; at this problem size it is HBM-stream
        # bound so a single core is already at the roofline.
    )(x, prep["w0"], prep["b0"], prep["w1"], prep["b1"],
      prep["wfc"], prep["bfc"])
    return out[:n, :num_classes]


# ------------------------------ synthetic init -------------------------------

def init_params(key, in_channels, num_classes):
    def basic_conv(key, cout, cin, k, wscale):
        k1, k2, k3, k4, k5 = jax.random.split(key, 5)
        return dict(
            w=jax.random.normal(k1, (cout, cin, k, k), jnp.float32) * wscale,
            gamma=jax.random.uniform(k2, (cout,), jnp.float32, 0.5, 1.5),
            beta=jax.random.normal(k3, (cout,), jnp.float32) * 0.1,
            mean=jax.random.normal(k4, (cout,), jnp.float32) * 0.1,
            var=jax.random.uniform(k5, (cout,), jnp.float32, 0.5, 1.5),
        )

    k0, k1, k2, k3 = jax.random.split(key, 4)
    return dict(
        conv0=basic_conv(k0, 128, in_channels, 1, 0.3),
        conv1=basic_conv(k1, 768, 128, 5, 0.05),
        fc=dict(w=jax.random.normal(k2, (num_classes, 768), jnp.float32) * 0.1,
                b=jax.random.normal(k3, (num_classes,), jnp.float32) * 0.1),
    )


# --------------------------- pure-JAX reference -----------------------------

def _ref_conv_bn_relu(x, p, stride, padding):
    w = jnp.transpose(p["w"], (2, 3, 1, 0))                # OIHW -> HWIO
    y = jax.lax.conv_general_dilated(
        x, w, (stride, stride), [(padding, padding), (padding, padding)],
        dimension_numbers=("NHWC", "HWIO", "NHWC"))
    scale = p["gamma"] / jnp.sqrt(p["var"] + EPS)
    return jnp.maximum(y * scale + (p["beta"] - p["mean"] * scale), 0.0)


def _ref_inception_aux(params, x_nchw):
    x = jnp.transpose(x_nchw, (0, 2, 3, 1))
    x = jax.lax.reduce_window(x, 0.0, jax.lax.add,
                              (1, 5, 5, 1), (1, 3, 3, 1), "VALID") / 25.0
    x = _ref_conv_bn_relu(x, params["conv0"], 1, 0)
    x = _ref_conv_bn_relu(x, params["conv1"], 1, 0)
    n = x.shape[0]
    feat = jnp.transpose(x, (0, 3, 1, 2)).reshape(n, -1)
    return feat @ params["fc"]["w"].T + params["fc"]["b"]


# ---------------------------------- main ------------------------------------

if __name__ == "__main__":
    key = jax.random.PRNGKey(0)
    k_x, k_p = jax.random.split(key)

    # Spatial must be 17 so that pool(5,3) -> 5x5 and conv1(5x5, VALID) -> 1x1,
    # which the fc(768, num_classes) layer requires.
    N, C, H, W = 2, 8, 17, 17
    num_classes = 10

    x = jax.random.normal(k_x, (N, C, H, W), jnp.float32)
    params = init_params(k_p, C, num_classes)
    prep = prepare_params(params, num_classes)      # one-time weight prep

    fwd = jax.jit(lambda p, xx: inception_aux(p, xx, num_classes=num_classes))
    out = jax.block_until_ready(fwd(prep, x))
    assert out.shape == (N, num_classes), out.shape

    ref = jax.block_until_ready(_ref_inception_aux(params, x))
    max_err = float(jnp.max(jnp.abs(out - ref)))
    # bf16 MXU operands (conv1 / fc) with f32 accumulation -> loose tolerance.
    assert jnp.allclose(out, ref, rtol=5e-2, atol=5e-2), max_err

    print("KERNEL_OK")
</pallas_src>

<mosaic_0001>
module attributes {stable_mosaic.version = 11 : i64} {
  func.func @_inception_aux_kernel(%arg0: i32, %arg1: memref<2x17x17x8xf32, #tpu.memory_space<vmem>>, %arg2: memref<8x128xf32, #tpu.memory_space<vmem>>, %arg3: memref<1x128xf32, #tpu.memory_space<vmem>>, %arg4: memref<640x768xbf16, #tpu.memory_space<vmem>>, %arg5: memref<1x768xf32, #tpu.memory_space<vmem>>, %arg6: memref<768x128xbf16, #tpu.memory_space<vmem>>, %arg7: memref<1x128xf32, #tpu.memory_space<vmem>>, %arg8: memref<16x128xf32, #tpu.memory_space<vmem>>, %arg9: memref<5x16x640xbf16, #tpu.memory_space<vmem>>, %arg10: memref<16x768xf32, #tpu.memory_space<vmem>>) attributes {dimension_semantics = [#tpu.dimension_semantics<arbitrary>], iteration_bounds = array<i64: 5>, scalar_prefetch = 0 : i64, scratch_operands = 2 : i64, tpu.core_type = #tpu.core_type<tc>, window_params = [{pipeline_mode = #tpu.pipeline_mode<synchronous>, transform_indices = @transform_0, window_bounds = array<i64: 2, 17, 17, 8>}, {pipeline_mode = #tpu.pipeline_mode<synchronous>, transform_indices = @transform_1, window_bounds = array<i64: 8, 128>}, {pipeline_mode = #tpu.pipeline_mode<synchronous>, transform_indices = @transform_2, window_bounds = array<i64: 1, 128>}, {transform_indices = @transform_3, window_bounds = array<i64: 640, 768>}, {pipeline_mode = #tpu.pipeline_mode<synchronous>, transform_indices = @transform_4, window_bounds = array<i64: 1, 768>}, {pipeline_mode = #tpu.pipeline_mode<synchronous>, transform_indices = @transform_5, window_bounds = array<i64: 768, 128>}, {pipeline_mode = #tpu.pipeline_mode<synchronous>, transform_indices = @transform_6, window_bounds = array<i64: 1, 128>}, {pipeline_mode = #tpu.pipeline_mode<synchronous>, transform_indices = @transform_7, window_bounds = array<i64: 16, 128>}]} {
    %c0_i32 = arith.constant 0 : i32
    %0 = arith.cmpi eq, %arg0, %c0_i32 : i32
    %1 = arith.extui %0 : i1 to i32
    %c0_i32_0 = arith.constant 0 : i32
    %2 = arith.cmpi ne, %1, %c0_i32_0 : i32
    scf.if %2 {
      %c0_9 = arith.constant 0 : index
      %c0_10 = arith.constant 0 : index
      %c0_11 = arith.constant 0 : index
      %c0_12 = arith.constant 0 : index
      %14 = vector.load %arg1[%c0_9, %c0_10, %c0_11, %c0_12] : memref<2x17x17x8xf32, #tpu.memory_space<vmem>>, vector<2x17x17x8xf32>
      %c0_13 = arith.constant 0 : index
      %c0_14 = arith.constant 0 : index
      %15 = vector.load %arg2[%c0_13, %c0_14] : memref<8x128xf32, #tpu.memory_space<vmem>>, vector<8x128xf32>
      %c0_15 = arith.constant 0 : index
      %c0_16 = arith.constant 0 : index
      %16 = vector.load %arg3[%c0_15, %c0_16] : memref<1x128xf32, #tpu.memory_space<vmem>>, vector<1x128xf32>
      %cst_17 = arith.constant 0.000000e+00 : f32
      %17 = vector.broadcast %cst_17 : f32 to vector<14x640xf32>
      %18 = vector.extract_strided_slice %14 {offsets = [0, 0, 0, 0], sizes = [2, 1, 17, 8], strides = [1, 1, 1, 1]} : vector<2x17x17x8xf32> to vector<2x1x17x8xf32>
      %19 = vector.shape_cast %18 : vector<2x1x17x8xf32> to vector<2x17x8xf32>
      %20 = vector.extract_strided_slice %14 {offsets = [0, 1, 0, 0], sizes = [2, 1, 17, 8], strides = [1, 1, 1, 1]} : vector<2x17x17x8xf32> to vector<2x1x17x8xf32>
      %21 = vector.shape_cast %20 : vector<2x1x17x8xf32> to vector<2x17x8xf32>
      %22 = arith.addf %19, %21 : vector<2x17x8xf32>
      %23 = vector.extract_strided_slice %14 {offsets = [0, 2, 0, 0], sizes = [2, 1, 17, 8], strides = [1, 1, 1, 1]} : vector<2x17x17x8xf32> to vector<2x1x17x8xf32>
      %24 = vector.shape_cast %23 : vector<2x1x17x8xf32> to vector<2x17x8xf32>
      %25 = arith.addf %22, %24 : vector<2x17x8xf32>
      %26 = vector.extract_strided_slice %14 {offsets = [0, 3, 0, 0], sizes = [2, 1, 17, 8], strides = [1, 1, 1, 1]} : vector<2x17x17x8xf32> to vector<2x1x17x8xf32>
      %27 = vector.shape_cast %26 : vector<2x1x17x8xf32> to vector<2x17x8xf32>
      %28 = arith.addf %25, %27 : vector<2x17x8xf32>
      %29 = vector.extract_strided_slice %14 {offsets = [0, 4, 0, 0], sizes = [2, 1, 17, 8], strides = [1, 1, 1, 1]} : vector<2x17x17x8xf32> to vector<2x1x17x8xf32>
      %30 = vector.shape_cast %29 : vector<2x1x17x8xf32> to vector<2x17x8xf32>
      %31 = arith.addf %28, %30 : vector<2x17x8xf32>
      %32 = vector.extract_strided_slice %31 {offsets = [0, 0, 0], sizes = [2, 1, 8], strides = [1, 1, 1]} : vector<2x17x8xf32> to vector<2x1x8xf32>
      %33 = vector.shape_cast %32 : vector<2x1x8xf32> to vector<2x8xf32>
      %34 = vector.extract_strided_slice %31 {offsets = [0, 1, 0], sizes = [2, 1, 8], strides = [1, 1, 1]} : vector<2x17x8xf32> to vector<2x1x8xf32>
      %35 = vector.shape_cast %34 : vector<2x1x8xf32> to vector<2x8xf32>
      %36 = arith.addf %33, %35 : vector<2x8xf32>
      %37 = vector.extract_strided_slice %31 {offsets = [0, 2, 0], sizes = [2, 1, 8], strides = [1, 1, 1]} : vector<2x17x8xf32> to vector<2x1x8xf32>
      %38 = vector.shape_cast %37 : vector<2x1x8xf32> to vector<2x8xf32>
      %39 = arith.addf %36, %38 : vector<2x8xf32>
      %40 = vector.extract_strided_slice %31 {offsets = [0, 3, 0], sizes = [2, 1, 8], strides = [1, 1, 1]} : vector<2x17x8xf32> to vector<2x1x8xf32>
      %41 = vector.shape_cast %40 : vector<2x1x8xf32> to vector<2x8xf32>
      %42 = arith.addf %39, %41 : vector<2x8xf32>
      %43 = vector.extract_strided_slice %31 {offsets = [0, 4, 0], sizes = [2, 1, 8], strides = [1, 1, 1]} : vector<2x17x8xf32> to vector<2x1x8xf32>
      %44 = vector.shape_cast %43 : vector<2x1x8xf32> to vector<2x8xf32>
      %45 = arith.addf %42, %44 : vector<2x8xf32>
      %cst_18 = arith.constant 4.000000e-02 : f32
      %46 = vector.broadcast %cst_18 : f32 to vector<2x8xf32>
      %47 = arith.mulf %45, %46 : vector<2x8xf32>
      %cst_19 = arith.constant dense<0.000000e+00> : vector<2x128xf32>
      %48 = tpu.matmul %47, %15, %cst_19 {dimension_numbers = #tpu.dot_dimension_numbers<[1], [0], [0], [1], [0, 0, 1, 1], [], []>} : vector<2x8xf32>, vector<8x128xf32>, vector<2x128xf32> -> vector<2x128xf32>
      %49 = vector.broadcast %16 : vector<1x128xf32> to vector<2x128xf32>
      %50 = arith.addf %48, %49 : vector<2x128xf32>
      %cst_20 = arith.constant 0.000000e+00 : f32
      %51 = vector.broadcast %cst_20 : f32 to vector<2x128xf32>
      %52 = arith.maximumf %50, %51 : vector<2x128xf32>
      %53 = vector.extract_strided_slice %31 {offsets = [0, 3, 0], sizes = [2, 1, 8], strides = [1, 1, 1]} : vector<2x17x8xf32> to vector<2x1x8xf32>
      %54 = vector.shape_cast %53 : vector<2x1x8xf32> to vector<2x8xf32>
      %55 = vector.extract_strided_slice %31 {offsets = [0, 4, 0], sizes = [2, 1, 8], strides = [1, 1, 1]} : vector<2x17x8xf32> to vector<2x1x8xf32>
      %56 = vector.shape_cast %55 : vector<2x1x8xf32> to vector<2x8xf32>
      %57 = arith.addf %54, %56 : vector<2x8xf32>
      %58 = vector.extract_strided_slice %31 {offsets = [0, 5, 0], sizes = [2, 1, 8], strides = [1, 1, 1]} : vector<2x17x8xf32> to vector<2x1x8xf32>
      %59 = vector.shape_cast %58 : vector<2x1x8xf32> to vector<2x8xf32>
      %60 = arith.addf %57, %59 : vector<2x8xf32>
      %61 = vector.extract_strided_slice %31 {offsets = [0, 6, 0], sizes = [2, 1, 8], strides = [1, 1, 1]} : vector<2x17x8xf32> to vector<2x1x8xf32>
      %62 = vector.shape_cast %61 : vector<2x1x8xf32> to vector<2x8xf32>
      %63 = arith.addf %60, %62 : vector<2x8xf32>
      %64 = vector.extract_strided_slice %31 {offsets = [0, 7, 0], sizes = [2, 1, 8], strides = [1, 1, 1]} : vector<2x17x8xf32> to vector<2x1x8xf32>
      %65 = vector.shape_cast %64 : vector<2x1x8xf32> to vector<2x8xf32>
      %66 = arith.addf %63, %65 : vector<2x8xf32>
      %cst_21 = arith.constant 4.000000e-02 : f32
      %67 = vector.broadcast %cst_21 : f32 to vector<2x8xf32>
      %68 = arith.mulf %66, %67 : vector<2x8xf32>
      %cst_22 = arith.constant dense<0.000000e+00> : vector<2x128xf32>
      %69 = tpu.matmul %68, %15, %cst_22 {dimension_numbers = #tpu.dot_dimension_numbers<[1], [0], [0], [1], [0, 0, 1, 1], [], []>} : vector<2x8xf32>, vector<8x128xf32>, vector<2x128xf32> -> vector<2x128xf32>
      %70 = vector.broadcast %16 : vector<1x128xf32> to vector<2x128xf32>
      %71 = arith.addf %69, %70 : vector<2x128xf32>
      %cst_23 = arith.constant 0.000000e+00 : f32
      %72 = vector.broadcast %cst_23 : f32 to vector<2x128xf32>
      %73 = arith.maximumf %71, %72 : vector<2x128xf32>
      %74 = vector.extract_strided_slice %31 {offsets = [0, 6, 0], sizes = [2, 1, 8], strides = [1, 1, 1]} : vector<2x17x8xf32> to vector<2x1x8xf32>
      %75 = vector.shape_cast %74 : vector<2x1x8xf32> to vector<2x8xf32>
      %76 = vector.extract_strided_slice %31 {offsets = [0, 7, 0], sizes = [2, 1, 8], strides = [1, 1, 1]} : vector<2x17x8xf32> to vector<2x1x8xf32>
      %77 = vector.shape_cast %76 : vector<2x1x8xf32> to vector<2x8xf32>
      %78 = arith.addf %75, %77 : vector<2x8xf32>
      %79 = vector.extract_strided_slice %31 {offsets = [0, 8, 0], sizes = [2, 1, 8], strides = [1, 1, 1]} : vector<2x17x8xf32> to vector<2x1x8xf32>
      %80 = vector.shape_cast %79 : vector<2x1x8xf32> to vector<2x8xf32>
      %81 = arith.addf %78, %80 : vector<2x8xf32>
      %82 = vector.extract_strided_slice %31 {offsets = [0, 9, 0], sizes = [2, 1, 8], strides = [1, 1, 1]} : vector<2x17x8xf32> to vector<2x1x8xf32>
      %83 = vector.shape_cast %82 : vector<2x1x8xf32> to vector<2x8xf32>
      %84 = arith.addf %81, %83 : vector<2x8xf32>
      %85 = vector.extract_strided_slice %31 {offsets = [0, 10, 0], sizes = [2, 1, 8], strides = [1, 1, 1]} : vector<2x17x8xf32> to vector<2x1x8xf32>
      %86 = vector.shape_cast %85 : vector<2x1x8xf32> to vector<2x8xf32>
      %87 = arith.addf %84, %86 : vector<2x8xf32>
      %cst_24 = arith.constant 4.000000e-02 : f32
      %88 = vector.broadcast %cst_24 : f32 to vector<2x8xf32>
      %89 = arith.mulf %87, %88 : vector<2x8xf32>
      %cst_25 = arith.constant dense<0.000000e+00> : vector<2x128xf32>
      %90 = tpu.matmul %89, %15, %cst_25 {dimension_numbers = #tpu.dot_dimension_numbers<[1], [0], [0], [1], [0, 0, 1, 1], [], []>} : vector<2x8xf32>, vector<8x128xf32>, vector<2x128xf32> -> vector<2x128xf32>
      %91 = vector.broadcast %16 : vector<1x128xf32> to vector<2x128xf32>
      %92 = arith.addf %90, %91 : vector<2x128xf32>
      %cst_26 = arith.constant 0.000000e+00 : f32
      %93 = vector.broadcast %cst_26 : f32 to vector<2x128xf32>
      %94 = arith.maximumf %92, %93 : vector<2x128xf32>
      %95 = vector.extract_strided_slice %31 {offsets = [0, 9, 0], sizes = [2, 1, 8], strides = [1, 1, 1]} : vector<2x17x8xf32> to vector<2x1x8xf32>
      %96 = vector.shape_cast %95 : vector<2x1x8xf32> to vector<2x8xf32>
      %97 = vector.extract_strided_slice %31 {offsets = [0, 10, 0], sizes = [2, 1, 8], strides = [1, 1, 1]} : vector<2x17x8xf32> to vector<2x1x8xf32>
      %98 = vector.shape_cast %97 : vector<2x1x8xf32> to vector<2x8xf32>
      %99 = arith.addf %96, %98 : vector<2x8xf32>
      %100 = vector.extract_strided_slice %31 {offsets = [0, 11, 0], sizes = [2, 1, 8], strides = [1, 1, 1]} : vector<2x17x8xf32> to vector<2x1x8xf32>
      %101 = vector.shape_cast %100 : vector<2x1x8xf32> to vector<2x8xf32>
      %102 = arith.addf %99, %101 : vector<2x8xf32>
      %103 = vector.extract_strided_slice %31 {offsets = [0, 12, 0], sizes = [2, 1, 8], strides = [1, 1, 1]} : vector<2x17x8xf32> to vector<2x1x8xf32>
      %104 = vector.shape_cast %103 : vector<2x1x8xf32> to vector<2x8xf32>
      %105 = arith.addf %102, %104 : vector<2x8xf32>
      %106 = vector.extract_strided_slice %31 {offsets = [0, 13, 0], sizes = [2, 1, 8], strides = [1, 1, 1]} : vector<2x17x8xf32> to vector<2x1x8xf32>
      %107 = vector.shape_cast %106 : vector<2x1x8xf32> to vector<2x8xf32>
      %108 = arith.addf %105, %107 : vector<2x8xf32>
      %cst_27 = arith.constant 4.000000e-02 : f32
      %109 = vector.broadcast %cst_27 : f32 to vector<2x8xf32>
      %110 = arith.mulf %108, %109 : vector<2x8xf32>
      %cst_28 = arith.constant dense<0.000000e+00> : vector<2x128xf32>
      %111 = tpu.matmul %110, %15, %cst_28 {dimension_numbers = #tpu.dot_dimension_numbers<[1], [0], [0], [1], [0, 0, 1, 1], [], []>} : vector<2x8xf32>, vector<8x128xf32>, vector<2x128xf32> -> vector<2x128xf32>
      %112 = vector.broadcast %16 : vector<1x128xf32> to vector<2x128xf32>
      %113 = arith.addf %111, %112 : vector<2x128xf32>
      %cst_29 = arith.constant 0.000000e+00 : f32
      %114 = vector.broadcast %cst_29 : f32 to vector<2x128xf32>
      %115 = arith.maximumf %113, %114 : vector<2x128xf32>
      %116 = vector.extract_strided_slice %31 {offsets = [0, 12, 0], sizes = [2, 1, 8], strides = [1, 1, 1]} : vector<2x17x8xf32> to vector<2x1x8xf32>
      %117 = vector.shape_cast %116 : vector<2x1x8xf32> to vector<2x8xf32>
      %118 = vector.extract_strided_slice %31 {offsets = [0, 13, 0], sizes = [2, 1, 8], strides = [1, 1, 1]} : vector<2x17x8xf32> to vector<2x1x8xf32>
      %119 = vector.shape_cast %118 : vector<2x1x8xf32> to vector<2x8xf32>
      %120 = arith.addf %117, %119 : vector<2x8xf32>
      %121 = vector.extract_strided_slice %31 {offsets = [0, 14, 0], sizes = [2, 1, 8], strides = [1, 1, 1]} : vector<2x17x8xf32> to vector<2x1x8xf32>
      %122 = vector.shape_cast %121 : vector<2x1x8xf32> to vector<2x8xf32>
      %123 = arith.addf %120, %122 : vector<2x8xf32>
      %124 = vector.extract_strided_slice %31 {offsets = [0, 15, 0], sizes = [2, 1, 8], strides = [1, 1, 1]} : vector<2x17x8xf32> to vector<2x1x8xf32>
      %125 = vector.shape_cast %124 : vector<2x1x8xf32> to vector<2x8xf32>
      %126 = arith.addf %123, %125 : vector<2x8xf32>
      %127 = vector.extract_strided_slice %31 {offsets = [0, 16, 0], sizes = [2, 1, 8], strides = [1, 1, 1]} : vector<2x17x8xf32> to vector<2x1x8xf32>
      %128 = vector.shape_cast %127 : vector<2x1x8xf32> to vector<2x8xf32>
      %129 = arith.addf %126, %128 : vector<2x8xf32>
      %cst_30 = arith.constant 4.000000e-02 : f32
      %130 = vector.broadcast %cst_30 : f32 to vector<2x8xf32>
      %131 = arith.mulf %129, %130 : vector<2x8xf32>
      %cst_31 = arith.constant dense<0.000000e+00> : vector<2x128xf32>
      %132 = tpu.matmul %131, %15, %cst_31 {dimension_numbers = #tpu.dot_dimension_numbers<[1], [0], [0], [1], [0, 0, 1, 1], [], []>} : vector<2x8xf32>, vector<8x128xf32>, vector<2x128xf32> -> vector<2x128xf32>
      %133 = vector.broadcast %16 : vector<1x128xf32> to vector<2x128xf32>
      %134 = arith.addf %132, %133 : vector<2x128xf32>
      %cst_32 = arith.constant 0.000000e+00 : f32
      %135 = vector.broadcast %cst_32 : f32 to vector<2x128xf32>
      %136 = arith.maximumf %134, %135 : vector<2x128xf32>
      %137 = tpu.concatenate %52, %73, %94, %115, %136 in 1 : vector<2x128xf32>, vector<2x128xf32>, vector<2x128xf32>, vector<2x128xf32>, vector<2x128xf32> -> vector<2x640xf32>
      %138 = tpu.concatenate %137, %17 in 0 : vector<2x640xf32>, vector<14x640xf32> -> vector<16x640xf32>
      %139 = arith.truncf %138 : vector<16x640xf32> to vector<16x640xbf16>
      %c0_33 = arith.constant 0 : index
      %c0_34 = arith.constant 0 : index
      %c0_35 = arith.constant 0 : index
      %140 = vector.load %arg9[%c0_33, %c0_34, %c0_35] : memref<5x16x640xbf16, #tpu.memory_space<vmem>>, vector<1x16x640xbf16>
      %141 = vector.shape_cast %140 : vector<1x16x640xbf16> to vector<16x640xbf16>
      %142 = vector.shape_cast %139 : vector<16x640xbf16> to vector<1x16x640xbf16>
      tpu.vector_store %arg9[%c0_33, %c0_34, %c0_35], %142 {strides = array<i32>} : memref<5x16x640xbf16, #tpu.memory_space<vmem>>, vector<1x16x640xbf16>,
      %143 = vector.extract_strided_slice %14 {offsets = [0, 3, 0, 0], sizes = [2, 1, 17, 8], strides = [1, 1, 1, 1]} : vector<2x17x17x8xf32> to vector<2x1x17x8xf32>
      %144 = vector.shape_cast %143 : vector<2x1x17x8xf32> to vector<2x17x8xf32>
      %145 = vector.extract_strided_slice %14 {offsets = [0, 4, 0, 0], sizes = [2, 1, 17, 8], strides = [1, 1, 1, 1]} : vector<2x17x17x8xf32> to vector<2x1x17x8xf32>
      %146 = vector.shape_cast %145 : vector<2x1x17x8xf32> to vector<2x17x8xf32>
      %147 = arith.addf %144, %146 : vector<2x17x8xf32>
      %148 = vector.extract_strided_slice %14 {offsets = [0, 5, 0, 0], sizes = [2, 1, 17, 8], strides = [1, 1, 1, 1]} : vector<2x17x17x8xf32> to vector<2x1x17x8xf32>
      %149 = vector.shape_cast %148 : vector<2x1x17x8xf32> to vector<2x17x8xf32>
      %150 = arith.addf %147, %149 : vector<2x17x8xf32>
      %151 = vector.extract_strided_slice %14 {offsets = [0, 6, 0, 0], sizes = [2, 1, 17, 8], strides = [1, 1, 1, 1]} : vector<2x17x17x8xf32> to vector<2x1x17x8xf32>
      %152 = vector.shape_cast %151 : vector<2x1x17x8xf32> to vector<2x17x8xf32>
      %153 = arith.addf %150, %152 : vector<2x17x8xf32>
      %154 = vector.extract_strided_slice %14 {offsets = [0, 7, 0, 0], sizes = [2, 1, 17, 8], strides = [1, 1, 1, 1]} : vector<2x17x17x8xf32> to vector<2x1x17x8xf32>
      %155 = vector.shape_cast %154 : vector<2x1x17x8xf32> to vector<2x17x8xf32>
      %156 = arith.addf %153, %155 : vector<2x17x8xf32>
      %157 = vector.extract_strided_slice %156 {offsets = [0, 0, 0], sizes = [2, 1, 8], strides = [1, 1, 1]} : vector<2x17x8xf32> to vector<2x1x8xf32>
      %158 = vector.shape_cast %157 : vector<2x1x8xf32> to vector<2x8xf32>
      %159 = vector.extract_strided_slice %156 {offsets = [0, 1, 0], sizes = [2, 1, 8], strides = [1, 1, 1]} : vector<2x17x8xf32> to vector<2x1x8xf32>
      %160 = vector.shape_cast %159 : vector<2x1x8xf32> to vector<2x8xf32>
      %161 = arith.addf %158, %160 : vector<2x8xf32>
      %162 = vector.extract_strided_slice %156 {offsets = [0, 2, 0], sizes = [2, 1, 8], strides = [1, 1, 1]} : vector<2x17x8xf32> to vector<2x1x8xf32>
      %163 = vector.shape_cast %162 : vector<2x1x8xf32> to vector<2x8xf32>
      %164 = arith.addf %161, %163 : vector<2x8xf32>
      %165 = vector.extract_strided_slice %156 {offsets = [0, 3, 0], sizes = [2, 1, 8], strides = [1, 1, 1]} : vector<2x17x8xf32> to vector<2x1x8xf32>
      %166 = vector.shape_cast %165 : vector<2x1x8xf32> to vector<2x8xf32>
      %167 = arith.addf %164, %166 : vector<2x8xf32>
      %168 = vector.extract_strided_slice %156 {offsets = [0, 4, 0], sizes = [2, 1, 8], strides = [1, 1, 1]} : vector<2x17x8xf32> to vector<2x1x8xf32>
      %169 = vector.shape_cast %168 : vector<2x1x8xf32> to vector<2x8xf32>
      %170 = arith.addf %167, %169 : vector<2x8xf32>
      %cst_36 = arith.constant 4.000000e-02 : f32
      %171 = vector.broadcast %cst_36 : f32 to vector<2x8xf32>
      %172 = arith.mulf %170, %171 : vector<2x8xf32>
      %cst_37 = arith.constant dense<0.000000e+00> : vector<2x128xf32>
      %173 = tpu.matmul %172, %15, %cst_37 {dimension_numbers = #tpu.dot_dimension_numbers<[1], [0], [0], [1], [0, 0, 1, 1], [], []>} : vector<2x8xf32>, vector<8x128xf32>, vector<2x128xf32> -> vector<2x128xf32>
      %174 = vector.broadcast %16 : vector<1x128xf32> to vector<2x128xf32>
      %175 = arith.addf %173, %174 : vector<2x128xf32>
      %cst_38 = arith.constant 0.000000e+00 : f32
      %176 = vector.broadcast %cst_38 : f32 to vector<2x128xf32>
      %177 = arith.maximumf %175, %176 : vector<2x128xf32>
      %178 = vector.extract_strided_slice %156 {offsets = [0, 3, 0], sizes = [2, 1, 8], strides = [1, 1, 1]} : vector<2x17x8xf32> to vector<2x1x8xf32>
      %179 = vector.shape_cast %178 : vector<2x1x8xf32> to vector<2x8xf32>
      %180 = vector.extract_strided_slice %156 {offsets = [0, 4, 0], sizes = [2, 1, 8], strides = [1, 1, 1]} : vector<2x17x8xf32> to vector<2x1x8xf32>
      %181 = vector.shape_cast %180 : vector<2x1x8xf32> to vector<2x8xf32>
      %182 = arith.addf %179, %181 : vector<2x8xf32>
      %183 = vector.extract_strided_slice %156 {offsets = [0, 5, 0], sizes = [2, 1, 8], strides = [1, 1, 1]} : vector<2x17x8xf32> to vector<2x1x8xf32>
      %184 = vector.shape_cast %183 : vector<2x1x8xf32> to vector<2x8xf32>
      %185 = arith.addf %182, %184 : vector<2x8xf32>
      %186 = vector.extract_strided_slice %156 {offsets = [0, 6, 0], sizes = [2, 1, 8], strides = [1, 1, 1]} : vector<2x17x8xf32> to vector<2x1x8xf32>
      %187 = vector.shape_cast %186 : vector<2x1x8xf32> to vector<2x8xf32>
      %188 = arith.addf %185, %187 : vector<2x8xf32>
      %189 = vector.extract_strided_slice %156 {offsets = [0, 7, 0], sizes = [2, 1, 8], strides = [1, 1, 1]} : vector<2x17x8xf32> to vector<2x1x8xf32>
      %190 = vector.shape_cast %189 : vector<2x1x8xf32> to vector<2x8xf32>
      %191 = arith.addf %188, %190 : vector<2x8xf32>
      %cst_39 = arith.constant 4.000000e-02 : f32
      %192 = vector.broadcast %cst_39 : f32 to vector<2x8xf32>
      %193 = arith.mulf %191, %192 : vector<2x8xf32>
      %cst_40 = arith.constant dense<0.000000e+00> : vector<2x128xf32>
      %194 = tpu.matmul %193, %15, %cst_40 {dimension_numbers = #tpu.dot_dimension_numbers<[1], [0], [0], [1], [0, 0, 1, 1], [], []>} : vector<2x8xf32>, vector<8x128xf32>, vector<2x128xf32> -> vector<2x128xf32>
      %195 = vector.broadcast %16 : vector<1x128xf32> to vector<2x128xf32>
      %196 = arith.addf %194, %195 : vector<2x128xf32>
      %cst_41 = arith.constant 0.000000e+00 : f32
      %197 = vector.broadcast %cst_41 : f32 to vector<2x128xf32>
      %198 = arith.maximumf %196, %197 : vector<2x128xf32>
      %199 = vector.extract_strided_slice %156 {offsets = [0, 6, 0], sizes = [2, 1, 8], strides = [1, 1, 1]} : vector<2x17x8xf32> to vector<2x1x8xf32>
      %200 = vector.shape_cast %199 : vector<2x1x8xf32> to vector<2x8xf32>
      %201 = vector.extract_strided_slice %156 {offsets = [0, 7, 0], sizes = [2, 1, 8], strides = [1, 1, 1]} : vector<2x17x8xf32> to vector<2x1x8xf32>
      %202 = vector.shape_cast %201 : vector<2x1x8xf32> to vector<2x8xf32>
      %203 = arith.addf %200, %202 : vector<2x8xf32>
      %204 = vector.extract_strided_slice %156 {offsets = [0, 8, 0], sizes = [2, 1, 8], strides = [1, 1, 1]} : vector<2x17x8xf32> to vector<2x1x8xf32>
      %205 = vector.shape_cast %204 : vector<2x1x8xf32> to vector<2x8xf32>
      %206 = arith.addf %203, %205 : vector<2x8xf32>
      %207 = vector.extract_strided_slice %156 {offsets = [0, 9, 0], sizes = [2, 1, 8], strides = [1, 1, 1]} : vector<2x17x8xf32> to vector<2x1x8xf32>
      %208 = vector.shape_cast %207 : vector<2x1x8xf32> to vector<2x8xf32>
      %209 = arith.addf %206, %208 : vector<2x8xf32>
      %210 = vector.extract_strided_slice %156 {offsets = [0, 10, 0], sizes = [2, 1, 8], strides = [1, 1, 1]} : vector<2x17x8xf32> to vector<2x1x8xf32>
      %211 = vector.shape_cast %210 : vector<2x1x8xf32> to vector<2x8xf32>
      %212 = arith.addf %209, %211 : vector<2x8xf32>
      %cst_42 = arith.constant 4.000000e-02 : f32
      %213 = vector.broadcast %cst_42 : f32 to vector<2x8xf32>
      %214 = arith.mulf %212, %213 : vector<2x8xf32>
      %cst_43 = arith.constant dense<0.000000e+00> : vector<2x128xf32>
      %215 = tpu.matmul %214, %15, %cst_43 {dimension_numbers = #tpu.dot_dimension_numbers<[1], [0], [0], [1], [0, 0, 1, 1], [], []>} : vector<2x8xf32>, vector<8x128xf32>, vector<2x128xf32> -> vector<2x128xf32>
      %216 = vector.broadcast %16 : vector<1x128xf32> to vector<2x128xf32>
      %217 = arith.addf %215, %216 : vector<2x128xf32>
      %cst_44 = arith.constant 0.000000e+00 : f32
      %218 = vector.broadcast %cst_44 : f32 to vector<2x128xf32>
      %219 = arith.maximumf %217, %218 : vector<2x128xf32>
      %220 = vector.extract_strided_slice %156 {offsets = [0, 9, 0], sizes = [2, 1, 8], strides = [1, 1, 1]} : vector<2x17x8xf32> to vector<2x1x8xf32>
      %221 = vector.shape_cast %220 : vector<2x1x8xf32> to vector<2x8xf32>
      %222 = vector.extract_strided_slice %156 {offsets = [0, 10, 0], sizes = [2, 1, 8], strides = [1, 1, 1]} : vector<2x17x8xf32> to vector<2x1x8xf32>
      %223 = vector.shape_cast %222 : vector<2x1x8xf32> to vector<2x8xf32>
      %224 = arith.addf %221, %223 : vector<2x8xf32>
      %225 = vector.extract_strided_slice %156 {offsets = [0, 11, 0], sizes = [2, 1, 8], strides = [1, 1, 1]} : vector<2x17x8xf32> to vector<2x1x8xf32>
      %226 = vector.shape_cast %225 : vector<2x1x8xf32> to vector<2x8xf32>
      %227 = arith.addf %224, %226 : vector<2x8xf32>
      %228 = vector.extract_strided_slice %156 {offsets = [0, 12, 0], sizes = [2, 1, 8], strides = [1, 1, 1]} : vector<2x17x8xf32> to vector<2x1x8xf32>
      %229 = vector.shape_cast %228 : vector<2x1x8xf32> to vector<2x8xf32>
      %230 = arith.addf %227, %229 : vector<2x8xf32>
      %231 = vector.extract_strided_slice %156 {offsets = [0, 13, 0], sizes = [2, 1, 8], strides = [1, 1, 1]} : vector<2x17x8xf32> to vector<2x1x8xf32>
      %232 = vector.shape_cast %231 : vector<2x1x8xf32> to vector<2x8xf32>
      %233 = arith.addf %230, %232 : vector<2x8xf32>
      %cst_45 = arith.constant 4.000000e-02 : f32
      %234 = vector.broadcast %cst_45 : f32 to vector<2x8xf32>
      %235 = arith.mulf %233, %234 : vector<2x8xf32>
      %cst_46 = arith.constant dense<0.000000e+00> : vector<2x128xf32>
      %236 = tpu.matmul %235, %15, %cst_46 {dimension_numbers = #tpu.dot_dimension_numbers<[1], [0], [0], [1], [0, 0, 1, 1], [], []>} : vector<2x8xf32>, vector<8x128xf32>, vector<2x128xf32> -> vector<2x128xf32>
      %237 = vector.broadcast %16 : vector<1x128xf32> to vector<2x128xf32>
      %238 = arith.addf %236, %237 : vector<2x128xf32>
      %cst_47 = arith.constant 0.000000e+00 : f32
      %239 = vector.broadcast %cst_47 : f32 to vector<2x128xf32>
      %240 = arith.maximumf %238, %239 : vector<2x128xf32>
      %241 = vector.extract_strided_slice %156 {offsets = [0, 12, 0], sizes = [2, 1, 8], strides = [1, 1, 1]} : vector<2x17x8xf32> to vector<2x1x8xf32>
      %242 = vector.shape_cast %241 : vector<2x1x8xf32> to vector<2x8xf32>
      %243 = vector.extract_strided_slice %156 {offsets = [0, 13, 0], sizes = [2, 1, 8], strides = [1, 1, 1]} : vector<2x17x8xf32> to vector<2x1x8xf32>
      %244 = vector.shape_cast %243 : vector<2x1x8xf32> to vector<2x8xf32>
      %245 = arith.addf %242, %244 : vector<2x8xf32>
      %246 = vector.extract_strided_slice %156 {offsets = [0, 14, 0], sizes = [2, 1, 8], strides = [1, 1, 1]} : vector<2x17x8xf32> to vector<2x1x8xf32>
      %247 = vector.shape_cast %246 : vector<2x1x8xf32> to vector<2x8xf32>
      %248 = arith.addf %245, %247 : vector<2x8xf32>
      %249 = vector.extract_strided_slice %156 {offsets = [0, 15, 0], sizes = [2, 1, 8], strides = [1, 1, 1]} : vector<2x17x8xf32> to vector<2x1x8xf32>
      %250 = vector.shape_cast %249 : vector<2x1x8xf32> to vector<2x8xf32>
      %251 = arith.addf %248, %250 : vector<2x8xf32>
      %252 = vector.extract_strided_slice %156 {offsets = [0, 16, 0], sizes = [2, 1, 8], strides = [1, 1, 1]} : vector<2x17x8xf32> to vector<2x1x8xf32>
      %253 = vector.shape_cast %252 : vector<2x1x8xf32> to vector<2x8xf32>
      %254 = arith.addf %251, %253 : vector<2x8xf32>
      %cst_48 = arith.constant 4.000000e-02 : f32
      %255 = vector.broadcast %cst_48 : f32 to vector<2x8xf32>
      %256 = arith.mulf %254, %255 : vector<2x8xf32>
      %cst_49 = arith.constant dense<0.000000e+00> : vector<2x128xf32>
      %257 = tpu.matmul %256, %15, %cst_49 {dimension_numbers = #tpu.dot_dimension_numbers<[1], [0], [0], [1], [0, 0, 1, 1], [], []>} : vector<2x8xf32>, vector<8x128xf32>, vector<2x128xf32> -> vector<2x128xf32>
      %258 = vector.broadcast %16 : vector<1x128xf32> to vector<2x128xf32>
      %259 = arith.addf %257, %258 : vector<2x128xf32>
      %cst_50 = arith.constant 0.000000e+00 : f32
      %260 = vector.broadcast %cst_50 : f32 to vector<2x128xf32>
      %261 = arith.maximumf %259, %260 : vector<2x128xf32>
      %262 = tpu.concatenate %177, %198, %219, %240, %261 in 1 : vector<2x128xf32>, vector<2x128xf32>, vector<2x128xf32>, vector<2x128xf32>, vector<2x128xf32> -> vector<2x640xf32>
      %263 = tpu.concatenate %262, %17 in 0 : vector<2x640xf32>, vector<14x640xf32> -> vector<16x640xf32>
      %264 = arith.truncf %263 : vector<16x640xf32> to vector<16x640xbf16>
      %c1 = arith.constant 1 : index
      %c0_51 = arith.constant 0 : index
      %c0_52 = arith.constant 0 : index
      %265 = vector.load %arg9[%c1, %c0_51, %c0_52] : memref<5x16x640xbf16, #tpu.memory_space<vmem>>, vector<1x16x640xbf16>
      %266 = vector.shape_cast %265 : vector<1x16x640xbf16> to vector<16x640xbf16>
      %267 = vector.shape_cast %264 : vector<16x640xbf16> to vector<1x16x640xbf16>
      tpu.vector_store %arg9[%c1, %c0_51, %c0_52], %267 {strides = array<i32>} : memref<5x16x640xbf16, #tpu.memory_space<vmem>>, vector<1x16x640xbf16>,
      %268 = vector.extract_strided_slice %14 {offsets = [0, 6, 0, 0], sizes = [2, 1, 17, 8], strides = [1, 1, 1, 1]} : vector<2x17x17x8xf32> to vector<2x1x17x8xf32>
      %269 = vector.shape_cast %268 : vector<2x1x17x8xf32> to vector<2x17x8xf32>
      %270 = vector.extract_strided_slice %14 {offsets = [0, 7, 0, 0], sizes = [2, 1, 17, 8], strides = [1, 1, 1, 1]} : vector<2x17x17x8xf32> to vector<2x1x17x8xf32>
      %271 = vector.shape_cast %270 : vector<2x1x17x8xf32> to vector<2x17x8xf32>
      %272 = arith.addf %269, %271 : vector<2x17x8xf32>
      %273 = vector.extract_strided_slice %14 {offsets = [0, 8, 0, 0], sizes = [2, 1, 17, 8], strides = [1, 1, 1, 1]} : vector<2x17x17x8xf32> to vector<2x1x17x8xf32>
      %274 = vector.shape_cast %273 : vector<2x1x17x8xf32> to vector<2x17x8xf32>
      %275 = arith.addf %272, %274 : vector<2x17x8xf32>
      %276 = vector.extract_strided_slice %14 {offsets = [0, 9, 0, 0], sizes = [2, 1, 17, 8], strides = [1, 1, 1, 1]} : vector<2x17x17x8xf32> to vector<2x1x17x8xf32>
      %277 = vector.shape_cast %276 : vector<2x1x17x8xf32> to vector<2x17x8xf32>
      %278 = arith.addf %275, %277 : vector<2x17x8xf32>
      %279 = vector.extract_strided_slice %14 {offsets = [0, 10, 0, 0], sizes = [2, 1, 17, 8], strides = [1, 1, 1, 1]} : vector<2x17x17x8xf32> to vector<2x1x17x8xf32>
      %280 = vector.shape_cast %279 : vector<2x1x17x8xf32> to vector<2x17x8xf32>
      %281 = arith.addf %278, %280 : vector<2x17x8xf32>
      %282 = vector.extract_strided_slice %281 {offsets = [0, 0, 0], sizes = [2, 1, 8], strides = [1, 1, 1]} : vector<2x17x8xf32> to vector<2x1x8xf32>
      %283 = vector.shape_cast %282 : vector<2x1x8xf32> to vector<2x8xf32>
      %284 = vector.extract_strided_slice %281 {offsets = [0, 1, 0], sizes = [2, 1, 8], strides = [1, 1, 1]} : vector<2x17x8xf32> to vector<2x1x8xf32>
      %285 = vector.shape_cast %284 : vector<2x1x8xf32> to vector<2x8xf32>
      %286 = arith.addf %283, %285 : vector<2x8xf32>
      %287 = vector.extract_strided_slice %281 {offsets = [0, 2, 0], sizes = [2, 1, 8], strides = [1, 1, 1]} : vector<2x17x8xf32> to vector<2x1x8xf32>
      %288 = vector.shape_cast %287 : vector<2x1x8xf32> to vector<2x8xf32>
      %289 = arith.addf %286, %288 : vector<2x8xf32>
      %290 = vector.extract_strided_slice %281 {offsets = [0, 3, 0], sizes = [2, 1, 8], strides = [1, 1, 1]} : vector<2x17x8xf32> to vector<2x1x8xf32>
      %291 = vector.shape_cast %290 : vector<2x1x8xf32> to vector<2x8xf32>
      %292 = arith.addf %289, %291 : vector<2x8xf32>
      %293 = vector.extract_strided_slice %281 {offsets = [0, 4, 0], sizes = [2, 1, 8], strides = [1, 1, 1]} : vector<2x17x8xf32> to vector<2x1x8xf32>
      %294 = vector.shape_cast %293 : vector<2x1x8xf32> to vector<2x8xf32>
      %295 = arith.addf %292, %294 : vector<2x8xf32>
      %cst_53 = arith.constant 4.000000e-02 : f32
      %296 = vector.broadcast %cst_53 : f32 to vector<2x8xf32>
      %297 = arith.mulf %295, %296 : vector<2x8xf32>
      %cst_54 = arith.constant dense<0.000000e+00> : vector<2x128xf32>
      %298 = tpu.matmul %297, %15, %cst_54 {dimension_numbers = #tpu.dot_dimension_numbers<[1], [0], [0], [1], [0, 0, 1, 1], [], []>} : vector<2x8xf32>, vector<8x128xf32>, vector<2x128xf32> -> vector<2x128xf32>
      %299 = vector.broadcast %16 : vector<1x128xf32> to vector<2x128xf32>
      %300 = arith.addf %298, %299 : vector<2x128xf32>
      %cst_55 = arith.constant 0.000000e+00 : f32
      %301 = vector.broadcast %cst_55 : f32 to vector<2x128xf32>
      %302 = arith.maximumf %300, %301 : vector<2x128xf32>
      %303 = vector.extract_strided_slice %281 {offsets = [0, 3, 0], sizes = [2, 1, 8], strides = [1, 1, 1]} : vector<2x17x8xf32> to vector<2x1x8xf32>
      %304 = vector.shape_cast %303 : vector<2x1x8xf32> to vector<2x8xf32>
      %305 = vector.extract_strided_slice %281 {offsets = [0, 4, 0], sizes = [2, 1, 8], strides = [1, 1, 1]} : vector<2x17x8xf32> to vector<2x1x8xf32>
      %306 = vector.shape_cast %305 : vector<2x1x8xf32> to vector<2x8xf32>
      %307 = arith.addf %304, %306 : vector<2x8xf32>
      %308 = vector.extract_strided_slice %281 {offsets = [0, 5, 0], sizes = [2, 1, 8], strides = [1, 1, 1]} : vector<2x17x8xf32> to vector<2x1x8xf32>
      %309 = vector.shape_cast %308 : vector<2x1x8xf32> to vector<2x8xf32>
      %310 = arith.addf %307, %309 : vector<2x8xf32>
      %311 = vector.extract_strided_slice %281 {offsets = [0, 6, 0], sizes = [2, 1, 8], strides = [1, 1, 1]} : vector<2x17x8xf32> to vector<2x1x8xf32>
      %312 = vector.shape_cast %311 : vector<2x1x8xf32> to vector<2x8xf32>
      %313 = arith.addf %310, %312 : vector<2x8xf32>
      %314 = vector.extract_strided_slice %281 {offsets = [0, 7, 0], sizes = [2, 1, 8], strides = [1, 1, 1]} : vector<2x17x8xf32> to vector<2x1x8xf32>
      %315 = vector.shape_cast %314 : vector<2x1x8xf32> to vector<2x8xf32>
      %316 = arith.addf %313, %315 : vector<2x8xf32>
      %cst_56 = arith.constant 4.000000e-02 : f32
      %317 = vector.broadcast %cst_56 : f32 to vector<2x8xf32>
      %318 = arith.mulf %316, %317 : vector<2x8xf32>
      %cst_57 = arith.constant dense<0.000000e+00> : vector<2x128xf32>
      %319 = tpu.matmul %318, %15, %cst_57 {dimension_numbers = #tpu.dot_dimension_numbers<[1], [0], [0], [1], [0, 0, 1, 1], [], []>} : vector<2x8xf32>, vector<8x128xf32>, vector<2x128xf32> -> vector<2x128xf32>
      %320 = vector.broadcast %16 : vector<1x128xf32> to vector<2x128xf32>
      %321 = arith.addf %319, %320 : vector<2x128xf32>
      %cst_58 = arith.constant 0.000000e+00 : f32
      %322 = vector.broadcast %cst_58 : f32 to vector<2x128xf32>
      %323 = arith.maximumf %321, %322 : vector<2x128xf32>
      %324 = vector.extract_strided_slice %281 {offsets = [0, 6, 0], sizes = [2, 1, 8], strides = [1, 1, 1]} : vector<2x17x8xf32> to vector<2x1x8xf32>
      %325 = vector.shape_cast %324 : vector<2x1x8xf32> to vector<2x8xf32>
      %326 = vector.extract_strided_slice %281 {offsets = [0, 7, 0], sizes = [2, 1, 8], strides = [1, 1, 1]} : vector<2x17x8xf32> to vector<2x1x8xf32>
      %327 = vector.shape_cast %326 : vector<2x1x8xf32> to vector<2x8xf32>
      %328 = arith.addf %325, %327 : vector<2x8xf32>
      %329 = vector.extract_strided_slice %281 {offsets = [0, 8, 0], sizes = [2, 1, 8], strides = [1, 1, 1]} : vector<2x17x8xf32> to vector<2x1x8xf32>
      %330 = vector.shape_cast %329 : vector<2x1x8xf32> to vector<2x8xf32>
      %331 = arith.addf %328, %330 : vector<2x8xf32>
      %332 = vector.extract_strided_slice %281 {offsets = [0, 9, 0], sizes = [2, 1, 8], strides = [1, 1, 1]} : vector<2x17x8xf32> to vector<2x1x8xf32>
      %333 = vector.shape_cast %332 : vector<2x1x8xf32> to vector<2x8xf32>
      %334 = arith.addf %331, %333 : vector<2x8xf32>
      %335 = vector.extract_strided_slice %281 {offsets = [0, 10, 0], sizes = [2, 1, 8], strides = [1, 1, 1]} : vector<2x17x8xf32> to vector<2x1x8xf32>
      %336 = vector.shape_cast %335 : vector<2x1x8xf32> to vector<2x8xf32>
      %337 = arith.addf %334, %336 : vector<2x8xf32>
      %cst_59 = arith.constant 4.000000e-02 : f32
      %338 = vector.broadcast %cst_59 : f32 to vector<2x8xf32>
      %339 = arith.mulf %337, %338 : vector<2x8xf32>
      %cst_60 = arith.constant dense<0.000000e+00> : vector<2x128xf32>
      %340 = tpu.matmul %339, %15, %cst_60 {dimension_numbers = #tpu.dot_dimension_numbers<[1], [0], [0], [1], [0, 0, 1, 1], [], []>} : vector<2x8xf32>, vector<8x128xf32>, vector<2x128xf32> -> vector<2x128xf32>
      %341 = vector.broadcast %16 : vector<1x128xf32> to vector<2x128xf32>
      %342 = arith.addf %340, %341 : vector<2x128xf32>
      %cst_61 = arith.constant 0.000000e+00 : f32
      %343 = vector.broadcast %cst_61 : f32 to vector<2x128xf32>
      %344 = arith.maximumf %342, %343 : vector<2x128xf32>
      %345 = vector.extract_strided_slice %281 {offsets = [0, 9, 0], sizes = [2, 1, 8], strides = [1, 1, 1]} : vector<2x17x8xf32> to vector<2x1x8xf32>
      %346 = vector.shape_cast %345 : vector<2x1x8xf32> to vector<2x8xf32>
      %347 = vector.extract_strided_slice %281 {offsets = [0, 10, 0], sizes = [2, 1, 8], strides = [1, 1, 1]} : vector<2x17x8xf32> to vector<2x1x8xf32>
      %348 = vector.shape_cast %347 : vector<2x1x8xf32> to vector<2x8xf32>
      %349 = arith.addf %346, %348 : vector<2x8xf32>
      %350 = vector.extract_strided_slice %281 {offsets = [0, 11, 0], sizes = [2, 1, 8], strides = [1, 1, 1]} : vector<2x17x8xf32> to vector<2x1x8xf32>
      %351 = vector.shape_cast %350 : vector<2x1x8xf32> to vector<2x8xf32>
      %352 = arith.addf %349, %351 : vector<2x8xf32>
      %353 = vector.extract_strided_slice %281 {offsets = [0, 12, 0], sizes = [2, 1, 8], strides = [1, 1, 1]} : vector<2x17x8xf32> to vector<2x1x8xf32>
      %354 = vector.shape_cast %353 : vector<2x1x8xf32> to vector<2x8xf32>
      %355 = arith.addf %352, %354 : vector<2x8xf32>
      %356 = vector.extract_strided_slice %281 {offsets = [0, 13, 0], sizes = [2, 1, 8], strides = [1, 1, 1]} : vector<2x17x8xf32> to vector<2x1x8xf32>
      %357 = vector.shape_cast %356 : vector<2x1x8xf32> to vector<2x8xf32>
      %358 = arith.addf %355, %357 : vector<2x8xf32>
      %cst_62 = arith.constant 4.000000e-02 : f32
      %359 = vector.broadcast %cst_62 : f32 to vector<2x8xf32>
      %360 = arith.mulf %358, %359 : vector<2x8xf32>
      %cst_63 = arith.constant dense<0.000000e+00> : vector<2x128xf32>
      %361 = tpu.matmul %360, %15, %cst_63 {dimension_numbers = #tpu.dot_dimension_numbers<[1], [0], [0], [1], [0, 0, 1, 1], [], []>} : vector<2x8xf32>, vector<8x128xf32>, vector<2x128xf32> -> vector<2x128xf32>
      %362 = vector.broadcast %16 : vector<1x128xf32> to vector<2x128xf32>
      %363 = arith.addf %361, %362 : vector<2x128xf32>
      %cst_64 = arith.constant 0.000000e+00 : f32
      %364 = vector.broadcast %cst_64 : f32 to vector<2x128xf32>
      %365 = arith.maximumf %363, %364 : vector<2x128xf32>
      %366 = vector.extract_strided_slice %281 {offsets = [0, 12, 0], sizes = [2, 1, 8], strides = [1, 1, 1]} : vector<2x17x8xf32> to vector<2x1x8xf32>
      %367 = vector.shape_cast %366 : vector<2x1x8xf32> to vector<2x8xf32>
      %368 = vector.extract_strided_slice %281 {offsets = [0, 13, 0], sizes = [2, 1, 8], strides = [1, 1, 1]} : vector<2x17x8xf32> to vector<2x1x8xf32>
      %369 = vector.shape_cast %368 : vector<2x1x8xf32> to vector<2x8xf32>
      %370 = arith.addf %367, %369 : vector<2x8xf32>
      %371 = vector.extract_strided_slice %281 {offsets = [0, 14, 0], sizes = [2, 1, 8], strides = [1, 1, 1]} : vector<2x17x8xf32> to vector<2x1x8xf32>
      %372 = vector.shape_cast %371 : vector<2x1x8xf32> to vector<2x8xf32>
      %373 = arith.addf %370, %372 : vector<2x8xf32>
      %374 = vector.extract_strided_slice %281 {offsets = [0, 15, 0], sizes = [2, 1, 8], strides = [1, 1, 1]} : vector<2x17x8xf32> to vector<2x1x8xf32>
      %375 = vector.shape_cast %374 : vector<2x1x8xf32> to vector<2x8xf32>
      %376 = arith.addf %373, %375 : vector<2x8xf32>
      %377 = vector.extract_strided_slice %281 {offsets = [0, 16, 0], sizes = [2, 1, 8], strides = [1, 1, 1]} : vector<2x17x8xf32> to vector<2x1x8xf32>
      %378 = vector.shape_cast %377 : vector<2x1x8xf32> to vector<2x8xf32>
      %379 = arith.addf %376, %378 : vector<2x8xf32>
      %cst_65 = arith.constant 4.000000e-02 : f32
      %380 = vector.broadcast %cst_65 : f32 to vector<2x8xf32>
      %381 = arith.mulf %379, %380 : vector<2x8xf32>
      %cst_66 = arith.constant dense<0.000000e+00> : vector<2x128xf32>
      %382 = tpu.matmul %381, %15, %cst_66 {dimension_numbers = #tpu.dot_dimension_numbers<[1], [0], [0], [1], [0, 0, 1, 1], [], []>} : vector<2x8xf32>, vector<8x128xf32>, vector<2x128xf32> -> vector<2x128xf32>
      %383 = vector.broadcast %16 : vector<1x128xf32> to vector<2x128xf32>
      %384 = arith.addf %382, %383 : vector<2x128xf32>
      %cst_67 = arith.constant 0.000000e+00 : f32
      %385 = vector.broadcast %cst_67 : f32 to vector<2x128xf32>
      %386 = arith.maximumf %384, %385 : vector<2x128xf32>
      %387 = tpu.concatenate %302, %323, %344, %365, %386 in 1 : vector<2x128xf32>, vector<2x128xf32>, vector<2x128xf32>, vector<2x128xf32>, vector<2x128xf32> -> vector<2x640xf32>
      %388 = tpu.concatenate %387, %17 in 0 : vector<2x640xf32>, vector<14x640xf32> -> vector<16x640xf32>
      %389 = arith.truncf %388 : vector<16x640xf32> to vector<16x640xbf16>
      %c2 = arith.constant 2 : index
      %c0_68 = arith.constant 0 : index
      %c0_69 = arith.constant 0 : index
      %390 = vector.load %arg9[%c2, %c0_68, %c0_69] : memref<5x16x640xbf16, #tpu.memory_space<vmem>>, vector<1x16x640xbf16>
      %391 = vector.shape_cast %390 : vector<1x16x640xbf16> to vector<16x640xbf16>
      %392 = vector.shape_cast %389 : vector<16x640xbf16> to vector<1x16x640xbf16>
      tpu.vector_store %arg9[%c2, %c0_68, %c0_69], %392 {strides = array<i32>} : memref<5x16x640xbf16, #tpu.memory_space<vmem>>, vector<1x16x640xbf16>,
      %393 = vector.extract_strided_slice %14 {offsets = [0, 9, 0, 0], sizes = [2, 1, 17, 8], strides = [1, 1, 1, 1]} : vector<2x17x17x8xf32> to vector<2x1x17x8xf32>
      %394 = vector.shape_cast %393 : vector<2x1x17x8xf32> to vector<2x17x8xf32>
      %395 = vector.extract_strided_slice %14 {offsets = [0, 10, 0, 0], sizes = [2, 1, 17, 8], strides = [1, 1, 1, 1]} : vector<2x17x17x8xf32> to vector<2x1x17x8xf32>
      %396 = vector.shape_cast %395 : vector<2x1x17x8xf32> to vector<2x17x8xf32>
      %397 = arith.addf %394, %396 : vector<2x17x8xf32>
      %398 = vector.extract_strided_slice %14 {offsets = [0, 11, 0, 0], sizes = [2, 1, 17, 8], strides = [1, 1, 1, 1]} : vector<2x17x17x8xf32> to vector<2x1x17x8xf32>
      %399 = vector.shape_cast %398 : vector<2x1x17x8xf32> to vector<2x17x8xf32>
      %400 = arith.addf %397, %399 : vector<2x17x8xf32>
      %401 = vector.extract_strided_slice %14 {offsets = [0, 12, 0, 0], sizes = [2, 1, 17, 8], strides = [1, 1, 1, 1]} : vector<2x17x17x8xf32> to vector<2x1x17x8xf32>
      %402 = vector.shape_cast %401 : vector<2x1x17x8xf32> to vector<2x17x8xf32>
      %403 = arith.addf %400, %402 : vector<2x17x8xf32>
      %404 = vector.extract_strided_slice %14 {offsets = [0, 13, 0, 0], sizes = [2, 1, 17, 8], strides = [1, 1, 1, 1]} : vector<2x17x17x8xf32> to vector<2x1x17x8xf32>
      %405 = vector.shape_cast %404 : vector<2x1x17x8xf32> to vector<2x17x8xf32>
      %406 = arith.addf %403, %405 : vector<2x17x8xf32>
      %407 = vector.extract_strided_slice %406 {offsets = [0, 0, 0], sizes = [2, 1, 8], strides = [1, 1, 1]} : vector<2x17x8xf32> to vector<2x1x8xf32>
      %408 = vector.shape_cast %407 : vector<2x1x8xf32> to vector<2x8xf32>
      %409 = vector.extract_strided_slice %406 {offsets = [0, 1, 0], sizes = [2, 1, 8], strides = [1, 1, 1]} : vector<2x17x8xf32> to vector<2x1x8xf32>
      %410 = vector.shape_cast %409 : vector<2x1x8xf32> to vector<2x8xf32>
      %411 = arith.addf %408, %410 : vector<2x8xf32>
      %412 = vector.extract_strided_slice %406 {offsets = [0, 2, 0], sizes = [2, 1, 8], strides = [1, 1, 1]} : vector<2x17x8xf32> to vector<2x1x8xf32>
      %413 = vector.shape_cast %412 : vector<2x1x8xf32> to vector<2x8xf32>
      %414 = arith.addf %411, %413 : vector<2x8xf32>
      %415 = vector.extract_strided_slice %406 {offsets = [0, 3, 0], sizes = [2, 1, 8], strides = [1, 1, 1]} : vector<2x17x8xf32> to vector<2x1x8xf32>
      %416 = vector.shape_cast %415 : vector<2x1x8xf32> to vector<2x8xf32>
      %417 = arith.addf %414, %416 : vector<2x8xf32>
      %418 = vector.extract_strided_slice %406 {offsets = [0, 4, 0], sizes = [2, 1, 8], strides = [1, 1, 1]} : vector<2x17x8xf32> to vector<2x1x8xf32>
      %419 = vector.shape_cast %418 : vector<2x1x8xf32> to vector<2x8xf32>
      %420 = arith.addf %417, %419 : vector<2x8xf32>
      %cst_70 = arith.constant 4.000000e-02 : f32
      %421 = vector.broadcast %cst_70 : f32 to vector<2x8xf32>
      %422 = arith.mulf %420, %421 : vector<2x8xf32>
      %cst_71 = arith.constant dense<0.000000e+00> : vector<2x128xf32>
      %423 = tpu.matmul %422, %15, %cst_71 {dimension_numbers = #tpu.dot_dimension_numbers<[1], [0], [0], [1], [0, 0, 1, 1], [], []>} : vector<2x8xf32>, vector<8x128xf32>, vector<2x128xf32> -> vector<2x128xf32>
      %424 = vector.broadcast %16 : vector<1x128xf32> to vector<2x128xf32>
      %425 = arith.addf %423, %424 : vector<2x128xf32>
      %cst_72 = arith.constant 0.000000e+00 : f32
      %426 = vector.broadcast %cst_72 : f32 to vector<2x128xf32>
      %427 = arith.maximumf %425, %426 : vector<2x128xf32>
      %428 = vector.extract_strided_slice %406 {offsets = [0, 3, 0], sizes = [2, 1, 8], strides = [1, 1, 1]} : vector<2x17x8xf32> to vector<2x1x8xf32>
      %429 = vector.shape_cast %428 : vector<2x1x8xf32> to vector<2x8xf32>
      %430 = vector.extract_strided_slice %406 {offsets = [0, 4, 0], sizes = [2, 1, 8], strides = [1, 1, 1]} : vector<2x17x8xf32> to vector<2x1x8xf32>
      %431 = vector.shape_cast %430 : vector<2x1x8xf32> to vector<2x8xf32>
      %432 = arith.addf %429, %431 : vector<2x8xf32>
      %433 = vector.extract_strided_slice %406 {offsets = [0, 5, 0], sizes = [2, 1, 8], strides = [1, 1, 1]} : vector<2x17x8xf32> to vector<2x1x8xf32>
      %434 = vector.shape_cast %433 : vector<2x1x8xf32> to vector<2x8xf32>
      %435 = arith.addf %432, %434 : vector<2x8xf32>
      %436 = vector.extract_strided_slice %406 {offsets = [0, 6, 0], sizes = [2, 1, 8], strides = [1, 1, 1]} : vector<2x17x8xf32> to vector<2x1x8xf32>
      %437 = vector.shape_cast %436 : vector<2x1x8xf32> to vector<2x8xf32>
      %438 = arith.addf %435, %437 : vector<2x8xf32>
      %439 = vector.extract_strided_slice %406 {offsets = [0, 7, 0], sizes = [2, 1, 8], strides = [1, 1, 1]} : vector<2x17x8xf32> to vector<2x1x8xf32>
      %440 = vector.shape_cast %439 : vector<2x1x8xf32> to vector<2x8xf32>
      %441 = arith.addf %438, %440 : vector<2x8xf32>
      %cst_73 = arith.constant 4.000000e-02 : f32
      %442 = vector.broadcast %cst_73 : f32 to vector<2x8xf32>
      %443 = arith.mulf %441, %442 : vector<2x8xf32>
      %cst_74 = arith.constant dense<0.000000e+00> : vector<2x128xf32>
      %444 = tpu.matmul %443, %15, %cst_74 {dimension_numbers = #tpu.dot_dimension_numbers<[1], [0], [0], [1], [0, 0, 1, 1], [], []>} : vector<2x8xf32>, vector<8x128xf32>, vector<2x128xf32> -> vector<2x128xf32>
      %445 = vector.broadcast %16 : vector<1x128xf32> to vector<2x128xf32>
      %446 = arith.addf %444, %445 : vector<2x128xf32>
      %cst_75 = arith.constant 0.000000e+00 : f32
      %447 = vector.broadcast %cst_75 : f32 to vector<2x128xf32>
      %448 = arith.maximumf %446, %447 : vector<2x128xf32>
      %449 = vector.extract_strided_slice %406 {offsets = [0, 6, 0], sizes = [2, 1, 8], strides = [1, 1, 1]} : vector<2x17x8xf32> to vector<2x1x8xf32>
      %450 = vector.shape_cast %449 : vector<2x1x8xf32> to vector<2x8xf32>
      %451 = vector.extract_strided_slice %406 {offsets = [0, 7, 0], sizes = [2, 1, 8], strides = [1, 1, 1]} : vector<2x17x8xf32> to vector<2x1x8xf32>
      %452 = vector.shape_cast %451 : vector<2x1x8xf32> to vector<2x8xf32>
      %453 = arith.addf %450, %452 : vector<2x8xf32>
      %454 = vector.extract_strided_slice %406 {offsets = [0, 8, 0], sizes = [2, 1, 8], strides = [1, 1, 1]} : vector<2x17x8xf32> to vector<2x1x8xf32>
      %455 = vector.shape_cast %454 : vector<2x1x8xf32> to vector<2x8xf32>
      %456 = arith.addf %453, %455 : vector<2x8xf32>
      %457 = vector.extract_strided_slice %406 {offsets = [0, 9, 0], sizes = [2, 1, 8], strides = [1, 1, 1]} : vector<2x17x8xf32> to vector<2x1x8xf32>
      %458 = vector.shape_cast %457 : vector<2x1x8xf32> to vector<2x8xf32>
      %459 = arith.addf %456, %458 : vector<2x8xf32>
      %460 = vector.extract_strided_slice %406 {offsets = [0, 10, 0], sizes = [2, 1, 8], strides = [1, 1, 1]} : vector<2x17x8xf32> to vector<2x1x8xf32>
      %461 = vector.shape_cast %460 : vector<2x1x8xf32> to vector<2x8xf32>
      %462 = arith.addf %459, %461 : vector<2x8xf32>
      %cst_76 = arith.constant 4.000000e-02 : f32
      %463 = vector.broadcast %cst_76 : f32 to vector<2x8xf32>
      %464 = arith.mulf %462, %463 : vector<2x8xf32>
      %cst_77 = arith.constant dense<0.000000e+00> : vector<2x128xf32>
      %465 = tpu.matmul %464, %15, %cst_77 {dimension_numbers = #tpu.dot_dimension_numbers<[1], [0], [0], [1], [0, 0, 1, 1], [], []>} : vector<2x8xf32>, vector<8x128xf32>, vector<2x128xf32> -> vector<2x128xf32>
      %466 = vector.broadcast %16 : vector<1x128xf32> to vector<2x128xf32>
      %467 = arith.addf %465, %466 : vector<2x128xf32>
      %cst_78 = arith.constant 0.000000e+00 : f32
      %468 = vector.broadcast %cst_78 : f32 to vector<2x128xf32>
      %469 = arith.maximumf %467, %468 : vector<2x128xf32>
      %470 = vector.extract_strided_slice %406 {offsets = [0, 9, 0], sizes = [2, 1, 8], strides = [1, 1, 1]} : vector<2x17x8xf32> to vector<2x1x8xf32>
      %471 = vector.shape_cast %470 : vector<2x1x8xf32> to vector<2x8xf32>
      %472 = vector.extract_strided_slice %406 {offsets = [0, 10, 0], sizes = [2, 1, 8], strides = [1, 1, 1]} : vector<2x17x8xf32> to vector<2x1x8xf32>
      %473 = vector.shape_cast %472 : vector<2x1x8xf32> to vector<2x8xf32>
      %474 = arith.addf %471, %473 : vector<2x8xf32>
      %475 = vector.extract_strided_slice %406 {offsets = [0, 11, 0], sizes = [2, 1, 8], strides = [1, 1, 1]} : vector<2x17x8xf32> to vector<2x1x8xf32>
      %476 = vector.shape_cast %475 : vector<2x1x8xf32> to vector<2x8xf32>
      %477 = arith.addf %474, %476 : vector<2x8xf32>
      %478 = vector.extract_strided_slice %406 {offsets = [0, 12, 0], sizes = [2, 1, 8], strides = [1, 1, 1]} : vector<2x17x8xf32> to vector<2x1x8xf32>
      %479 = vector.shape_cast %478 : vector<2x1x8xf32> to vector<2x8xf32>
      %480 = arith.addf %477, %479 : vector<2x8xf32>
      %481 = vector.extract_strided_slice %406 {offsets = [0, 13, 0], sizes = [2, 1, 8], strides = [1, 1, 1]} : vector<2x17x8xf32> to vector<2x1x8xf32>
      %482 = vector.shape_cast %481 : vector<2x1x8xf32> to vector<2x8xf32>
      %483 = arith.addf %480, %482 : vector<2x8xf32>
      %cst_79 = arith.constant 4.000000e-02 : f32
      %484 = vector.broadcast %cst_79 : f32 to vector<2x8xf32>
      %485 = arith.mulf %483, %484 : vector<2x8xf32>
      %cst_80 = arith.constant dense<0.000000e+00> : vector<2x128xf32>
      %486 = tpu.matmul %485, %15, %cst_80 {dimension_numbers = #tpu.dot_dimension_numbers<[1], [0], [0], [1], [0, 0, 1, 1], [], []>} : vector<2x8xf32>, vector<8x128xf32>, vector<2x128xf32> -> vector<2x128xf32>
      %487 = vector.broadcast %16 : vector<1x128xf32> to vector<2x128xf32>
      %488 = arith.addf %486, %487 : vector<2x128xf32>
      %cst_81 = arith.constant 0.000000e+00 : f32
      %489 = vector.broadcast %cst_81 : f32 to vector<2x128xf32>
      %490 = arith.maximumf %488, %489 : vector<2x128xf32>
      %491 = vector.extract_strided_slice %406 {offsets = [0, 12, 0], sizes = [2, 1, 8], strides = [1, 1, 1]} : vector<2x17x8xf32> to vector<2x1x8xf32>
      %492 = vector.shape_cast %491 : vector<2x1x8xf32> to vector<2x8xf32>
      %493 = vector.extract_strided_slice %406 {offsets = [0, 13, 0], sizes = [2, 1, 8], strides = [1, 1, 1]} : vector<2x17x8xf32> to vector<2x1x8xf32>
      %494 = vector.shape_cast %493 : vector<2x1x8xf32> to vector<2x8xf32>
      %495 = arith.addf %492, %494 : vector<2x8xf32>
      %496 = vector.extract_strided_slice %406 {offsets = [0, 14, 0], sizes = [2, 1, 8], strides = [1, 1, 1]} : vector<2x17x8xf32> to vector<2x1x8xf32>
      %497 = vector.shape_cast %496 : vector<2x1x8xf32> to vector<2x8xf32>
      %498 = arith.addf %495, %497 : vector<2x8xf32>
      %499 = vector.extract_strided_slice %406 {offsets = [0, 15, 0], sizes = [2, 1, 8], strides = [1, 1, 1]} : vector<2x17x8xf32> to vector<2x1x8xf32>
      %500 = vector.shape_cast %499 : vector<2x1x8xf32> to vector<2x8xf32>
      %501 = arith.addf %498, %500 : vector<2x8xf32>
      %502 = vector.extract_strided_slice %406 {offsets = [0, 16, 0], sizes = [2, 1, 8], strides = [1, 1, 1]} : vector<2x17x8xf32> to vector<2x1x8xf32>
      %503 = vector.shape_cast %502 : vector<2x1x8xf32> to vector<2x8xf32>
      %504 = arith.addf %501, %503 : vector<2x8xf32>
      %cst_82 = arith.constant 4.000000e-02 : f32
      %505 = vector.broadcast %cst_82 : f32 to vector<2x8xf32>
      %506 = arith.mulf %504, %505 : vector<2x8xf32>
      %cst_83 = arith.constant dense<0.000000e+00> : vector<2x128xf32>
      %507 = tpu.matmul %506, %15, %cst_83 {dimension_numbers = #tpu.dot_dimension_numbers<[1], [0], [0], [1], [0, 0, 1, 1], [], []>} : vector<2x8xf32>, vector<8x128xf32>, vector<2x128xf32> -> vector<2x128xf32>
      %508 = vector.broadcast %16 : vector<1x128xf32> to vector<2x128xf32>
      %509 = arith.addf %507, %508 : vector<2x128xf32>
      %cst_84 = arith.constant 0.000000e+00 : f32
      %510 = vector.broadcast %cst_84 : f32 to vector<2x128xf32>
      %511 = arith.maximumf %509, %510 : vector<2x128xf32>
      %512 = tpu.concatenate %427, %448, %469, %490, %511 in 1 : vector<2x128xf32>, vector<2x128xf32>, vector<2x128xf32>, vector<2x128xf32>, vector<2x128xf32> -> vector<2x640xf32>
      %513 = tpu.concatenate %512, %17 in 0 : vector<2x640xf32>, vector<14x640xf32> -> vector<16x640xf32>
      %514 = arith.truncf %513 : vector<16x640xf32> to vector<16x640xbf16>
      %c3 = arith.constant 3 : index
      %c0_85 = arith.constant 0 : index
      %c0_86 = arith.constant 0 : index
      %515 = vector.load %arg9[%c3, %c0_85, %c0_86] : memref<5x16x640xbf16, #tpu.memory_space<vmem>>, vector<1x16x640xbf16>
      %516 = vector.shape_cast %515 : vector<1x16x640xbf16> to vector<16x640xbf16>
      %517 = vector.shape_cast %514 : vector<16x640xbf16> to vector<1x16x640xbf16>
      tpu.vector_store %arg9[%c3, %c0_85, %c0_86], %517 {strides = array<i32>} : memref<5x16x640xbf16, #tpu.memory_space<vmem>>, vector<1x16x640xbf16>,
      %518 = vector.extract_strided_slice %14 {offsets = [0, 12, 0, 0], sizes = [2, 1, 17, 8], strides = [1, 1, 1, 1]} : vector<2x17x17x8xf32> to vector<2x1x17x8xf32>
      %519 = vector.shape_cast %518 : vector<2x1x17x8xf32> to vector<2x17x8xf32>
      %520 = vector.extract_strided_slice %14 {offsets = [0, 13, 0, 0], sizes = [2, 1, 17, 8], strides = [1, 1, 1, 1]} : vector<2x17x17x8xf32> to vector<2x1x17x8xf32>
      %521 = vector.shape_cast %520 : vector<2x1x17x8xf32> to vector<2x17x8xf32>
      %522 = arith.addf %519, %521 : vector<2x17x8xf32>
      %523 = vector.extract_strided_slice %14 {offsets = [0, 14, 0, 0], sizes = [2, 1, 17, 8], strides = [1, 1, 1, 1]} : vector<2x17x17x8xf32> to vector<2x1x17x8xf32>
      %524 = vector.shape_cast %523 : vector<2x1x17x8xf32> to vector<2x17x8xf32>
      %525 = arith.addf %522, %524 : vector<2x17x8xf32>
      %526 = vector.extract_strided_slice %14 {offsets = [0, 15, 0, 0], sizes = [2, 1, 17, 8], strides = [1, 1, 1, 1]} : vector<2x17x17x8xf32> to vector<2x1x17x8xf32>
      %527 = vector.shape_cast %526 : vector<2x1x17x8xf32> to vector<2x17x8xf32>
      %528 = arith.addf %525, %527 : vector<2x17x8xf32>
      %529 = vector.extract_strided_slice %14 {offsets = [0, 16, 0, 0], sizes = [2, 1, 17, 8], strides = [1, 1, 1, 1]} : vector<2x17x17x8xf32> to vector<2x1x17x8xf32>
      %530 = vector.shape_cast %529 : vector<2x1x17x8xf32> to vector<2x17x8xf32>
      %531 = arith.addf %528, %530 : vector<2x17x8xf32>
      %532 = vector.extract_strided_slice %531 {offsets = [0, 0, 0], sizes = [2, 1, 8], strides = [1, 1, 1]} : vector<2x17x8xf32> to vector<2x1x8xf32>
      %533 = vector.shape_cast %532 : vector<2x1x8xf32> to vector<2x8xf32>
      %534 = vector.extract_strided_slice %531 {offsets = [0, 1, 0], sizes = [2, 1, 8], strides = [1, 1, 1]} : vector<2x17x8xf32> to vector<2x1x8xf32>
      %535 = vector.shape_cast %534 : vector<2x1x8xf32> to vector<2x8xf32>
      %536 = arith.addf %533, %535 : vector<2x8xf32>
      %537 = vector.extract_strided_slice %531 {offsets = [0, 2, 0], sizes = [2, 1, 8], strides = [1, 1, 1]} : vector<2x17x8xf32> to vector<2x1x8xf32>
      %538 = vector.shape_cast %537 : vector<2x1x8xf32> to vector<2x8xf32>
      %539 = arith.addf %536, %538 : vector<2x8xf32>
      %540 = vector.extract_strided_slice %531 {offsets = [0, 3, 0], sizes = [2, 1, 8], strides = [1, 1, 1]} : vector<2x17x8xf32> to vector<2x1x8xf32>
      %541 = vector.shape_cast %540 : vector<2x1x8xf32> to vector<2x8xf32>
      %542 = arith.addf %539, %541 : vector<2x8xf32>
      %543 = vector.extract_strided_slice %531 {offsets = [0, 4, 0], sizes = [2, 1, 8], strides = [1, 1, 1]} : vector<2x17x8xf32> to vector<2x1x8xf32>
      %544 = vector.shape_cast %543 : vector<2x1x8xf32> to vector<2x8xf32>
      %545 = arith.addf %542, %544 : vector<2x8xf32>
      %cst_87 = arith.constant 4.000000e-02 : f32
      %546 = vector.broadcast %cst_87 : f32 to vector<2x8xf32>
      %547 = arith.mulf %545, %546 : vector<2x8xf32>
      %cst_88 = arith.constant dense<0.000000e+00> : vector<2x128xf32>
      %548 = tpu.matmul %547, %15, %cst_88 {dimension_numbers = #tpu.dot_dimension_numbers<[1], [0], [0], [1], [0, 0, 1, 1], [], []>} : vector<2x8xf32>, vector<8x128xf32>, vector<2x128xf32> -> vector<2x128xf32>
      %549 = vector.broadcast %16 : vector<1x128xf32> to vector<2x128xf32>
      %550 = arith.addf %548, %549 : vector<2x128xf32>
      %cst_89 = arith.constant 0.000000e+00 : f32
      %551 = vector.broadcast %cst_89 : f32 to vector<2x128xf32>
      %552 = arith.maximumf %550, %551 : vector<2x128xf32>
      %553 = vector.extract_strided_slice %531 {offsets = [0, 3, 0], sizes = [2, 1, 8], strides = [1, 1, 1]} : vector<2x17x8xf32> to vector<2x1x8xf32>
      %554 = vector.shape_cast %553 : vector<2x1x8xf32> to vector<2x8xf32>
      %555 = vector.extract_strided_slice %531 {offsets = [0, 4, 0], sizes = [2, 1, 8], strides = [1, 1, 1]} : vector<2x17x8xf32> to vector<2x1x8xf32>
      %556 = vector.shape_cast %555 : vector<2x1x8xf32> to vector<2x8xf32>
      %557 = arith.addf %554, %556 : vector<2x8xf32>
      %558 = vector.extract_strided_slice %531 {offsets = [0, 5, 0], sizes = [2, 1, 8], strides = [1, 1, 1]} : vector<2x17x8xf32> to vector<2x1x8xf32>
      %559 = vector.shape_cast %558 : vector<2x1x8xf32> to vector<2x8xf32>
      %560 = arith.addf %557, %559 : vector<2x8xf32>
      %561 = vector.extract_strided_slice %531 {offsets = [0, 6, 0], sizes = [2, 1, 8], strides = [1, 1, 1]} : vector<2x17x8xf32> to vector<2x1x8xf32>
      %562 = vector.shape_cast %561 : vector<2x1x8xf32> to vector<2x8xf32>
      %563 = arith.addf %560, %562 : vector<2x8xf32>
      %564 = vector.extract_strided_slice %531 {offsets = [0, 7, 0], sizes = [2, 1, 8], strides = [1, 1, 1]} : vector<2x17x8xf32> to vector<2x1x8xf32>
      %565 = vector.shape_cast %564 : vector<2x1x8xf32> to vector<2x8xf32>
      %566 = arith.addf %563, %565 : vector<2x8xf32>
      %cst_90 = arith.constant 4.000000e-02 : f32
      %567 = vector.broadcast %cst_90 : f32 to vector<2x8xf32>
      %568 = arith.mulf %566, %567 : vector<2x8xf32>
      %cst_91 = arith.constant dense<0.000000e+00> : vector<2x128xf32>
      %569 = tpu.matmul %568, %15, %cst_91 {dimension_numbers = #tpu.dot_dimension_numbers<[1], [0], [0], [1], [0, 0, 1, 1], [], []>} : vector<2x8xf32>, vector<8x128xf32>, vector<2x128xf32> -> vector<2x128xf32>
      %570 = vector.broadcast %16 : vector<1x128xf32> to vector<2x128xf32>
      %571 = arith.addf %569, %570 : vector<2x128xf32>
      %cst_92 = arith.constant 0.000000e+00 : f32
      %572 = vector.broadcast %cst_92 : f32 to vector<2x128xf32>
      %573 = arith.maximumf %571, %572 : vector<2x128xf32>
      %574 = vector.extract_strided_slice %531 {offsets = [0, 6, 0], sizes = [2, 1, 8], strides = [1, 1, 1]} : vector<2x17x8xf32> to vector<2x1x8xf32>
      %575 = vector.shape_cast %574 : vector<2x1x8xf32> to vector<2x8xf32>
      %576 = vector.extract_strided_slice %531 {offsets = [0, 7, 0], sizes = [2, 1, 8], strides = [1, 1, 1]} : vector<2x17x8xf32> to vector<2x1x8xf32>
      %577 = vector.shape_cast %576 : vector<2x1x8xf32> to vector<2x8xf32>
      %578 = arith.addf %575, %577 : vector<2x8xf32>
      %579 = vector.extract_strided_slice %531 {offsets = [0, 8, 0], sizes = [2, 1, 8], strides = [1, 1, 1]} : vector<2x17x8xf32> to vector<2x1x8xf32>
      %580 = vector.shape_cast %579 : vector<2x1x8xf32> to vector<2x8xf32>
      %581 = arith.addf %578, %580 : vector<2x8xf32>
      %582 = vector.extract_strided_slice %531 {offsets = [0, 9, 0], sizes = [2, 1, 8], strides = [1, 1, 1]} : vector<2x17x8xf32> to vector<2x1x8xf32>
      %583 = vector.shape_cast %582 : vector<2x1x8xf32> to vector<2x8xf32>
      %584 = arith.addf %581, %583 : vector<2x8xf32>
      %585 = vector.extract_strided_slice %531 {offsets = [0, 10, 0], sizes = [2, 1, 8], strides = [1, 1, 1]} : vector<2x17x8xf32> to vector<2x1x8xf32>
      %586 = vector.shape_cast %585 : vector<2x1x8xf32> to vector<2x8xf32>
      %587 = arith.addf %584, %586 : vector<2x8xf32>
      %cst_93 = arith.constant 4.000000e-02 : f32
      %588 = vector.broadcast %cst_93 : f32 to vector<2x8xf32>
      %589 = arith.mulf %587, %588 : vector<2x8xf32>
      %cst_94 = arith.constant dense<0.000000e+00> : vector<2x128xf32>
      %590 = tpu.matmul %589, %15, %cst_94 {dimension_numbers = #tpu.dot_dimension_numbers<[1], [0], [0], [1], [0, 0, 1, 1], [], []>} : vector<2x8xf32>, vector<8x128xf32>, vector<2x128xf32> -> vector<2x128xf32>
      %591 = vector.broadcast %16 : vector<1x128xf32> to vector<2x128xf32>
      %592 = arith.addf %590, %591 : vector<2x128xf32>
      %cst_95 = arith.constant 0.000000e+00 : f32
      %593 = vector.broadcast %cst_95 : f32 to vector<2x128xf32>
      %594 = arith.maximumf %592, %593 : vector<2x128xf32>
      %595 = vector.extract_strided_slice %531 {offsets = [0, 9, 0], sizes = [2, 1, 8], strides = [1, 1, 1]} : vector<2x17x8xf32> to vector<2x1x8xf32>
      %596 = vector.shape_cast %595 : vector<2x1x8xf32> to vector<2x8xf32>
      %597 = vector.extract_strided_slice %531 {offsets = [0, 10, 0], sizes = [2, 1, 8], strides = [1, 1, 1]} : vector<2x17x8xf32> to vector<2x1x8xf32>
      %598 = vector.shape_cast %597 : vector<2x1x8xf32> to vector<2x8xf32>
      %599 = arith.addf %596, %598 : vector<2x8xf32>
      %600 = vector.extract_strided_slice %531 {offsets = [0, 11, 0], sizes = [2, 1, 8], strides = [1, 1, 1]} : vector<2x17x8xf32> to vector<2x1x8xf32>
      %601 = vector.shape_cast %600 : vector<2x1x8xf32> to vector<2x8xf32>
      %602 = arith.addf %599, %601 : vector<2x8xf32>
      %603 = vector.extract_strided_slice %531 {offsets = [0, 12, 0], sizes = [2, 1, 8], strides = [1, 1, 1]} : vector<2x17x8xf32> to vector<2x1x8xf32>
      %604 = vector.shape_cast %603 : vector<2x1x8xf32> to vector<2x8xf32>
      %605 = arith.addf %602, %604 : vector<2x8xf32>
      %606 = vector.extract_strided_slice %531 {offsets = [0, 13, 0], sizes = [2, 1, 8], strides = [1, 1, 1]} : vector<2x17x8xf32> to vector<2x1x8xf32>
      %607 = vector.shape_cast %606 : vector<2x1x8xf32> to vector<2x8xf32>
      %608 = arith.addf %605, %607 : vector<2x8xf32>
      %cst_96 = arith.constant 4.000000e-02 : f32
      %609 = vector.broadcast %cst_96 : f32 to vector<2x8xf32>
      %610 = arith.mulf %608, %609 : vector<2x8xf32>
      %cst_97 = arith.constant dense<0.000000e+00> : vector<2x128xf32>
      %611 = tpu.matmul %610, %15, %cst_97 {dimension_numbers = #tpu.dot_dimension_numbers<[1], [0], [0], [1], [0, 0, 1, 1], [], []>} : vector<2x8xf32>, vector<8x128xf32>, vector<2x128xf32> -> vector<2x128xf32>
      %612 = vector.broadcast %16 : vector<1x128xf32> to vector<2x128xf32>
      %613 = arith.addf %611, %612 : vector<2x128xf32>
      %cst_98 = arith.constant 0.000000e+00 : f32
      %614 = vector.broadcast %cst_98 : f32 to vector<2x128xf32>
      %615 = arith.maximumf %613, %614 : vector<2x128xf32>
      %616 = vector.extract_strided_slice %531 {offsets = [0, 12, 0], sizes = [2, 1, 8], strides = [1, 1, 1]} : vector<2x17x8xf32> to vector<2x1x8xf32>
      %617 = vector.shape_cast %616 : vector<2x1x8xf32> to vector<2x8xf32>
      %618 = vector.extract_strided_slice %531 {offsets = [0, 13, 0], sizes = [2, 1, 8], strides = [1, 1, 1]} : vector<2x17x8xf32> to vector<2x1x8xf32>
      %619 = vector.shape_cast %618 : vector<2x1x8xf32> to vector<2x8xf32>
      %620 = arith.addf %617, %619 : vector<2x8xf32>
      %621 = vector.extract_strided_slice %531 {offsets = [0, 14, 0], sizes = [2, 1, 8], strides = [1, 1, 1]} : vector<2x17x8xf32> to vector<2x1x8xf32>
      %622 = vector.shape_cast %621 : vector<2x1x8xf32> to vector<2x8xf32>
      %623 = arith.addf %620, %622 : vector<2x8xf32>
      %624 = vector.extract_strided_slice %531 {offsets = [0, 15, 0], sizes = [2, 1, 8], strides = [1, 1, 1]} : vector<2x17x8xf32> to vector<2x1x8xf32>
      %625 = vector.shape_cast %624 : vector<2x1x8xf32> to vector<2x8xf32>
      %626 = arith.addf %623, %625 : vector<2x8xf32>
      %627 = vector.extract_strided_slice %531 {offsets = [0, 16, 0], sizes = [2, 1, 8], strides = [1, 1, 1]} : vector<2x17x8xf32> to vector<2x1x8xf32>
      %628 = vector.shape_cast %627 : vector<2x1x8xf32> to vector<2x8xf32>
      %629 = arith.addf %626, %628 : vector<2x8xf32>
      %cst_99 = arith.constant 4.000000e-02 : f32
      %630 = vector.broadcast %cst_99 : f32 to vector<2x8xf32>
      %631 = arith.mulf %629, %630 : vector<2x8xf32>
      %cst_100 = arith.constant dense<0.000000e+00> : vector<2x128xf32>
      %632 = tpu.matmul %631, %15, %cst_100 {dimension_numbers = #tpu.dot_dimension_numbers<[1], [0], [0], [1], [0, 0, 1, 1], [], []>} : vector<2x8xf32>, vector<8x128xf32>, vector<2x128xf32> -> vector<2x128xf32>
      %633 = vector.broadcast %16 : vector<1x128xf32> to vector<2x128xf32>
      %634 = arith.addf %632, %633 : vector<2x128xf32>
      %cst_101 = arith.constant 0.000000e+00 : f32
      %635 = vector.broadcast %cst_101 : f32 to vector<2x128xf32>
      %636 = arith.maximumf %634, %635 : vector<2x128xf32>
      %637 = tpu.concatenate %552, %573, %594, %615, %636 in 1 : vector<2x128xf32>, vector<2x128xf32>, vector<2x128xf32>, vector<2x128xf32>, vector<2x128xf32> -> vector<2x640xf32>
      %638 = tpu.concatenate %637, %17 in 0 : vector<2x640xf32>, vector<14x640xf32> -> vector<16x640xf32>
      %639 = arith.truncf %638 : vector<16x640xf32> to vector<16x640xbf16>
      %c4 = arith.constant 4 : index
      %c0_102 = arith.constant 0 : index
      %c0_103 = arith.constant 0 : index
      %640 = vector.load %arg9[%c4, %c0_102, %c0_103] : memref<5x16x640xbf16, #tpu.memory_space<vmem>>, vector<1x16x640xbf16>
      %641 = vector.shape_cast %640 : vector<1x16x640xbf16> to vector<16x640xbf16>
      %642 = vector.shape_cast %639 : vector<16x640xbf16> to vector<1x16x640xbf16>
      tpu.vector_store %arg9[%c4, %c0_102, %c0_103], %642 {strides = array<i32>} : memref<5x16x640xbf16, #tpu.memory_space<vmem>>, vector<1x16x640xbf16>,
      %cst_104 = arith.constant 0.000000e+00 : f32
      %643 = vector.broadcast %cst_104 : f32 to vector<16x768xf32>
      %c0_105 = arith.constant 0 : index
      %c0_106 = arith.constant 0 : index
      %644 = vector.load %arg10[%c0_105, %c0_106] : memref<16x768xf32, #tpu.memory_space<vmem>>, vector<16x768xf32>
      tpu.vector_store %arg10[%c0_105, %c0_106], %643 {strides = array<i32>} : memref<16x768xf32, #tpu.memory_space<vmem>>, vector<16x768xf32>,
    } else {
    }
    %c0 = arith.constant 0 : index
    %c0_1 = arith.constant 0 : index
    %3 = vector.load %arg10[%c0, %c0_1] : memref<16x768xf32, #tpu.memory_space<vmem>>, vector<16x768xf32>
    %4 = arith.index_cast %arg0 : i32 to index
    %c0_2 = arith.constant 0 : index
    %c0_3 = arith.constant 0 : index
    %5 = vector.load %arg9[%4, %c0_2, %c0_3] : memref<5x16x640xbf16, #tpu.memory_space<vmem>>, vector<1x16x640xbf16>
    %6 = vector.shape_cast %5 : vector<1x16x640xbf16> to vector<16x640xbf16>
    %c0_4 = arith.constant 0 : index
    %c0_5 = arith.constant 0 : index
    %7 = vector.load %arg4[%c0_4, %c0_5] : memref<640x768xbf16, #tpu.memory_space<vmem>>, vector<640x768xbf16>
    %cst = arith.constant dense<0.000000e+00> : vector<16x768xf32>
    %8 = tpu.matmul %6, %7, %cst {dimension_numbers = #tpu.dot_dimension_numbers<[1], [0], [0], [1], [0, 0, 1, 1], [], []>} : vector<16x640xbf16>, vector<640x768xbf16>, vector<16x768xf32> -> vector<16x768xf32>
    %9 = arith.addf %3, %8 : vector<16x768xf32>
    %c0_6 = arith.constant 0 : index
    %c0_7 = arith.constant 0 : index
    %10 = vector.load %arg10[%c0_6, %c0_7] : memref<16x768xf32, #tpu.memory_space<vmem>>, vector<16x768xf32>
    tpu.vector_store %arg10[%c0_6, %c0_7], %9 {strides = array<i32>} : memref<16x768xf32, #tpu.memory_space<vmem>>, vector<16x768xf32>,
    %c4_i32 = arith.constant 4 : i32
    %11 = arith.cmpi eq, %arg0, %c4_i32 : i32
    %12 = arith.extui %11 : i1 to i32
    %c0_i32_8 = arith.constant 0 : i32
    %13 = arith.cmpi ne, %12, %c0_i32_8 : i32
    scf.if %13 {
      %c0_9 = arith.constant 0 : index
      %c0_10 = arith.constant 0 : index
      %14 = vector.load %arg10[%c0_9, %c0_10] : memref<16x768xf32, #tpu.memory_space<vmem>>, vector<16x768xf32>
      %c0_11 = arith.constant 0 : index
      %c0_12 = arith.constant 0 : index
      %15 = vector.load %arg5[%c0_11, %c0_12] : memref<1x768xf32, #tpu.memory_space<vmem>>, vector<1x768xf32>
      %16 = vector.broadcast %15 : vector<1x768xf32> to vector<16x768xf32>
      %17 = arith.addf %14, %16 : vector<16x768xf32>
      %cst_13 = arith.constant 0.000000e+00 : f32
      %18 = vector.broadcast %cst_13 : f32 to vector<16x768xf32>
      %19 = arith.maximumf %17, %18 : vector<16x768xf32>
      %20 = arith.truncf %19 : vector<16x768xf32> to vector<16x768xbf16>
      %c0_14 = arith.constant 0 : index
      %c0_15 = arith.constant 0 : index
      %21 = vector.load %arg6[%c0_14, %c0_15] : memref<768x128xbf16, #tpu.memory_space<vmem>>, vector<768x128xbf16>
      %cst_16 = arith.constant dense<0.000000e+00> : vector<16x128xf32>
      %22 = tpu.matmul %20, %21, %cst_16 {dimension_numbers = #tpu.dot_dimension_numbers<[1], [0], [0], [1], [0, 0, 1, 1], [], []>} : vector<16x768xbf16>, vector<768x128xbf16>, vector<16x128xf32> -> vector<16x128xf32>
      %c0_17 = arith.constant 0 : index
      %c0_18 = arith.constant 0 : index
      %23 = vector.load %arg7[%c0_17, %c0_18] : memref<1x128xf32, #tpu.memory_space<vmem>>, vector<1x128xf32>
      %24 = vector.broadcast %23 : vector<1x128xf32> to vector<16x128xf32>
      %25 = arith.addf %22, %24 : vector<16x128xf32>
      %c0_19 = arith.constant 0 : index
      %c0_20 = arith.constant 0 : index
      %26 = vector.load %arg8[%c0_19, %c0_20] : memref<16x128xf32, #tpu.memory_space<vmem>>, vector<16x128xf32>
      tpu.vector_store %arg8[%c0_19, %c0_20], %25 {strides = array<i32>} : memref<16x128xf32, #tpu.memory_space<vmem>>, vector<16x128xf32>,
    } else {
    }
    return
  }
  func.func @transform_0(%arg0: i32) -> (i32, i32, i32, i32) {
    %c0_i32 = arith.constant 0 : i32
    %c0_i32_0 = arith.constant 0 : i32
    %c0_i32_1 = arith.constant 0 : i32
    %c0_i32_2 = arith.constant 0 : i32
    %c0_i32_3 = arith.constant 0 : i32
    return %c0_i32, %c0_i32_0, %c0_i32_1, %c0_i32_2 : i32, i32, i32, i32
  }
  func.func @transform_1(%arg0: i32) -> (i32, i32) {
    %c0_i32 = arith.constant 0 : i32
    %c0_i32_0 = arith.constant 0 : i32
    %c0_i32_1 = arith.constant 0 : i32
    return %c0_i32, %c0_i32_0 : i32, i32
  }
  func.func @transform_2(%arg0: i32) -> (i32, i32) {
    %c0_i32 = arith.constant 0 : i32
    %c0_i32_0 = arith.constant 0 : i32
    %c0_i32_1 = arith.constant 0 : i32
    return %c0_i32, %c0_i32_0 : i32, i32
  }
  func.func @transform_3(%arg0: i32) -> (i32, i32) {
    %c0_i32 = arith.constant 0 : i32
    %c0_i32_0 = arith.constant 0 : i32
    return %arg0, %c0_i32 : i32, i32
  }
  func.func @transform_4(%arg0: i32) -> (i32, i32) {
    %c0_i32 = arith.constant 0 : i32
    %c0_i32_0 = arith.constant 0 : i32
    %c0_i32_1 = arith.constant 0 : i32
    return %c0_i32, %c0_i32_0 : i32, i32
  }
  func.func @transform_5(%arg0: i32) -> (i32, i32) {
    %c0_i32 = arith.constant 0 : i32
    %c0_i32_0 = arith.constant 0 : i32
    %c0_i32_1 = arith.constant 0 : i32
    return %c0_i32, %c0_i32_0 : i32, i32
  }
  func.func @transform_6(%arg0: i32) -> (i32, i32) {
    %c0_i32 = arith.constant 0 : i32
    %c0_i32_0 = arith.constant 0 : i32
    %c0_i32_1 = arith.constant 0 : i32
    return %c0_i32, %c0_i32_0 : i32, i32
  }
  func.func @transform_7(%arg0: i32) -> (i32, i32) {
    %c0_i32 = arith.constant 0 : i32
    %c0_i32_0 = arith.constant 0 : i32
    %c0_i32_1 = arith.constant 0 : i32
    return %c0_i32, %c0_i32_0 : i32, i32
  }
}

</mosaic_0001>

<llo_original>
// kernel: _lambda_.1
$region0: #{_lambda_.1}
  #allocation0 [shape = 'u32[]', space=smem, size = 0x4, offset = 0x4, fixed_abs, tag = 'smem constant byte address 0x4 - core index']
  #allocation1 [shape = 'u32[144,128]{1,0:T(1,128)}', space=vmem, size = 0x12000, scoped, tag = 'internal scratch']
  #allocation2 [shape = 'bf16[5,16,640]{2,1,0:T(16,128)(2,1)}', space=vmem, size = 0x19000, scoped, tag = 'scratch operand']
  #allocation3 [shape = 'f32[16,768]{1,0:T(8,128)}', space=vmem, size = 0xc000, scoped, tag = 'scratch operand']
  %s0 = inlined_call_operand.vmem [shape: f32[2,17,17,8], index: 0, kind: input, shape index: {}]
  %s1 = inlined_call_operand.hbm [shape: f32[8,128], index: 1, kind: input, shape index: {}]
  %s2 = inlined_call_operand.hbm [shape: f32[1,128], index: 2, kind: input, shape index: {}]
  %s3 = inlined_call_operand.hbm [shape: bf16[3200,768], index: 3, kind: input, shape index: {}]
  %s4 = inlined_call_operand.hbm [shape: f32[1,768], index: 4, kind: input, shape index: {}]
  %s5 = inlined_call_operand.hbm [shape: bf16[768,128], index: 5, kind: input, shape index: {}]
  %s6 = inlined_call_operand.hbm [shape: f32[1,128], index: 6, kind: input, shape index: {}]
  %s7 = inlined_call_operand.vmem [shape: f32[16,128], index: 7, kind: output, shape index: {}]
  %s8 = sld [smem:[#allocation0]]
  $region93: #{_lambda_.1} parent=0
    _
  %s10 = ssub.s32 1, %s8
  %s11 = scalar_select 0, %s10, %s8
  $region1: #{_lambda_.1} parent=0
    #allocation4 [shape = 'u8[4096]{0}', space=vmem, size = 0x1000, scoped, tag = 'input window, operand 1, single buffered']
    #allocation5 [shape = 's32[2]{0}', space=sflag, size = 0x8, scoped, tag = 'scoped memory for _lambda_.1']
    #allocation6 [shape = 'u8[512]{0}', space=vmem, size = 0x400, scoped, tag = 'input window, operand 2, single buffered']
    #allocation7 [shape = 's32[1]{0}', space=sflag, size = 0x4, scoped, tag = 'scoped memory for _lambda_.1']
    #allocation8 [shape = 'u8[1966080]{0}', space=vmem, size = 0x1e0000, scoped, tag = 'input window, operand 3']
    #allocation9 [shape = 'u8[3072]{0}', space=vmem, size = 0xc00, scoped, tag = 'input window, operand 4, single buffered']
    #allocation10 [shape = 'u8[196608]{0}', space=vmem, size = 0x30000, scoped, tag = 'input window, operand 5, single buffered']
    #allocation11 [shape = 's32[1]{0}', space=sflag, size = 0x4, scoped, tag = 'scoped memory for _lambda_.1']
    #allocation12 [shape = 'u8[512]{0}', space=vmem, size = 0x400, scoped, tag = 'input window, operand 6, single buffered']
    %12 = vsyncpa [#allocation5], 0
    %13 = vsyncpa [#allocation7], 0
    %14 = vsyncpa [#allocation11], 0
    loop: start=0, step=1, limit=7
    $region2: #{_lambda_.1} parent=1 // loop_pre_header
      _
    $region3: #{_lambda_.1} parent=1 // loop_header
      %s16 = sphi 0, %s20
      %p17 = scmp.ge.s32.totalorder %s16, 7
      %s24 = sphi 0, %s24
      %s26 = sphi 0, %s24
      %s27 = sphi 0, %s26
      %s41 = sphi 0, %s27
      %s45 = sphi 0, %s45
      %s47 = sphi 0, %s45
      %s48 = sphi 0, %s47
      %s62 = sphi 0, %s48
      %s66 = sphi 0, %s66
      %s68 = sphi 0, %s66
      %s69 = sphi 0, %s68
      %s83 = sphi 0, %s69
      %s89 = sphi 0, %s91
      %s92 = sphi 0, %s89
      %s93 = sphi 0, %s92
      %s109 = sphi 0, %s93
      %s113 = sphi 0, %s113
      %s115 = sphi 0, %s113
      %s116 = sphi 0, %s115
      %s130 = sphi 0, %s116
      %s134 = sphi 0, %s134
      %s136 = sphi 0, %s134
      %s137 = sphi 0, %s136
      %s151 = sphi 0, %s137
      %s155 = sphi 0, %s155
      %s157 = sphi 0, %s155
      %s158 = sphi 0, %s157
      %s172 = sphi 0, %s158
      %s176 = sphi 0, %s176
      %s178 = sphi 0, %s176
      %s179 = sphi 0, %s178
      %s193 = sphi 0, %s179
    $region4: #{_lambda_.1} parent=1 // loop_header_branch
      %19 = sbr.rel (%p17) target = $region8
    $region5: #{_lambda_.1} parent=1 // loop_body
      %s21 = ssub.s32 %s16, 1
      %s22 = ssub.s32 %s16, 2
      %s23 = sadd.s32 %s16, 1
      %s25 = sadd.s32 %s24, 1
      %p28 = scmp.eq.s32.totalorder %s16, 4
      %p29 = scmp.ne.s32.totalorder %s24, %s26
      %p30 = scmp.eq.s32.totalorder %s16, 0
      %p31 = por %p29, %p30
      %p32 = scmp.ne.s32.totalorder %s24, %s26
      %p33 = scmp.eq.s32.totalorder %s21, 4
      %p34 = por %p32, %p33
      %p35 = scmp.ne.s32.totalorder %s26, %s27
      %p36 = scmp.eq.s32.totalorder %s21, 0
      %p37 = por %p35, %p36
      %p38 = scmp.ne.s32.totalorder %s26, %s27
      %p39 = scmp.eq.s32.totalorder %s22, 4
      %p40 = por %p38, %p39
      %p42 = scmp.ne.s32.totalorder %s27, %s41
      %p43 = scmp.eq.s32.totalorder %s22, 0
      %p44 = por %p42, %p43
      %s46 = sadd.s32 %s45, 1
      %p49 = scmp.eq.s32.totalorder %s16, 4
      %p50 = scmp.ne.s32.totalorder %s45, %s47
      %p51 = scmp.eq.s32.totalorder %s16, 0
      %p52 = por %p50, %p51
      %p53 = scmp.ne.s32.totalorder %s45, %s47
      %p54 = scmp.eq.s32.totalorder %s21, 4
      %p55 = por %p53, %p54
      %p56 = scmp.ne.s32.totalorder %s47, %s48
      %p57 = scmp.eq.s32.totalorder %s21, 0
      %p58 = por %p56, %p57
      %p59 = scmp.ne.s32.totalorder %s47, %s48
      %p60 = scmp.eq.s32.totalorder %s22, 4
      %p61 = por %p59, %p60
      %p63 = scmp.ne.s32.totalorder %s48, %s62
      %p64 = scmp.eq.s32.totalorder %s22, 0
      %p65 = por %p63, %p64
      %s67 = sadd.s32 %s66, 1
      %p70 = scmp.eq.s32.totalorder %s16, 4
      %p71 = scmp.ne.s32.totalorder %s66, %s68
      %p72 = scmp.eq.s32.totalorder %s16, 0
      %p73 = por %p71, %p72
      %p74 = scmp.ne.s32.totalorder %s66, %s68
      %p75 = scmp.eq.s32.totalorder %s21, 4
      %p76 = por %p74, %p75
      %p77 = scmp.ne.s32.totalorder %s68, %s69
      %p78 = scmp.eq.s32.totalorder %s21, 0
      %p79 = por %p77, %p78
      %p80 = scmp.ne.s32.totalorder %s68, %s69
      %p81 = scmp.eq.s32.totalorder %s22, 4
      %p82 = por %p80, %p81
      %p84 = scmp.ne.s32.totalorder %s69, %s83
      %p85 = scmp.eq.s32.totalorder %s22, 0
      %p86 = por %p84, %p85
      %s87 = ssub.s32 %s16, %s23
      %p88 = scmp.eq.s32.totalorder %s87, 0
      %s90 = sadd.s32 %s89, 1
      %s91 = scalar_select %p88, %s89, %s90
      %p94 = pneg %p88
      %p95 = scmp.eq.s32.totalorder %s16, 4
      %p96 = por %p94, %p95
      %p97 = scmp.ne.s32.totalorder %s89, %s92
      %p98 = scmp.eq.s32.totalorder %s16, 0
      %p99 = por %p97, %p98
      %p100 = scmp.ne.s32.totalorder %s89, %s92
      %p101 = scmp.eq.s32.totalorder %s21, 4
      %p102 = por %p100, %p101
      %p103 = scmp.ne.s32.totalorder %s92, %s93
      %p104 = scmp.eq.s32.totalorder %s21, 0
      %p105 = por %p103, %p104
      %p106 = scmp.ne.s32.totalorder %s92, %s93
      %p107 = scmp.eq.s32.totalorder %s22, 4
      %p108 = por %p106, %p107
      %p110 = scmp.ne.s32.totalorder %s93, %s109
      %p111 = scmp.eq.s32.totalorder %s22, 0
      %p112 = por %p110, %p111
      %s114 = sadd.s32 %s113, 1
      %p117 = scmp.eq.s32.totalorder %s16, 4
      %p118 = scmp.ne.s32.totalorder %s113, %s115
      %p119 = scmp.eq.s32.totalorder %s16, 0
      %p120 = por %p118, %p119
      %p121 = scmp.ne.s32.totalorder %s113, %s115
      %p122 = scmp.eq.s32.totalorder %s21, 4
      %p123 = por %p121, %p122
      %p124 = scmp.ne.s32.totalorder %s115, %s116
      %p125 = scmp.eq.s32.totalorder %s21, 0
      %p126 = por %p124, %p125
      %p127 = scmp.ne.s32.totalorder %s115, %s116
      %p128 = scmp.eq.s32.totalorder %s22, 4
      %p129 = por %p127, %p128
      %p131 = scmp.ne.s32.totalorder %s116, %s130
      %p132 = scmp.eq.s32.totalorder %s22, 0
      %p133 = por %p131, %p132
      %s135 = sadd.s32 %s134, 1
      %p138 = scmp.eq.s32.totalorder %s16, 4
      %p139 = scmp.ne.s32.totalorder %s134, %s136
      %p140 = scmp.eq.s32.totalorder %s16, 0
      %p141 = por %p139, %p140
      %p142 = scmp.ne.s32.totalorder %s134, %s136
      %p143 = scmp.eq.s32.totalorder %s21, 4
      %p144 = por %p142, %p143
      %p145 = scmp.ne.s32.totalorder %s136, %s137
      %p146 = scmp.eq.s32.totalorder %s21, 0
      %p147 = por %p145, %p146
      %p148 = scmp.ne.s32.totalorder %s136, %s137
      %p149 = scmp.eq.s32.totalorder %s22, 4
      %p150 = por %p148, %p149
      %p152 = scmp.ne.s32.totalorder %s137, %s151
      %p153 = scmp.eq.s32.totalorder %s22, 0
      %p154 = por %p152, %p153
      %s156 = sadd.s32 %s155, 1
      %p159 = scmp.eq.s32.totalorder %s16, 4
      %p160 = scmp.ne.s32.totalorder %s155, %s157
      %p161 = scmp.eq.s32.totalorder %s16, 0
      %p162 = por %p160, %p161
      %p163 = scmp.ne.s32.totalorder %s155, %s157
      %p164 = scmp.eq.s32.totalorder %s21, 4
      %p165 = por %p163, %p164
      %p166 = scmp.ne.s32.totalorder %s157, %s158
      %p167 = scmp.eq.s32.totalorder %s21, 0
      %p168 = por %p166, %p167
      %p169 = scmp.ne.s32.totalorder %s157, %s158
      %p170 = scmp.eq.s32.totalorder %s22, 4
      %p171 = por %p169, %p170
      %p173 = scmp.ne.s32.totalorder %s158, %s172
      %p174 = scmp.eq.s32.totalorder %s22, 0
      %p175 = por %p173, %p174
      %s177 = sadd.s32 %s176, 1
      %p180 = scmp.eq.s32.totalorder %s16, 4
      %p181 = scmp.ne.s32.totalorder %s176, %s178
      %p182 = scmp.eq.s32.totalorder %s16, 0
      %p183 = por %p181, %p182
      %p184 = scmp.ne.s32.totalorder %s176, %s178
      %p185 = scmp.eq.s32.totalorder %s21, 4
      %p186 = por %p184, %p185
      %p187 = scmp.ne.s32.totalorder %s178, %s179
      %p188 = scmp.eq.s32.totalorder %s21, 0
      %p189 = por %p187, %p188
      %p190 = scmp.ne.s32.totalorder %s178, %s179
      %p191 = scmp.eq.s32.totalorder %s22, 4
      %p192 = por %p190, %p191
      %p194 = scmp.ne.s32.totalorder %s179, %s193
      %p195 = scmp.eq.s32.totalorder %s22, 0
      %p196 = por %p194, %p195
      %p197 = scmp.le.s32.totalorder 1, %s16
      %p198 = scmp.lt.s32.totalorder %s16, 6
      %p199 = pnand %p197, %p198
      %p200 = pneg %p199
      // Predicated region
      $region9: #{_lambda_.1} parent=5 // pred_check
        _
      $region10: #{_lambda_.1} parent=5 // pred_check_branch
        %202 = sbr.rel (%p199) target = $region12
      $region11: #{_lambda_.1} parent=5 // pred_region
        %s203 = ssub.s32 %s16, 1
        // Predicated region
        $region13: #{_lambda_.1} parent=11 // pred_check
          %p204 = pneg %p37
        $region14: #{_lambda_.1} parent=11 // pred_check_branch
          %206 = sbr.rel (%p204) target = $region16
        $region15: #{_lambda_.1} parent=11 // pred_region
          _
        $region16: #{_lambda_.1} parent=11 // pred_fallthru
          _
        // Predicated region
        $region17: #{_lambda_.1} parent=11 // pred_check
          %p207 = pneg %p58
        $region18: #{_lambda_.1} parent=11 // pred_check_branch
          %209 = sbr.rel (%p207) target = $region20
        $region19: #{_lambda_.1} parent=11 // pred_region
          %s211 = ssub.s32 128, 128
          %212 = vsyncadd [#allocation5], %s211
          %s214 = sshll.u32 [#allocation4], 4
          %s215 = int_to_ptr.vmem [resolvable:$true] %s214
          %217 = dma.hbm_to_vmem [thread:$0]  %s1, 128, %s215, [#allocation5]
        $region20: #{_lambda_.1} parent=11 // pred_fallthru
          _
        // Predicated region
        $region21: #{_lambda_.1} parent=11 // pred_check
          %p218 = pneg %p79
        $region22: #{_lambda_.1} parent=11 // pred_check_branch
          %220 = sbr.rel (%p218) target = $region24
        $region23: #{_lambda_.1} parent=11 // pred_region
          %s222 = ssub.s32 16, 16
          %223 = vsyncadd [#allocation7], %s222
          %s225 = sshll.u32 [#allocation6], 4
          %s226 = int_to_ptr.vmem [resolvable:$true] %s225
          %228 = dma.hbm_to_vmem [thread:$0]  %s2, 16, %s226, [#allocation7]
        $region24: #{_lambda_.1} parent=11 // pred_fallthru
          _
        // Predicated region
        $region25: #{_lambda_.1} parent=11 // pred_check
          %p229 = pneg %p126
        $region26: #{_lambda_.1} parent=11 // pred_check_branch
          %231 = sbr.rel (%p229) target = $region28
        $region27: #{_lambda_.1} parent=11 // pred_region
          %s233 = ssub.s32 96, 96
          %234 = vsyncadd [#allocation7], %s233
          %s236 = sshll.u32 [#allocation9], 4
          %s237 = int_to_ptr.vmem [resolvable:$true] %s236
          %239 = dma.hbm_to_vmem [thread:$0]  %s4, 96, %s237, [#allocation7]
        $region28: #{_lambda_.1} parent=11 // pred_fallthru
          _
        // Predicated region
        $region29: #{_lambda_.1} parent=11 // pred_check
          %p240 = pneg %p147
        $region30: #{_lambda_.1} parent=11 // pred_check_branch
          %242 = sbr.rel (%p240) target = $region32
        $region31: #{_lambda_.1} parent=11 // pred_region
          %s244 = ssub.s32 6144, 6144
          %245 = vsyncadd [#allocation11], %s244
          %s246 = sshll.u32 [#allocation10], 4
          %s247 = int_to_ptr.vmem [resolvable:$true] %s246
          %252 = dma.hbm_to_vmem [thread:$0]  %s5, 6144, %s247, [#allocation11], 64, 64, 4
        $region32: #{_lambda_.1} parent=11 // pred_fallthru
          _
        // Predicated region
        $region33: #{_lambda_.1} parent=11 // pred_check
          %p253 = pneg %p168
        $region34: #{_lambda_.1} parent=11 // pred_check_branch
          %255 = sbr.rel (%p253) target = $region36
        $region35: #{_lambda_.1} parent=11 // pred_region
          %s257 = ssub.s32 16, 16
          %258 = vsyncadd [#allocation11], %s257
          %s260 = sshll.u32 [#allocation12], 4
          %s261 = int_to_ptr.vmem [resolvable:$true] %s260
          %263 = dma.hbm_to_vmem [thread:$0]  %s6, 16, %s261, [#allocation11]
        $region36: #{_lambda_.1} parent=11 // pred_fallthru
          _
      $region12: #{_lambda_.1} parent=5 // pred_fallthru
        _
      %p264 = scmp.lt.s32.totalorder %s16, 5
      // Predicated region
      $region37: #{_lambda_.1} parent=5 // pred_check
        %p265 = pneg %p264
      $region38: #{_lambda_.1} parent=5 // pred_check_branch
        %267 = sbr.rel (%p265) target = $region40
      $region39: #{_lambda_.1} parent=5 // pred_region
        // Predicated region
        $region41: #{_lambda_.1} parent=39 // pred_check
          %p268 = pneg %p99
        $region42: #{_lambda_.1} parent=39 // pred_check_branch
          %270 = sbr.rel (%p268) target = $region44
        $region43: #{_lambda_.1} parent=39 // pred_region
          %s271 = sand.u32 %s16, 1
          %s272 = scalar_lea.sflag [#allocation5], %s271
          %s273 = sand.u32 %s89, 1
          %s274 = smul.addr %s273, 1920
          %s275 = scalar_lea.vmem [#allocation8], %s274
          %s276 = smul.u32 80, %s16
          %s278 = ssub.s32 30720, 30720
          %279 = vsyncadd %s272, %s278
          %s280 = smul.addr %s276, 6
          %s281 = smul.addr %s280, 64
          %s282 = scalar_lea.hbm %s3, %s281
          %s283 = sshll.u32 %s275, 4
          %s284 = int_to_ptr.vmem [resolvable:$true] %s283
          %289 = dma.hbm_to_vmem [thread:$0]  %s282, 30720, %s284, %s272, 384, 384, 24
        $region44: #{_lambda_.1} parent=39 // pred_fallthru
          _
      $region40: #{_lambda_.1} parent=5 // pred_fallthru
        _
      %p290 = scmp.le.s32.totalorder 1, %s16
      %p291 = scmp.lt.s32.totalorder %s16, 6
      %p292 = pnand %p290, %p291
      %p293 = pneg %p292
      // Predicated region
      $region45: #{_lambda_.1} parent=5 // pred_check
        _
      $region46: #{_lambda_.1} parent=5 // pred_check_branch
        %295 = sbr.rel (%p292) target = $region48
      $region47: #{_lambda_.1} parent=5 // pred_region
        %s296 = ssub.s32 %s16, 1
        // Predicated region
        $region49: #{_lambda_.1} parent=47 // pred_check
          %p297 = pneg %p58
        $region50: #{_lambda_.1} parent=47 // pred_check_branch
          %299 = sbr.rel (%p297) target = $region52
        $region51: #{_lambda_.1} parent=47 // pred_region
          %300 = dma.done [#allocation5], 128
        $region52: #{_lambda_.1} parent=47 // pred_fallthru
          _
        // Predicated region
        $region53: #{_lambda_.1} parent=47 // pred_check
          %p301 = pneg %p79
        $region54: #{_lambda_.1} parent=47 // pred_check_branch
          %303 = sbr.rel (%p301) target = $region56
        $region55: #{_lambda_.1} parent=47 // pred_region
          %304 = dma.done [#allocation7], 16
        $region56: #{_lambda_.1} parent=47 // pred_fallthru
          _
        %s305 = sand.u32 %s21, 1
        %s306 = scalar_lea.sflag [#allocation5], %s305
        %s307 = sand.u32 %s92, 1
        %s308 = smul.addr %s307, 1920
        %s309 = scalar_lea.vmem [#allocation8], %s308
        // Predicated region
        $region57: #{_lambda_.1} parent=47 // pred_check
          %p310 = pneg %p105
        $region58: #{_lambda_.1} parent=47 // pred_check_branch
          %312 = sbr.rel (%p310) target = $region60
        $region59: #{_lambda_.1} parent=47 // pred_region
          %313 = dma.done %s306, 30720
        $region60: #{_lambda_.1} parent=47 // pred_fallthru
          _
        // Predicated region
        $region61: #{_lambda_.1} parent=47 // pred_check
          %p314 = pneg %p126
        $region62: #{_lambda_.1} parent=47 // pred_check_branch
          %316 = sbr.rel (%p314) target = $region64
        $region63: #{_lambda_.1} parent=47 // pred_region
          %317 = dma.done [#allocation7], 96
        $region64: #{_lambda_.1} parent=47 // pred_fallthru
          _
        // Predicated region
        $region65: #{_lambda_.1} parent=47 // pred_check
          %p318 = pneg %p147
        $region66: #{_lambda_.1} parent=47 // pred_check_branch
          %320 = sbr.rel (%p318) target = $region68
        $region67: #{_lambda_.1} parent=47 // pred_region
          %321 = dma.done [#allocation11], 6144
        $region68: #{_lambda_.1} parent=47 // pred_fallthru
          _
        // Predicated region
        $region69: #{_lambda_.1} parent=47 // pred_check
          %p322 = pneg %p168
        $region70: #{_lambda_.1} parent=47 // pred_check_branch
          %324 = sbr.rel (%p322) target = $region72
        $region71: #{_lambda_.1} parent=47 // pred_region
          %325 = dma.done [#allocation11], 16
        $region72: #{_lambda_.1} parent=47 // pred_fallthru
          _
        %p326 = pneg %p37
        %p327 = pneg %p34
        %p328 = pneg %p58
        %p329 = pneg %p55
        %p330 = pneg %p79
        %p331 = pneg %p76
        %s332 = sand.u32 %s21, 1
        %s333 = scalar_lea.sflag [#allocation5], %s332
        %s334 = sand.u32 %s92, 1
        %s335 = smul.addr %s334, 1920
        %s336 = scalar_lea.vmem [#allocation8], %s335
        %p337 = pneg %p105
        %p338 = pneg %p102
        %p339 = pneg %p126
        %p340 = pneg %p123
        %p341 = pneg %p147
        %p342 = pneg %p144
        %p343 = pneg %p168
        %p344 = pneg %p165
        %p345 = pneg %p189
        %p346 = pneg %p186
        %s347 = smul.u32 80, %s21
        %p349 = scmp.eq.s32.totalorder %s21, 0
        // Predicated region
        $region73: #{_lambda_.1} parent=47 // pred_check
          %p350 = pneg %p349
        $region74: #{_lambda_.1} parent=47 // pred_check_branch
          %352 = sbr.rel (%p350) target = $region76
        $region75: #{_lambda_.1} parent=47 // pred_region
          %v353 = vld [vmem:[%s0] sm:$0xff]
          %v354 = vld [vmem:[%s0 + $0x8] sm:$0xff]
          %v355 = vld [vmem:[%s0 + $0x10] sm:$0x1]
          %v356 = vld [vmem:[%s0 + $0x18] sm:$0xff]
          %v357 = vld [vmem:[%s0 + $0x20] sm:$0xff]
          %v358 = vld [vmem:[%s0 + $0x28] sm:$0x1]
          %v359 = vld [vmem:[%s0 + $0x30] sm:$0xff]
          %v360 = vld [vmem:[%s0 + $0x38] sm:$0xff]
          %v361 = vld [vmem:[%s0 + $0x40] sm:$0x1]
          %v362 = vld [vmem:[%s0 + $0x48] sm:$0xff]
          %v363 = vld [vmem:[%s0 + $0x50] sm:$0xff]
          %v364 = vld [vmem:[%s0 + $0x58] sm:$0x1]
          %v365 = vld [vmem:[%s0 + $0x60] sm:$0xff]
          %v366 = vld [vmem:[%s0 + $0x68] sm:$0xff]
          %v367 = vld [vmem:[%s0 + $0x70] sm:$0x1]
          %v368 = vld [vmem:[%s0 + $0x78] sm:$0xff]
          %v369 = vld [vmem:[%s0 + $0x80] sm:$0xff]
          %v370 = vld [vmem:[%s0 + $0x88] sm:$0x1]
          %v371 = vld [vmem:[%s0 + $0x90] sm:$0xff]
          %v372 = vld [vmem:[%s0 + $0x98] sm:$0xff]
          %v373 = vld [vmem:[%s0 + $0xa0] sm:$0x1]
          %v374 = vld [vmem:[%s0 + $0xa8] sm:$0xff]
          %v375 = vld [vmem:[%s0 + $0xb0] sm:$0xff]
          %v376 = vld [vmem:[%s0 + $0xb8] sm:$0x1]
          %v377 = vld [vmem:[%s0 + $0xc0] sm:$0xff]
          %v378 = vld [vmem:[%s0 + $0xc8] sm:$0xff]
          %v379 = vld [vmem:[%s0 + $0xd0] sm:$0x1]
          %v380 = vld [vmem:[%s0 + $0xd8] sm:$0xff]
          %v381 = vld [vmem:[%s0 + $0xe0] sm:$0xff]
          %v382 = vld [vmem:[%s0 + $0xe8] sm:$0x1]
          %v383 = vld [vmem:[%s0 + $0xf0] sm:$0xff]
          %v384 = vld [vmem:[%s0 + $0xf8] sm:$0xff]
          %v385 = vld [vmem:[%s0 + $0x100] sm:$0x1]
          %v386 = vld [vmem:[%s0 + $0x108] sm:$0xff]
          %v387 = vld [vmem:[%s0 + $0x110] sm:$0xff]
          %v388 = vld [vmem:[%s0 + $0x118] sm:$0x1]
          %v389 = vld [vmem:[%s0 + $0x120] sm:$0xff]
          %v390 = vld [vmem:[%s0 + $0x128] sm:$0xff]
          %v391 = vld [vmem:[%s0 + $0x130] sm:$0x1]
          %v392 = vld [vmem:[%s0 + $0x138] sm:$0xff]
          %v393 = vld [vmem:[%s0 + $0x140] sm:$0xff]
          %v394 = vld [vmem:[%s0 + $0x148] sm:$0x1]
          %v395 = vld [vmem:[%s0 + $0x150] sm:$0xff]
          %v396 = vld [vmem:[%s0 + $0x158] sm:$0xff]
          %v397 = vld [vmem:[%s0 + $0x160] sm:$0x1]
          %v398 = vld [vmem:[%s0 + $0x168] sm:$0xff]
          %v399 = vld [vmem:[%s0 + $0x170] sm:$0xff]
          %v400 = vld [vmem:[%s0 + $0x178] sm:$0x1]
          %v401 = vld [vmem:[%s0 + $0x180] sm:$0xff]
          %v402 = vld [vmem:[%s0 + $0x188] sm:$0xff]
          %v403 = vld [vmem:[%s0 + $0x190] sm:$0x1]
          %v404 = vld [vmem:[%s0 + $0x198] sm:$0xff]
          %v405 = vld [vmem:[%s0 + $0x1a0] sm:$0xff]
          %v406 = vld [vmem:[%s0 + $0x1a8] sm:$0x1]
          %v407 = vld [vmem:[%s0 + $0x1b0] sm:$0xff]
          %v408 = vld [vmem:[%s0 + $0x1b8] sm:$0xff]
          %v409 = vld [vmem:[%s0 + $0x1c0] sm:$0x1]
          %v410 = vld [vmem:[%s0 + $0x1c8] sm:$0xff]
          %v411 = vld [vmem:[%s0 + $0x1d0] sm:$0xff]
          %v412 = vld [vmem:[%s0 + $0x1d8] sm:$0x1]
          %v413 = vld [vmem:[%s0 + $0x1e0] sm:$0xff]
          %v414 = vld [vmem:[%s0 + $0x1e8] sm:$0xff]
          %v415 = vld [vmem:[%s0 + $0x1f0] sm:$0x1]
          %v416 = vld [vmem:[%s0 + $0x1f8] sm:$0xff]
          %v417 = vld [vmem:[%s0 + $0x200] sm:$0xff]
          %v418 = vld [vmem:[%s0 + $0x208] sm:$0x1]
          %v419 = vld [vmem:[%s0 + $0x210] sm:$0xff]
          %v420 = vld [vmem:[%s0 + $0x218] sm:$0xff]
          %v421 = vld [vmem:[%s0 + $0x220] sm:$0x1]
          %v422 = vld [vmem:[%s0 + $0x228] sm:$0xff]
          %v423 = vld [vmem:[%s0 + $0x230] sm:$0xff]
          %v424 = vld [vmem:[%s0 + $0x238] sm:$0x1]
          %v425 = vld [vmem:[%s0 + $0x240] sm:$0xff]
          %v426 = vld [vmem:[%s0 + $0x248] sm:$0xff]
          %v427 = vld [vmem:[%s0 + $0x250] sm:$0x1]
          %v428 = vld [vmem:[%s0 + $0x258] sm:$0xff]
          %v429 = vld [vmem:[%s0 + $0x260] sm:$0xff]
          %v430 = vld [vmem:[%s0 + $0x268] sm:$0x1]
          %v431 = vld [vmem:[%s0 + $0x270] sm:$0xff]
          %v432 = vld [vmem:[%s0 + $0x278] sm:$0xff]
          %v433 = vld [vmem:[%s0 + $0x280] sm:$0x1]
          %v434 = vld [vmem:[%s0 + $0x288] sm:$0xff]
          %v435 = vld [vmem:[%s0 + $0x290] sm:$0xff]
          %v436 = vld [vmem:[%s0 + $0x298] sm:$0x1]
          %v437 = vld [vmem:[%s0 + $0x2a0] sm:$0xff]
          %v438 = vld [vmem:[%s0 + $0x2a8] sm:$0xff]
          %v439 = vld [vmem:[%s0 + $0x2b0] sm:$0x1]
          %v440 = vld [vmem:[%s0 + $0x2b8] sm:$0xff]
          %v441 = vld [vmem:[%s0 + $0x2c0] sm:$0xff]
          %v442 = vld [vmem:[%s0 + $0x2c8] sm:$0x1]
          %v443 = vld [vmem:[%s0 + $0x2d0] sm:$0xff]
          %v444 = vld [vmem:[%s0 + $0x2d8] sm:$0xff]
          %v445 = vld [vmem:[%s0 + $0x2e0] sm:$0x1]
          %v446 = vld [vmem:[%s0 + $0x2e8] sm:$0xff]
          %v447 = vld [vmem:[%s0 + $0x2f0] sm:$0xff]
          %v448 = vld [vmem:[%s0 + $0x2f8] sm:$0x1]
          %v449 = vld [vmem:[%s0 + $0x300] sm:$0xff]
          %v450 = vld [vmem:[%s0 + $0x308] sm:$0xff]
          %v451 = vld [vmem:[%s0 + $0x310] sm:$0x1]
          %v452 = vld [vmem:[%s0 + $0x318] sm:$0xff]
          %v453 = vld [vmem:[%s0 + $0x320] sm:$0xff]
          %v454 = vld [vmem:[%s0 + $0x328] sm:$0x1]
          %v455 = vld [vmem:[#allocation4] sm:$0xff]
          %v456 = vld [vmem:[#allocation6] sm:$0x1]
          %v457 = vadd.f32 %v353, %v356
          %v458 = vadd.f32 %v354, %v357
          %v459 = vadd.f32 %v355, %v358
          %v460 = vadd.f32 %v404, %v407
          %v461 = vadd.f32 %v405, %v408
          %v462 = vadd.f32 %v406, %v409
          %v463 = vadd.f32 %v457, %v359
          %v464 = vadd.f32 %v458, %v360
          %v465 = vadd.f32 %v459, %v361
          %v466 = vadd.f32 %v460, %v410
          %v467 = vadd.f32 %v461, %v411
          %v468 = vadd.f32 %v462, %v412
          %v469 = vadd.f32 %v463, %v362
          %v470 = vadd.f32 %v464, %v363
          %v471 = vadd.f32 %v465, %v364
          %v472 = vadd.f32 %v466, %v413
          %v473 = vadd.f32 %v467, %v414
          %v474 = vadd.f32 %v468, %v415
          %v475 = vadd.f32 %v469, %v365
          %v476 = vadd.f32 %v470, %v366
          %v477 = vadd.f32 %v471, %v367
          %v478 = vadd.f32 %v472, %v416
          %v479 = vadd.f32 %v473, %v417
          %v480 = vadd.f32 %v474, %v418
          %v483 = vrot.slane %v475, 1
          %v484 = vrot.slane %v478, 1
          %v487 = vadd.f32 %v475, %v483
          %v488 = vadd.f32 %v478, %v484
          %v489 = vrot.slane %v475, 2
          %v490 = vrot.slane %v478, 2
          %v493 = vadd.f32 %v487, %v489
          %v494 = vadd.f32 %v488, %v490
          %v495 = vrot.slane %v475, 3
          %v496 = vrot.slane %v478, 3
          %v499 = vadd.f32 %v493, %v495
          %v500 = vadd.f32 %v494, %v496
          %v501 = vrot.slane %v475, 4
          %v502 = vrot.slane %v478, 4
          %v505 = vadd.f32 %v499, %v501
          %v506 = vadd.f32 %v500, %v502
          %v507 = vmul.f32 %v505, 0.04
          %v508 = vmul.f32 %v506, 0.04
          %v510 = vlaneseq
          %v511 = vshrl.u32 %v510, 7
          %v512 = vsub.s32 0, %v511
          %v513 = vrot.slane %v456, %v512
          %v517 = vrot.slane %v508, 7
          %vm518 = vcmask 1041409
          %v519 = vsel %vm518, %v517, %v507
          %vm520 = vcmask 64512
          %v521 = vsel %vm520, %v519, 0
          %523 = vmatprep.subr.mxu0 0.0
          %524 = vmatpush1.msra.mxu0 %v455
          %525 = vmatprep.subr.mxu0 0.0
          %526 = vmatpush1.msra.mxu0 0.0
          %527 = vmatprep.subr.mxu0 0.0
          %528 = vmatpush1.msra.mxu0 0.0
          %529 = vmatprep.subr.mxu0 0.0
          %530 = vmatpush1.msra.mxu0 0.0
          %531 = vmatprep.subr.mxu0 0.0
          %532 = vmatpush1.msra.mxu0 0.0
          %533 = vmatprep.subr.mxu0 0.0
          %534 = vmatpush1.msra.mxu0 0.0
          %535 = vmatprep.subr.mxu0 0.0
          %536 = vmatpush1.msra.mxu0 0.0
          %537 = vmatprep.subr.mxu0 0.0
          %538 = vmatpush1.msra.mxu0 0.0
          %539 = vmatprep.subr.mxu0 0.0
          %540 = vmatpush1.msra.mxu0 0.0
          %541 = vmatprep.subr.mxu0 0.0
          %542 = vmatpush1.msra.mxu0 0.0
          %543 = vmatprep.subr.mxu0 0.0
          %544 = vmatpush1.msra.mxu0 0.0
          %545 = vmatprep.subr.mxu0 0.0
          %546 = vmatpush1.msra.mxu0 0.0
          %547 = vmatprep.subr.mxu0 0.0
          %548 = vmatpush1.msra.mxu0 0.0
          %549 = vmatprep.subr.mxu0 0.0
          %550 = vmatpush1.msra.mxu0 0.0
          %551 = vmatprep.subr.mxu0 0.0
          %552 = vmatpush1.msra.mxu0 0.0
          %553 = vmatprep.subr.mxu0 0.0
          %554 = vmatpush1.msra.mxu0 0.0
          %555 = vmatprep.subr.mxu0 0.0
          %556 = vmatpush1.msra.mxu0 0.0
          %557 = vmatprep.subr.mxu0 0.0
          %558 = vmatpush1.msra.mxu0 0.0
          %559 = vmatprep.subr.mxu0 0.0
          %560 = vmatpush1.msra.mxu0 0.0
          %561 = vmatprep.subr.mxu0 0.0
          %562 = vmatpush1.msra.mxu0 0.0
          %563 = vmatprep.subr.mxu0 0.0
          %564 = vmatpush1.msra.mxu0 0.0
          %565 = vmatprep.subr.mxu0 0.0
          %566 = vmatpush1.msra.mxu0 0.0
          %567 = vmatprep.subr.mxu0 0.0
          %568 = vmatpush1.msra.mxu0 0.0
          %569 = vmatprep.subr.mxu0 0.0
          %570 = vmatpush1.msra.mxu0 0.0
          %571 = vmatprep.subr.mxu0 0.0
          %572 = vmatpush1.msra.mxu0 0.0
          %573 = vmatprep.subr.mxu0 0.0
          %574 = vmatpush1.msra.mxu0 0.0
          %575 = vmatprep.subr.mxu0 0.0
          %576 = vmatpush1.msra.mxu0 0.0
          %577 = vmatprep.subr.mxu0 0.0
          %578 = vmatpush1.msra.mxu0 0.0
          %579 = vmatprep.subr.mxu0 0.0
          %580 = vmatpush1.msra.mxu0 0.0
          %581 = vmatprep.subr.mxu0 0.0
          %582 = vmatpush1.msra.mxu0 0.0
          %583 = vmatprep.subr.mxu0 0.0
          %584 = vmatpush1.msra.mxu0 0.0
          %585 = vmatprep.subr.mxu0 0.0
          %586 = vmatpush1.msra.mxu0 0.0
          %587 = vmatprep.mubr.f32.mxu0 0.0
          %588 = vmatmul.mubr.f32.gmra.mrb[0].mxu0 %v521
          %v589 = vpop.f32.mrb[0].mxu0
          %v590 = vadd.f32 %v513, %v589
          %v591 = vpop.f32.mrb[0].mxu0
          %592 = vdwg.mxu0
          %v593 = vmax.f32 %v590, 0.0
          %v594 = vrot.slane %v507, 3
          %v595 = vrot.slane %v508, 2
          %v596 = vsel %vm518, %v595, %v594
          %v597 = vsel %vm520, %v596, 0
          %599 = vmatprep.subr.mxu0 0.0
          %600 = vmatpush1.msra.mxu0 %v455
          %601 = vmatprep.subr.mxu0 0.0
          %602 = vmatpush1.msra.mxu0 0.0
          %603 = vmatprep.subr.mxu0 0.0
          %604 = vmatpush1.msra.mxu0 0.0
          %605 = vmatprep.subr.mxu0 0.0
          %606 = vmatpush1.msra.mxu0 0.0
          %607 = vmatprep.subr.mxu0 0.0
          %608 = vmatpush1.msra.mxu0 0.0
          %609 = vmatprep.subr.mxu0 0.0
          %610 = vmatpush1.msra.mxu0 0.0
          %611 = vmatprep.subr.mxu0 0.0
          %612 = vmatpush1.msra.mxu0 0.0
          %613 = vmatprep.subr.mxu0 0.0
          %614 = vmatpush1.msra.mxu0 0.0
          %615 = vmatprep.subr.mxu0 0.0
          %616 = vmatpush1.msra.mxu0 0.0
          %617 = vmatprep.subr.mxu0 0.0
          %618 = vmatpush1.msra.mxu0 0.0
          %619 = vmatprep.subr.mxu0 0.0
          %620 = vmatpush1.msra.mxu0 0.0
          %621 = vmatprep.subr.mxu0 0.0
          %622 = vmatpush1.msra.mxu0 0.0
          %623 = vmatprep.subr.mxu0 0.0
          %624 = vmatpush1.msra.mxu0 0.0
          %625 = vmatprep.subr.mxu0 0.0
          %626 = vmatpush1.msra.mxu0 0.0
          %627 = vmatprep.subr.mxu0 0.0
          %628 = vmatpush1.msra.mxu0 0.0
          %629 = vmatprep.subr.mxu0 0.0
          %630 = vmatpush1.msra.mxu0 0.0
          %631 = vmatprep.subr.mxu0 0.0
          %632 = vmatpush1.msra.mxu0 0.0
          %633 = vmatprep.subr.mxu0 0.0
          %634 = vmatpush1.msra.mxu0 0.0
          %635 = vmatprep.subr.mxu0 0.0
          %636 = vmatpush1.msra.mxu0 0.0
          %637 = vmatprep.subr.mxu0 0.0
          %638 = vmatpush1.msra.mxu0 0.0
          %639 = vmatprep.subr.mxu0 0.0
          %640 = vmatpush1.msra.mxu0 0.0
          %641 = vmatprep.subr.mxu0 0.0
          %642 = vmatpush1.msra.mxu0 0.0
          %643 = vmatprep.subr.mxu0 0.0
          %644 = vmatpush1.msra.mxu0 0.0
          %645 = vmatprep.subr.mxu0 0.0
          %646 = vmatpush1.msra.mxu0 0.0
          %647 = vmatprep.subr.mxu0 0.0
          %648 = vmatpush1.msra.mxu0 0.0
          %649 = vmatprep.subr.mxu0 0.0
          %650 = vmatpush1.msra.mxu0 0.0
          %651 = vmatprep.subr.mxu0 0.0
          %652 = vmatpush1.msra.mxu0 0.0
          %653 = vmatprep.subr.mxu0 0.0
          %654 = vmatpush1.msra.mxu0 0.0
          %655 = vmatprep.subr.mxu0 0.0
          %656 = vmatpush1.msra.mxu0 0.0
          %657 = vmatprep.subr.mxu0 0.0
          %658 = vmatpush1.msra.mxu0 0.0
          %659 = vmatprep.subr.mxu0 0.0
          %660 = vmatpush1.msra.mxu0 0.0
          %661 = vmatprep.subr.mxu0 0.0
          %662 = vmatpush1.msra.mxu0 0.0
          %663 = vmatprep.mubr.f32.mxu0 0.0
          %664 = vmatmul.mubr.f32.gmra.mrb[0].mxu0 %v597
          %v665 = vpop.f32.mrb[0].mxu0
          %v666 = vadd.f32 %v513, %v665
          %v667 = vpop.f32.mrb[0].mxu0
          %668 = vdwg.mxu0
          %v669 = vmax.f32 %v666, 0.0
          %v672 = vrot.slane %v476, 2
          %v673 = vrot.slane %v479, 2
          %v676 = vadd.f32 %v487, %v672
          %v677 = vadd.f32 %v488, %v673
          %v678 = vrot.slane %v476, 3
          %v679 = vrot.slane %v479, 3
          %v682 = vadd.f32 %v676, %v678
          %v683 = vadd.f32 %v677, %v679
          %v684 = vrot.slane %v476, 4
          %v685 = vrot.slane %v479, 4
          %v688 = vadd.f32 %v682, %v684
          %v689 = vadd.f32 %v683, %v685
          %v690 = vmul.f32 %v688, 0.04
          %v691 = vmul.f32 %v689, 0.04
          %v694 = vrot.slane %v690, 6
          %v695 = vrot.slane %v691, 5
          %v696 = vsel %vm518, %v695, %v694
          %v697 = vsel %vm520, %v696, 0
          %699 = vmatprep.subr.mxu0 0.0
          %700 = vmatpush1.msra.mxu0 %v455
          %701 = vmatprep.subr.mxu0 0.0
          %702 = vmatpush1.msra.mxu0 0.0
          %703 = vmatprep.subr.mxu0 0.0
          %704 = vmatpush1.msra.mxu0 0.0
          %705 = vmatprep.subr.mxu0 0.0
          %706 = vmatpush1.msra.mxu0 0.0
          %707 = vmatprep.subr.mxu0 0.0
          %708 = vmatpush1.msra.mxu0 0.0
          %709 = vmatprep.subr.mxu0 0.0
          %710 = vmatpush1.msra.mxu0 0.0
          %711 = vmatprep.subr.mxu0 0.0
          %712 = vmatpush1.msra.mxu0 0.0
          %713 = vmatprep.subr.mxu0 0.0
          %714 = vmatpush1.msra.mxu0 0.0
          %715 = vmatprep.subr.mxu0 0.0
          %716 = vmatpush1.msra.mxu0 0.0
          %717 = vmatprep.subr.mxu0 0.0
          %718 = vmatpush1.msra.mxu0 0.0
          %719 = vmatprep.subr.mxu0 0.0
          %720 = vmatpush1.msra.mxu0 0.0
          %721 = vmatprep.subr.mxu0 0.0
          %722 = vmatpush1.msra.mxu0 0.0
          %723 = vmatprep.subr.mxu0 0.0
          %724 = vmatpush1.msra.mxu0 0.0
          %725 = vmatprep.subr.mxu0 0.0
          %726 = vmatpush1.msra.mxu0 0.0
          %727 = vmatprep.subr.mxu0 0.0
          %728 = vmatpush1.msra.mxu0 0.0
          %729 = vmatprep.subr.mxu0 0.0
          %730 = vmatpush1.msra.mxu0 0.0
          %731 = vmatprep.subr.mxu0 0.0
          %732 = vmatpush1.msra.mxu0 0.0
          %733 = vmatprep.subr.mxu0 0.0
          %734 = vmatpush1.msra.mxu0 0.0
          %735 = vmatprep.subr.mxu0 0.0
          %736 = vmatpush1.msra.mxu0 0.0
          %737 = vmatprep.subr.mxu0 0.0
          %738 = vmatpush1.msra.mxu0 0.0
          %739 = vmatprep.subr.mxu0 0.0
          %740 = vmatpush1.msra.mxu0 0.0
          %741 = vmatprep.subr.mxu0 0.0
          %742 = vmatpush1.msra.mxu0 0.0
          %743 = vmatprep.subr.mxu0 0.0
          %744 = vmatpush1.msra.mxu0 0.0
          %745 = vmatprep.subr.mxu0 0.0
          %746 = vmatpush1.msra.mxu0 0.0
          %747 = vmatprep.subr.mxu0 0.0
          %748 = vmatpush1.msra.mxu0 0.0
          %749 = vmatprep.subr.mxu0 0.0
          %750 = vmatpush1.msra.mxu0 0.0
          %751 = vmatprep.subr.mxu0 0.0
          %752 = vmatpush1.msra.mxu0 0.0
          %753 = vmatprep.subr.mxu0 0.0
          %754 = vmatpush1.msra.mxu0 0.0
          %755 = vmatprep.subr.mxu0 0.0
          %756 = vmatpush1.msra.mxu0 0.0
          %757 = vmatprep.subr.mxu0 0.0
          %758 = vmatpush1.msra.mxu0 0.0
          %759 = vmatprep.subr.mxu0 0.0
          %760 = vmatpush1.msra.mxu0 0.0
          %761 = vmatprep.subr.mxu0 0.0
          %762 = vmatpush1.msra.mxu0 0.0
          %763 = vmatprep.mubr.f32.mxu0 0.0
          %764 = vmatmul.mubr.f32.gmra.mrb[0].mxu0 %v697
          %v765 = vpop.f32.mrb[0].mxu0
          %v766 = vadd.f32 %v513, %v765
          %v767 = vpop.f32.mrb[0].mxu0
          %768 = vdwg.mxu0
          %v769 = vmax.f32 %v766, 0.0
          %v770 = vrot.slane %v476, 1
          %v771 = vrot.slane %v479, 1
          %v774 = vadd.f32 %v476, %v770
          %v775 = vadd.f32 %v479, %v771
          %v776 = vadd.f32 %v774, %v672
          %v777 = vadd.f32 %v775, %v673
          %v778 = vadd.f32 %v776, %v678
          %v779 = vadd.f32 %v777, %v679
          %v780 = vadd.f32 %v778, %v684
          %v781 = vadd.f32 %v779, %v685
          %v782 = vmul.f32 %v780, 0.04
          %v783 = vmul.f32 %v781, 0.04
          %v786 = vrot.slane %v782, 1
          %v787 = vsel %vm518, %v783, %v786
          %v788 = vsel %vm520, %v787, 0
          %790 = vmatprep.subr.mxu0 0.0
          %791 = vmatpush1.msra.mxu0 %v455
          %792 = vmatprep.subr.mxu0 0.0
          %793 = vmatpush1.msra.mxu0 0.0
          %794 = vmatprep.subr.mxu0 0.0
          %795 = vmatpush1.msra.mxu0 0.0
          %796 = vmatprep.subr.mxu0 0.0
          %797 = vmatpush1.msra.mxu0 0.0
          %798 = vmatprep.subr.mxu0 0.0
          %799 = vmatpush1.msra.mxu0 0.0
          %800 = vmatprep.subr.mxu0 0.0
          %801 = vmatpush1.msra.mxu0 0.0
          %802 = vmatprep.subr.mxu0 0.0
          %803 = vmatpush1.msra.mxu0 0.0
          %804 = vmatprep.subr.mxu0 0.0
          %805 = vmatpush1.msra.mxu0 0.0
          %806 = vmatprep.subr.mxu0 0.0
          %807 = vmatpush1.msra.mxu0 0.0
          %808 = vmatprep.subr.mxu0 0.0
          %809 = vmatpush1.msra.mxu0 0.0
          %810 = vmatprep.subr.mxu0 0.0
          %811 = vmatpush1.msra.mxu0 0.0
          %812 = vmatprep.subr.mxu0 0.0
          %813 = vmatpush1.msra.mxu0 0.0
          %814 = vmatprep.subr.mxu0 0.0
          %815 = vmatpush1.msra.mxu0 0.0
          %816 = vmatprep.subr.mxu0 0.0
          %817 = vmatpush1.msra.mxu0 0.0
          %818 = vmatprep.subr.mxu0 0.0
          %819 = vmatpush1.msra.mxu0 0.0
          %820 = vmatprep.subr.mxu0 0.0
          %821 = vmatpush1.msra.mxu0 0.0
          %822 = vmatprep.subr.mxu0 0.0
          %823 = vmatpush1.msra.mxu0 0.0
          %824 = vmatprep.subr.mxu0 0.0
          %825 = vmatpush1.msra.mxu0 0.0
          %826 = vmatprep.subr.mxu0 0.0
          %827 = vmatpush1.msra.mxu0 0.0
          %828 = vmatprep.subr.mxu0 0.0
          %829 = vmatpush1.msra.mxu0 0.0
          %830 = vmatprep.subr.mxu0 0.0
          %831 = vmatpush1.msra.mxu0 0.0
          %832 = vmatprep.subr.mxu0 0.0
          %833 = vmatpush1.msra.mxu0 0.0
          %834 = vmatprep.subr.mxu0 0.0
          %835 = vmatpush1.msra.mxu0 0.0
          %836 = vmatprep.subr.mxu0 0.0
          %837 = vmatpush1.msra.mxu0 0.0
          %838 = vmatprep.subr.mxu0 0.0
          %839 = vmatpush1.msra.mxu0 0.0
          %840 = vmatprep.subr.mxu0 0.0
          %841 = vmatpush1.msra.mxu0 0.0
          %842 = vmatprep.subr.mxu0 0.0
          %843 = vmatpush1.msra.mxu0 0.0
          %844 = vmatprep.subr.mxu0 0.0
          %845 = vmatpush1.msra.mxu0 0.0
          %846 = vmatprep.subr.mxu0 0.0
          %847 = vmatpush1.msra.mxu0 0.0
          %848 = vmatprep.subr.mxu0 0.0
          %849 = vmatpush1.msra.mxu0 0.0
          %850 = vmatprep.subr.mxu0 0.0
          %851 = vmatpush1.msra.mxu0 0.0
          %852 = vmatprep.subr.mxu0 0.0
          %853 = vmatpush1.msra.mxu0 0.0
          %854 = vmatprep.mubr.f32.mxu0 0.0
          %855 = vmatmul.mubr.f32.gmra.mrb[0].mxu0 %v788
          %v856 = vpop.f32.mrb[0].mxu0
          %v857 = vadd.f32 %v513, %v856
          %v858 = vpop.f32.mrb[0].mxu0
          %859 = vdwg.mxu0
          %v860 = vmax.f32 %v857, 0.0
          %v863 = vrot.slane %v477, 4
          %v864 = vrot.slane %v480, 4
          %v867 = vadd.f32 %v778, %v863
          %v868 = vadd.f32 %v779, %v864
          %v869 = vmul.f32 %v867, 0.04
          %v870 = vmul.f32 %v868, 0.04
          %v873 = vrot.slane %v869, 4
          %v874 = vrot.slane %v870, 3
          %v875 = vsel %vm518, %v874, %v873
          %v876 = vsel %vm520, %v875, 0
          %878 = vmatprep.subr.mxu0 0.0
          %879 = vmatpush1.msra.mxu0 %v455
          %880 = vmatprep.subr.mxu0 0.0
          %881 = vmatpush1.msra.mxu0 0.0
          %882 = vmatprep.subr.mxu0 0.0
          %883 = vmatpush1.msra.mxu0 0.0
          %884 = vmatprep.subr.mxu0 0.0
          %885 = vmatpush1.msra.mxu0 0.0
          %886 = vmatprep.subr.mxu0 0.0
          %887 = vmatpush1.msra.mxu0 0.0
          %888 = vmatprep.subr.mxu0 0.0
          %889 = vmatpush1.msra.mxu0 0.0
          %890 = vmatprep.subr.mxu0 0.0
          %891 = vmatpush1.msra.mxu0 0.0
          %892 = vmatprep.subr.mxu0 0.0
          %893 = vmatpush1.msra.mxu0 0.0
          %894 = vmatprep.subr.mxu0 0.0
          %895 = vmatpush1.msra.mxu0 0.0
          %896 = vmatprep.subr.mxu0 0.0
          %897 = vmatpush1.msra.mxu0 0.0
          %898 = vmatprep.subr.mxu0 0.0
          %899 = vmatpush1.msra.mxu0 0.0
          %900 = vmatprep.subr.mxu0 0.0
          %901 = vmatpush1.msra.mxu0 0.0
          %902 = vmatprep.subr.mxu0 0.0
          %903 = vmatpush1.msra.mxu0 0.0
          %904 = vmatprep.subr.mxu0 0.0
          %905 = vmatpush1.msra.mxu0 0.0
          %906 = vmatprep.subr.mxu0 0.0
          %907 = vmatpush1.msra.mxu0 0.0
          %908 = vmatprep.subr.mxu0 0.0
          %909 = vmatpush1.msra.mxu0 0.0
          %910 = vmatprep.subr.mxu0 0.0
          %911 = vmatpush1.msra.mxu0 0.0
          %912 = vmatprep.subr.mxu0 0.0
          %913 = vmatpush1.msra.mxu0 0.0
          %914 = vmatprep.subr.mxu0 0.0
          %915 = vmatpush1.msra.mxu0 0.0
          %916 = vmatprep.subr.mxu0 0.0
          %917 = vmatpush1.msra.mxu0 0.0
          %918 = vmatprep.subr.mxu0 0.0
          %919 = vmatpush1.msra.mxu0 0.0
          %920 = vmatprep.subr.mxu0 0.0
          %921 = vmatpush1.msra.mxu0 0.0
          %922 = vmatprep.subr.mxu0 0.0
          %923 = vmatpush1.msra.mxu0 0.0
          %924 = vmatprep.subr.mxu0 0.0
          %925 = vmatpush1.msra.mxu0 0.0
          %926 = vmatprep.subr.mxu0 0.0
          %927 = vmatpush1.msra.mxu0 0.0
          %928 = vmatprep.subr.mxu0 0.0
          %929 = vmatpush1.msra.mxu0 0.0
          %930 = vmatprep.subr.mxu0 0.0
          %931 = vmatpush1.msra.mxu0 0.0
          %932 = vmatprep.subr.mxu0 0.0
          %933 = vmatpush1.msra.mxu0 0.0
          %934 = vmatprep.subr.mxu0 0.0
          %935 = vmatpush1.msra.mxu0 0.0
          %936 = vmatprep.subr.mxu0 0.0
          %937 = vmatpush1.msra.mxu0 0.0
          %938 = vmatprep.subr.mxu0 0.0
          %939 = vmatpush1.msra.mxu0 0.0
          %940 = vmatprep.subr.mxu0 0.0
          %941 = vmatpush1.msra.mxu0 0.0
          %942 = vmatprep.mubr.f32.mxu0 0.0
          %943 = vmatmul.mubr.f32.gmra.mrb[0].mxu0 %v876
          %v944 = vpop.f32.mrb[0].mxu0
          %v945 = vadd.f32 %v513, %v944
          %v946 = vpop.f32.mrb[0].mxu0
          %947 = vdwg.mxu0
          %v948 = vmax.f32 %v945, 0.0
          %vm949 = vcmask 1041408
          %v950 = vsel %vm949, %v593, 0.0
          %v951 = vsel %vm949, %v669, 0.0
          %v952 = vsel %vm949, %v769, 0.0
          %v953 = vsel %vm949, %v860, 0.0
          %v954 = vsel %vm949, %v948, 0.0
          %v955 = vpack.c.bf16 0.0, %v950
          %v956 = vpack.c.bf16 0.0, %v951
          %v957 = vpack.c.bf16 0.0, %v952
          %v958 = vpack.c.bf16 0.0, %v953
          %v959 = vpack.c.bf16 0.0, %v954
          %960 = vst [vmem:[#allocation2] sm:$0xff] %v955
          %961 = vst [vmem:[#allocation2 + $0x8] sm:$0xff] %v956
          %962 = vst [vmem:[#allocation2 + $0x10] sm:$0xff] %v957
          %963 = vst [vmem:[#allocation2 + $0x18] sm:$0xff] %v958
          %964 = vst [vmem:[#allocation2 + $0x20] sm:$0xff] %v959
          %v965 = vadd.f32 %v362, %v365
          %v966 = vadd.f32 %v363, %v366
          %v967 = vadd.f32 %v364, %v367
          %v968 = vadd.f32 %v413, %v416
          %v969 = vadd.f32 %v414, %v417
          %v970 = vadd.f32 %v415, %v418
          %v971 = vadd.f32 %v965, %v368
          %v972 = vadd.f32 %v966, %v369
          %v973 = vadd.f32 %v967, %v370
          %v974 = vadd.f32 %v968, %v419
          %v975 = vadd.f32 %v969, %v420
          %v976 = vadd.f32 %v970, %v421
          %v977 = vadd.f32 %v971, %v371
          %v978 = vadd.f32 %v972, %v372
          %v979 = vadd.f32 %v973, %v373
          %v980 = vadd.f32 %v974, %v422
          %v981 = vadd.f32 %v975, %v423
          %v982 = vadd.f32 %v976, %v424
          %v983 = vadd.f32 %v977, %v374
          %v984 = vadd.f32 %v978, %v375
          %v985 = vadd.f32 %v979, %v376
          %v986 = vadd.f32 %v980, %v425
          %v987 = vadd.f32 %v981, %v426
          %v988 = vadd.f32 %v982, %v427
          %v991 = vrot.slane %v983, 1
          %v992 = vrot.slane %v986, 1
          %v995 = vadd.f32 %v983, %v991
          %v996 = vadd.f32 %v986, %v992
          %v997 = vrot.slane %v983, 2
          %v998 = vrot.slane %v986, 2
          %v1001 = vadd.f32 %v995, %v997
          %v1002 = vadd.f32 %v996, %v998
          %v1003 = vrot.slane %v983, 3
          %v1004 = vrot.slane %v986, 3
          %v1007 = vadd.f32 %v1001, %v1003
          %v1008 = vadd.f32 %v1002, %v1004
          %v1009 = vrot.slane %v983, 4
          %v1010 = vrot.slane %v986, 4
          %v1013 = vadd.f32 %v1007, %v1009
          %v1014 = vadd.f32 %v1008, %v1010
          %v1015 = vmul.f32 %v1013, 0.04
          %v1016 = vmul.f32 %v1014, 0.04
          %v1019 = vrot.slane %v1016, 7
          %v1020 = vsel %vm518, %v1019, %v1015
          %v1021 = vsel %vm520, %v1020, 0
          %1023 = vmatprep.subr.mxu0 0.0
          %1024 = vmatpush1.msra.mxu0 %v455
          %1025 = vmatprep.subr.mxu0 0.0
          %1026 = vmatpush1.msra.mxu0 0.0
          %1027 = vmatprep.subr.mxu0 0.0
          %1028 = vmatpush1.msra.mxu0 0.0
          %1029 = vmatprep.subr.mxu0 0.0
          %1030 = vmatpush1.msra.mxu0 0.0
          %1031 = vmatprep.subr.mxu0 0.0
          %1032 = vmatpush1.msra.mxu0 0.0
          %1033 = vmatprep.subr.mxu0 0.0
          %1034 = vmatpush1.msra.mxu0 0.0
          %1035 = vmatprep.subr.mxu0 0.0
          %1036 = vmatpush1.msra.mxu0 0.0
          %1037 = vmatprep.subr.mxu0 0.0
          %1038 = vmatpush1.msra.mxu0 0.0
          %1039 = vmatprep.subr.mxu0 0.0
          %1040 = vmatpush1.msra.mxu0 0.0
          %1041 = vmatprep.subr.mxu0 0.0
          %1042 = vmatpush1.msra.mxu0 0.0
          %1043 = vmatprep.subr.mxu0 0.0
          %1044 = vmatpush1.msra.mxu0 0.0
          %1045 = vmatprep.subr.mxu0 0.0
          %1046 = vmatpush1.msra.mxu0 0.0
          %1047 = vmatprep.subr.mxu0 0.0
          %1048 = vmatpush1.msra.mxu0 0.0
          %1049 = vmatprep.subr.mxu0 0.0
          %1050 = vmatpush1.msra.mxu0 0.0
          %1051 = vmatprep.subr.mxu0 0.0
          %1052 = vmatpush1.msra.mxu0 0.0
          %1053 = vmatprep.subr.mxu0 0.0
          %1054 = vmatpush1.msra.mxu0 0.0
          %1055 = vmatprep.subr.mxu0 0.0
          %1056 = vmatpush1.msra.mxu0 0.0
          %1057 = vmatprep.subr.mxu0 0.0
          %1058 = vmatpush1.msra.mxu0 0.0
          %1059 = vmatprep.subr.mxu0 0.0
          %1060 = vmatpush1.msra.mxu0 0.0
          %1061 = vmatprep.subr.mxu0 0.0
          %1062 = vmatpush1.msra.mxu0 0.0
          %1063 = vmatprep.subr.mxu0 0.0
          %1064 = vmatpush1.msra.mxu0 0.0
          %1065 = vmatprep.subr.mxu0 0.0
          %1066 = vmatpush1.msra.mxu0 0.0
          %1067 = vmatprep.subr.mxu0 0.0
          %1068 = vmatpush1.msra.mxu0 0.0
          %1069 = vmatprep.subr.mxu0 0.0
          %1070 = vmatpush1.msra.mxu0 0.0
          %1071 = vmatprep.subr.mxu0 0.0
          %1072 = vmatpush1.msra.mxu0 0.0
          %1073 = vmatprep.subr.mxu0 0.0
          %1074 = vmatpush1.msra.mxu0 0.0
          %1075 = vmatprep.subr.mxu0 0.0
          %1076 = vmatpush1.msra.mxu0 0.0
          %1077 = vmatprep.subr.mxu0 0.0
          %1078 = vmatpush1.msra.mxu0 0.0
          %1079 = vmatprep.subr.mxu0 0.0
          %1080 = vmatpush1.msra.mxu0 0.0
          %1081 = vmatprep.subr.mxu0 0.0
          %1082 = vmatpush1.msra.mxu0 0.0
          %1083 = vmatprep.subr.mxu0 0.0
          %1084 = vmatpush1.msra.mxu0 0.0
          %1085 = vmatprep.subr.mxu0 0.0
          %1086 = vmatpush1.msra.mxu0 0.0
          %1087 = vmatprep.mubr.f32.mxu0 0.0
          %1088 = vmatmul.mubr.f32.gmra.mrb[0].mxu0 %v1021
          %v1089 = vpop.f32.mrb[0].mxu0
          %v1090 = vadd.f32 %v513, %v1089
          %v1091 = vpop.f32.mrb[0].mxu0
          %1092 = vdwg.mxu0
          %v1093 = vmax.f32 %v1090, 0.0
          %v1094 = vrot.slane %v1015, 3
          %v1095 = vrot.slane %v1016, 2
          %v1096 = vsel %vm518, %v1095, %v1094
          %v1097 = vsel %vm520, %v1096, 0
          %1099 = vmatprep.subr.mxu0 0.0
          %1100 = vmatpush1.msra.mxu0 %v455
          %1101 = vmatprep.subr.mxu0 0.0
          %1102 = vmatpush1.msra.mxu0 0.0
          %1103 = vmatprep.subr.mxu0 0.0
          %1104 = vmatpush1.msra.mxu0 0.0
          %1105 = vmatprep.subr.mxu0 0.0
          %1106 = vmatpush1.msra.mxu0 0.0
          %1107 = vmatprep.subr.mxu0 0.0
          %1108 = vmatpush1.msra.mxu0 0.0
          %1109 = vmatprep.subr.mxu0 0.0
          %1110 = vmatpush1.msra.mxu0 0.0
          %1111 = vmatprep.subr.mxu0 0.0
          %1112 = vmatpush1.msra.mxu0 0.0
          %1113 = vmatprep.subr.mxu0 0.0
          %1114 = vmatpush1.msra.mxu0 0.0
          %1115 = vmatprep.subr.mxu0 0.0
          %1116 = vmatpush1.msra.mxu0 0.0
          %1117 = vmatprep.subr.mxu0 0.0
          %1118 = vmatpush1.msra.mxu0 0.0
          %1119 = vmatprep.subr.mxu0 0.0
          %1120 = vmatpush1.msra.mxu0 0.0
          %1121 = vmatprep.subr.mxu0 0.0
          %1122 = vmatpush1.msra.mxu0 0.0
          %1123 = vmatprep.subr.mxu0 0.0
          %1124 = vmatpush1.msra.mxu0 0.0
          %1125 = vmatprep.subr.mxu0 0.0
          %1126 = vmatpush1.msra.mxu0 0.0
          %1127 = vmatprep.subr.mxu0 0.0
          %1128 = vmatpush1.msra.mxu0 0.0
          %1129 = vmatprep.subr.mxu0 0.0
          %1130 = vmatpush1.msra.mxu0 0.0
          %1131 = vmatprep.subr.mxu0 0.0
          %1132 = vmatpush1.msra.mxu0 0.0
          %1133 = vmatprep.subr.mxu0 0.0
          %1134 = vmatpush1.msra.mxu0 0.0
          %1135 = vmatprep.subr.mxu0 0.0
          %1136 = vmatpush1.msra.mxu0 0.0
          %1137 = vmatprep.subr.mxu0 0.0
          %1138 = vmatpush1.msra.mxu0 0.0
          %1139 = vmatprep.subr.mxu0 0.0
          %1140 = vmatpush1.msra.mxu0 0.0
          %1141 = vmatprep.subr.mxu0 0.0
          %1142 = vmatpush1.msra.mxu0 0.0
          %1143 = vmatprep.subr.mxu0 0.0
          %1144 = vmatpush1.msra.mxu0 0.0
          %1145 = vmatprep.subr.mxu0 0.0
          %1146 = vmatpush1.msra.mxu0 0.0
          %1147 = vmatprep.subr.mxu0 0.0
          %1148 = vmatpush1.msra.mxu0 0.0
          %1149 = vmatprep.subr.mxu0 0.0
          %1150 = vmatpush1.msra.mxu0 0.0
          %1151 = vmatprep.subr.mxu0 0.0
          %1152 = vmatpush1.msra.mxu0 0.0
          %1153 = vmatprep.subr.mxu0 0.0
          %1154 = vmatpush1.msra.mxu0 0.0
          %1155 = vmatprep.subr.mxu0 0.0
          %1156 = vmatpush1.msra.mxu0 0.0
          %1157 = vmatprep.subr.mxu0 0.0
          %1158 = vmatpush1.msra.mxu0 0.0
          %1159 = vmatprep.subr.mxu0 0.0
          %1160 = vmatpush1.msra.mxu0 0.0
          %1161 = vmatprep.subr.mxu0 0.0
          %1162 = vmatpush1.msra.mxu0 0.0
          %1163 = vmatprep.mubr.f32.mxu0 0.0
          %1164 = vmatmul.mubr.f32.gmra.mrb[0].mxu0 %v1097
          %v1165 = vpop.f32.mrb[0].mxu0
          %v1166 = vadd.f32 %v513, %v1165
          %v1167 = vpop.f32.mrb[0].mxu0
          %1168 = vdwg.mxu0
          %v1169 = vmax.f32 %v1166, 0.0
          %v1172 = vrot.slane %v984, 2
          %v1173 = vrot.slane %v987, 2
          %v1176 = vadd.f32 %v995, %v1172
          %v1177 = vadd.f32 %v996, %v1173
          %v1178 = vrot.slane %v984, 3
          %v1179 = vrot.slane %v987, 3
          %v1182 = vadd.f32 %v1176, %v1178
          %v1183 = vadd.f32 %v1177, %v1179
          %v1184 = vrot.slane %v984, 4
          %v1185 = vrot.slane %v987, 4
          %v1188 = vadd.f32 %v1182, %v1184
          %v1189 = vadd.f32 %v1183, %v1185
          %v1190 = vmul.f32 %v1188, 0.04
          %v1191 = vmul.f32 %v1189, 0.04
          %v1194 = vrot.slane %v1190, 6
          %v1195 = vrot.slane %v1191, 5
          %v1196 = vsel %vm518, %v1195, %v1194
          %v1197 = vsel %vm520, %v1196, 0
          %1199 = vmatprep.subr.mxu0 0.0
          %1200 = vmatpush1.msra.mxu0 %v455
          %1201 = vmatprep.subr.mxu0 0.0
          %1202 = vmatpush1.msra.mxu0 0.0
          %1203 = vmatprep.subr.mxu0 0.0
          %1204 = vmatpush1.msra.mxu0 0.0
          %1205 = vmatprep.subr.mxu0 0.0
          %1206 = vmatpush1.msra.mxu0 0.0
          %1207 = vmatprep.subr.mxu0 0.0
          %1208 = vmatpush1.msra.mxu0 0.0
          %1209 = vmatprep.subr.mxu0 0.0
          %1210 = vmatpush1.msra.mxu0 0.0
          %1211 = vmatprep.subr.mxu0 0.0
          %1212 = vmatpush1.msra.mxu0 0.0
          %1213 = vmatprep.subr.mxu0 0.0
          %1214 = vmatpush1.msra.mxu0 0.0
          %1215 = vmatprep.subr.mxu0 0.0
          %1216 = vmatpush1.msra.mxu0 0.0
          %1217 = vmatprep.subr.mxu0 0.0
          %1218 = vmatpush1.msra.mxu0 0.0
          %1219 = vmatprep.subr.mxu0 0.0
          %1220 = vmatpush1.msra.mxu0 0.0
          %1221 = vmatprep.subr.mxu0 0.0
          %1222 = vmatpush1.msra.mxu0 0.0
          %1223 = vmatprep.subr.mxu0 0.0
          %1224 = vmatpush1.msra.mxu0 0.0
          %1225 = vmatprep.subr.mxu0 0.0
          %1226 = vmatpush1.msra.mxu0 0.0
          %1227 = vmatprep.subr.mxu0 0.0
          %1228 = vmatpush1.msra.mxu0 0.0
          %1229 = vmatprep.subr.mxu0 0.0
          %1230 = vmatpush1.msra.mxu0 0.0
          %1231 = vmatprep.subr.mxu0 0.0
          %1232 = vmatpush1.msra.mxu0 0.0
          %1233 = vmatprep.subr.mxu0 0.0
          %1234 = vmatpush1.msra.mxu0 0.0
          %1235 = vmatprep.subr.mxu0 0.0
          %1236 = vmatpush1.msra.mxu0 0.0
          %1237 = vmatprep.subr.mxu0 0.0
          %1238 = vmatpush1.msra.mxu0 0.0
          %1239 = vmatprep.subr.mxu0 0.0
          %1240 = vmatpush1.msra.mxu0 0.0
          %1241 = vmatprep.subr.mxu0 0.0
          %1242 = vmatpush1.msra.mxu0 0.0
          %1243 = vmatprep.subr.mxu0 0.0
          %1244 = vmatpush1.msra.mxu0 0.0
          %1245 = vmatprep.subr.mxu0 0.0
          %1246 = vmatpush1.msra.mxu0 0.0
          %1247 = vmatprep.subr.mxu0 0.0
          %1248 = vmatpush1.msra.mxu0 0.0
          %1249 = vmatprep.subr.mxu0 0.0
          %1250 = vmatpush1.msra.mxu0 0.0
          %1251 = vmatprep.subr.mxu0 0.0
          %1252 = vmatpush1.msra.mxu0 0.0
          %1253 = vmatprep.subr.mxu0 0.0
          %1254 = vmatpush1.msra.mxu0 0.0
          %1255 = vmatprep.subr.mxu0 0.0
          %1256 = vmatpush1.msra.mxu0 0.0
          %1257 = vmatprep.subr.mxu0 0.0
          %1258 = vmatpush1.msra.mxu0 0.0
          %1259 = vmatprep.subr.mxu0 0.0
          %1260 = vmatpush1.msra.mxu0 0.0
          %1261 = vmatprep.subr.mxu0 0.0
          %1262 = vmatpush1.msra.mxu0 0.0
          %1263 = vmatprep.mubr.f32.mxu0 0.0
          %1264 = vmatmul.mubr.f32.gmra.mrb[0].mxu0 %v1197
          %v1265 = vpop.f32.mrb[0].mxu0
          %v1266 = vadd.f32 %v513, %v1265
          %v1267 = vpop.f32.mrb[0].mxu0
          %1268 = vdwg.mxu0
          %v1269 = vmax.f32 %v1266, 0.0
          %v1270 = vrot.slane %v984, 1
          %v1271 = vrot.slane %v987, 1
          %v1274 = vadd.f32 %v984, %v1270
          %v1275 = vadd.f32 %v987, %v1271
          %v1276 = vadd.f32 %v1274, %v1172
          %v1277 = vadd.f32 %v1275, %v1173
          %v1278 = vadd.f32 %v1276, %v1178
          %v1279 = vadd.f32 %v1277, %v1179
          %v1280 = vadd.f32 %v1278, %v1184
          %v1281 = vadd.f32 %v1279, %v1185
          %v1282 = vmul.f32 %v1280, 0.04
          %v1283 = vmul.f32 %v1281, 0.04
          %v1286 = vrot.slane %v1282, 1
          %v1287 = vsel %vm518, %v1283, %v1286
          %v1288 = vsel %vm520, %v1287, 0
          %1290 = vmatprep.subr.mxu0 0.0
          %1291 = vmatpush1.msra.mxu0 %v455
          %1292 = vmatprep.subr.mxu0 0.0
          %1293 = vmatpush1.msra.mxu0 0.0
          %1294 = vmatprep.subr.mxu0 0.0
          %1295 = vmatpush1.msra.mxu0 0.0
          %1296 = vmatprep.subr.mxu0 0.0
          %1297 = vmatpush1.msra.mxu0 0.0
          %1298 = vmatprep.subr.mxu0 0.0
          %1299 = vmatpush1.msra.mxu0 0.0
          %1300 = vmatprep.subr.mxu0 0.0
          %1301 = vmatpush1.msra.mxu0 0.0
          %1302 = vmatprep.subr.mxu0 0.0
          %1303 = vmatpush1.msra.mxu0 0.0
          %1304 = vmatprep.subr.mxu0 0.0
          %1305 = vmatpush1.msra.mxu0 0.0
          %1306 = vmatprep.subr.mxu0 0.0
          %1307 = vmatpush1.msra.mxu0 0.0
          %1308 = vmatprep.subr.mxu0 0.0
          %1309 = vmatpush1.msra.mxu0 0.0
          %1310 = vmatprep.subr.mxu0 0.0
          %1311 = vmatpush1.msra.mxu0 0.0
          %1312 = vmatprep.subr.mxu0 0.0
          %1313 = vmatpush1.msra.mxu0 0.0
          %1314 = vmatprep.subr.mxu0 0.0
          %1315 = vmatpush1.msra.mxu0 0.0
          %1316 = vmatprep.subr.mxu0 0.0
          %1317 = vmatpush1.msra.mxu0 0.0
          %1318 = vmatprep.subr.mxu0 0.0
          %1319 = vmatpush1.msra.mxu0 0.0
          %1320 = vmatprep.subr.mxu0 0.0
          %1321 = vmatpush1.msra.mxu0 0.0
          %1322 = vmatprep.subr.mxu0 0.0
          %1323 = vmatpush1.msra.mxu0 0.0
          %1324 = vmatprep.subr.mxu0 0.0
          %1325 = vmatpush1.msra.mxu0 0.0
          %1326 = vmatprep.subr.mxu0 0.0
          %1327 = vmatpush1.msra.mxu0 0.0
          %1328 = vmatprep.subr.mxu0 0.0
          %1329 = vmatpush1.msra.mxu0 0.0
          %1330 = vmatprep.subr.mxu0 0.0
          %1331 = vmatpush1.msra.mxu0 0.0
          %1332 = vmatprep.subr.mxu0 0.0
          %1333 = vmatpush1.msra.mxu0 0.0
          %1334 = vmatprep.subr.mxu0 0.0
          %1335 = vmatpush1.msra.mxu0 0.0
          %1336 = vmatprep.subr.mxu0 0.0
          %1337 = vmatpush1.msra.mxu0 0.0
          %1338 = vmatprep.subr.mxu0 0.0
          %1339 = vmatpush1.msra.mxu0 0.0
          %1340 = vmatprep.subr.mxu0 0.0
          %1341 = vmatpush1.msra.mxu0 0.0
          %1342 = vmatprep.subr.mxu0 0.0
          %1343 = vmatpush1.msra.mxu0 0.0
          %1344 = vmatprep.subr.mxu0 0.0
          %1345 = vmatpush1.msra.mxu0 0.0
          %1346 = vmatprep.subr.mxu0 0.0
          %1347 = vmatpush1.msra.mxu0 0.0
          %1348 = vmatprep.subr.mxu0 0.0
          %1349 = vmatpush1.msra.mxu0 0.0
          %1350 = vmatprep.subr.mxu0 0.0
          %1351 = vmatpush1.msra.mxu0 0.0
          %1352 = vmatprep.subr.mxu0 0.0
          %1353 = vmatpush1.msra.mxu0 0.0
          %1354 = vmatprep.mubr.f32.mxu0 0.0
          %1355 = vmatmul.mubr.f32.gmra.mrb[0].mxu0 %v1288
          %v1356 = vpop.f32.mrb[0].mxu0
          %v1357 = vadd.f32 %v513, %v1356
          %v1358 = vpop.f32.mrb[0].mxu0
          %1359 = vdwg.mxu0
          %v1360 = vmax.f32 %v1357, 0.0
          %v1363 = vrot.slane %v985, 4
          %v1364 = vrot.slane %v988, 4
          %v1367 = vadd.f32 %v1278, %v1363
          %v1368 = vadd.f32 %v1279, %v1364
          %v1369 = vmul.f32 %v1367, 0.04
          %v1370 = vmul.f32 %v1368, 0.04
          %v1373 = vrot.slane %v1369, 4
          %v1374 = vrot.slane %v1370, 3
          %v1375 = vsel %vm518, %v1374, %v1373
          %v1376 = vsel %vm520, %v1375, 0
          %1378 = vmatprep.subr.mxu0 0.0
          %1379 = vmatpush1.msra.mxu0 %v455
          %1380 = vmatprep.subr.mxu0 0.0
          %1381 = vmatpush1.msra.mxu0 0.0
          %1382 = vmatprep.subr.mxu0 0.0
          %1383 = vmatpush1.msra.mxu0 0.0
          %1384 = vmatprep.subr.mxu0 0.0
          %1385 = vmatpush1.msra.mxu0 0.0
          %1386 = vmatprep.subr.mxu0 0.0
          %1387 = vmatpush1.msra.mxu0 0.0
          %1388 = vmatprep.subr.mxu0 0.0
          %1389 = vmatpush1.msra.mxu0 0.0
          %1390 = vmatprep.subr.mxu0 0.0
          %1391 = vmatpush1.msra.mxu0 0.0
          %1392 = vmatprep.subr.mxu0 0.0
          %1393 = vmatpush1.msra.mxu0 0.0
          %1394 = vmatprep.subr.mxu0 0.0
          %1395 = vmatpush1.msra.mxu0 0.0
          %1396 = vmatprep.subr.mxu0 0.0
          %1397 = vmatpush1.msra.mxu0 0.0
          %1398 = vmatprep.subr.mxu0 0.0
          %1399 = vmatpush1.msra.mxu0 0.0
          %1400 = vmatprep.subr.mxu0 0.0
          %1401 = vmatpush1.msra.mxu0 0.0
          %1402 = vmatprep.subr.mxu0 0.0
          %1403 = vmatpush1.msra.mxu0 0.0
          %1404 = vmatprep.subr.mxu0 0.0
          %1405 = vmatpush1.msra.mxu0 0.0
          %1406 = vmatprep.subr.mxu0 0.0
          %1407 = vmatpush1.msra.mxu0 0.0
          %1408 = vmatprep.subr.mxu0 0.0
          %1409 = vmatpush1.msra.mxu0 0.0
          %1410 = vmatprep.subr.mxu0 0.0
          %1411 = vmatpush1.msra.mxu0 0.0
          %1412 = vmatprep.subr.mxu0 0.0
          %1413 = vmatpush1.msra.mxu0 0.0
          %1414 = vmatprep.subr.mxu0 0.0
          %1415 = vmatpush1.msra.mxu0 0.0
          %1416 = vmatprep.subr.mxu0 0.0
          %1417 = vmatpush1.msra.mxu0 0.0
          %1418 = vmatprep.subr.mxu0 0.0
          %1419 = vmatpush1.msra.mxu0 0.0
          %1420 = vmatprep.subr.mxu0 0.0
          %1421 = vmatpush1.msra.mxu0 0.0
          %1422 = vmatprep.subr.mxu0 0.0
          %1423 = vmatpush1.msra.mxu0 0.0
          %1424 = vmatprep.subr.mxu0 0.0
          %1425 = vmatpush1.msra.mxu0 0.0
          %1426 = vmatprep.subr.mxu0 0.0
          %1427 = vmatpush1.msra.mxu0 0.0
          %1428 = vmatprep.subr.mxu0 0.0
          %1429 = vmatpush1.msra.mxu0 0.0
          %1430 = vmatprep.subr.mxu0 0.0
          %1431 = vmatpush1.msra.mxu0 0.0
          %1432 = vmatprep.subr.mxu0 0.0
          %1433 = vmatpush1.msra.mxu0 0.0
          %1434 = vmatprep.subr.mxu0 0.0
          %1435 = vmatpush1.msra.mxu0 0.0
          %1436 = vmatprep.subr.mxu0 0.0
          %1437 = vmatpush1.msra.mxu0 0.0
          %1438 = vmatprep.subr.mxu0 0.0
          %1439 = vmatpush1.msra.mxu0 0.0
          %1440 = vmatprep.subr.mxu0 0.0
          %1441 = vmatpush1.msra.mxu0 0.0
          %1442 = vmatprep.mubr.f32.mxu0 0.0
          %1443 = vmatmul.mubr.f32.gmra.mrb[0].mxu0 %v1376
          %v1444 = vpop.f32.mrb[0].mxu0
          %v1445 = vadd.f32 %v513, %v1444
          %v1446 = vpop.f32.mrb[0].mxu0
          %1447 = vdwg.mxu0
          %v1448 = vmax.f32 %v1445, 0.0
          %v1449 = vsel %vm949, %v1093, 0.0
          %v1450 = vsel %vm949, %v1169, 0.0
          %v1451 = vsel %vm949, %v1269, 0.0
          %v1452 = vsel %vm949, %v1360, 0.0
          %v1453 = vsel %vm949, %v1448, 0.0
          %v1454 = vpack.c.bf16 0.0, %v1449
          %v1455 = vpack.c.bf16 0.0, %v1450
          %v1456 = vpack.c.bf16 0.0, %v1451
          %v1457 = vpack.c.bf16 0.0, %v1452
          %v1458 = vpack.c.bf16 0.0, %v1453
          %s1459 = scalar_lea.vmem [#allocation2], 40
          %1460 = vst [vmem:[%s1459] sm:$0xff] %v1454
          %1461 = vst [vmem:[%s1459 + $0x8] sm:$0xff] %v1455
          %1462 = vst [vmem:[%s1459 + $0x10] sm:$0xff] %v1456
          %1463 = vst [vmem:[%s1459 + $0x18] sm:$0xff] %v1457
          %1464 = vst [vmem:[%s1459 + $0x20] sm:$0xff] %v1458
          %v1465 = vadd.f32 %v371, %v374
          %v1466 = vadd.f32 %v372, %v375
          %v1467 = vadd.f32 %v373, %v376
          %v1468 = vadd.f32 %v422, %v425
          %v1469 = vadd.f32 %v423, %v426
          %v1470 = vadd.f32 %v424, %v427
          %v1471 = vadd.f32 %v1465, %v377
          %v1472 = vadd.f32 %v1466, %v378
          %v1473 = vadd.f32 %v1467, %v379
          %v1474 = vadd.f32 %v1468, %v428
          %v1475 = vadd.f32 %v1469, %v429
          %v1476 = vadd.f32 %v1470, %v430
          %v1477 = vadd.f32 %v1471, %v380
          %v1478 = vadd.f32 %v1472, %v381
          %v1479 = vadd.f32 %v1473, %v382
          %v1480 = vadd.f32 %v1474, %v431
          %v1481 = vadd.f32 %v1475, %v432
          %v1482 = vadd.f32 %v1476, %v433
          %v1483 = vadd.f32 %v1477, %v383
          %v1484 = vadd.f32 %v1478, %v384
          %v1485 = vadd.f32 %v1479, %v385
          %v1486 = vadd.f32 %v1480, %v434
          %v1487 = vadd.f32 %v1481, %v435
          %v1488 = vadd.f32 %v1482, %v436
          %v1491 = vrot.slane %v1483, 1
          %v1492 = vrot.slane %v1486, 1
          %v1495 = vadd.f32 %v1483, %v1491
          %v1496 = vadd.f32 %v1486, %v1492
          %v1497 = vrot.slane %v1483, 2
          %v1498 = vrot.slane %v1486, 2
          %v1501 = vadd.f32 %v1495, %v1497
          %v1502 = vadd.f32 %v1496, %v1498
          %v1503 = vrot.slane %v1483, 3
          %v1504 = vrot.slane %v1486, 3
          %v1507 = vadd.f32 %v1501, %v1503
          %v1508 = vadd.f32 %v1502, %v1504
          %v1509 = vrot.slane %v1483, 4
          %v1510 = vrot.slane %v1486, 4
          %v1513 = vadd.f32 %v1507, %v1509
          %v1514 = vadd.f32 %v1508, %v1510
          %v1515 = vmul.f32 %v1513, 0.04
          %v1516 = vmul.f32 %v1514, 0.04
          %v1519 = vrot.slane %v1516, 7
          %v1520 = vsel %vm518, %v1519, %v1515
          %v1521 = vsel %vm520, %v1520, 0
          %1523 = vmatprep.subr.mxu0 0.0
          %1524 = vmatpush1.msra.mxu0 %v455
          %1525 = vmatprep.subr.mxu0 0.0
          %1526 = vmatpush1.msra.mxu0 0.0
          %1527 = vmatprep.subr.mxu0 0.0
          %1528 = vmatpush1.msra.mxu0 0.0
          %1529 = vmatprep.subr.mxu0 0.0
          %1530 = vmatpush1.msra.mxu0 0.0
          %1531 = vmatprep.subr.mxu0 0.0
          %1532 = vmatpush1.msra.mxu0 0.0
          %1533 = vmatprep.subr.mxu0 0.0
          %1534 = vmatpush1.msra.mxu0 0.0
          %1535 = vmatprep.subr.mxu0 0.0
          %1536 = vmatpush1.msra.mxu0 0.0
          %1537 = vmatprep.subr.mxu0 0.0
          %1538 = vmatpush1.msra.mxu0 0.0
          %1539 = vmatprep.subr.mxu0 0.0
          %1540 = vmatpush1.msra.mxu0 0.0
          %1541 = vmatprep.subr.mxu0 0.0
          %1542 = vmatpush1.msra.mxu0 0.0
          %1543 = vmatprep.subr.mxu0 0.0
          %1544 = vmatpush1.msra.mxu0 0.0
          %1545 = vmatprep.subr.mxu0 0.0
          %1546 = vmatpush1.msra.mxu0 0.0
          %1547 = vmatprep.subr.mxu0 0.0
          %1548 = vmatpush1.msra.mxu0 0.0
          %1549 = vmatprep.subr.mxu0 0.0
          %1550 = vmatpush1.msra.mxu0 0.0
          %1551 = vmatprep.subr.mxu0 0.0
          %1552 = vmatpush1.msra.mxu0 0.0
          %1553 = vmatprep.subr.mxu0 0.0
          %1554 = vmatpush1.msra.mxu0 0.0
          %1555 = vmatprep.subr.mxu0 0.0
          %1556 = vmatpush1.msra.mxu0 0.0
          %1557 = vmatprep.subr.mxu0 0.0
          %1558 = vmatpush1.msra.mxu0 0.0
          %1559 = vmatprep.subr.mxu0 0.0
          %1560 = vmatpush1.msra.mxu0 0.0
          %1561 = vmatprep.subr.mxu0 0.0
          %1562 = vmatpush1.msra.mxu0 0.0
          %1563 = vmatprep.subr.mxu0 0.0
          %1564 = vmatpush1.msra.mxu0 0.0
          %1565 = vmatprep.subr.mxu0 0.0
          %1566 = vmatpush1.msra.mxu0 0.0
          %1567 = vmatprep.subr.mxu0 0.0
          %1568 = vmatpush1.msra.mxu0 0.0
          %1569 = vmatprep.subr.mxu0 0.0
          %1570 = vmatpush1.msra.mxu0 0.0
          %1571 = vmatprep.subr.mxu0 0.0
          %1572 = vmatpush1.msra.mxu0 0.0
          %1573 = vmatprep.subr.mxu0 0.0
          %1574 = vmatpush1.msra.mxu0 0.0
          %1575 = vmatprep.subr.mxu0 0.0
          %1576 = vmatpush1.msra.mxu0 0.0
          %1577 = vmatprep.subr.mxu0 0.0
          %1578 = vmatpush1.msra.mxu0 0.0
          %1579 = vmatprep.subr.mxu0 0.0
          %1580 = vmatpush1.msra.mxu0 0.0
          %1581 = vmatprep.subr.mxu0 0.0
          %1582 = vmatpush1.msra.mxu0 0.0
          %1583 = vmatprep.subr.mxu0 0.0
          %1584 = vmatpush1.msra.mxu0 0.0
          %1585 = vmatprep.subr.mxu0 0.0
          %1586 = vmatpush1.msra.mxu0 0.0
          %1587 = vmatprep.mubr.f32.mxu0 0.0
          %1588 = vmatmul.mubr.f32.gmra.mrb[0].mxu0 %v1521
          %v1589 = vpop.f32.mrb[0].mxu0
          %v1590 = vadd.f32 %v513, %v1589
          %v1591 = vpop.f32.mrb[0].mxu0
          %1592 = vdwg.mxu0
          %v1593 = vmax.f32 %v1590, 0.0
          %v1594 = vrot.slane %v1515, 3
          %v1595 = vrot.slane %v1516, 2
          %v1596 = vsel %vm518, %v1595, %v1594
          %v1597 = vsel %vm520, %v1596, 0
          %1599 = vmatprep.subr.mxu0 0.0
          %1600 = vmatpush1.msra.mxu0 %v455
          %1601 = vmatprep.subr.mxu0 0.0
          %1602 = vmatpush1.msra.mxu0 0.0
          %1603 = vmatprep.subr.mxu0 0.0
          %1604 = vmatpush1.msra.mxu0 0.0
          %1605 = vmatprep.subr.mxu0 0.0
          %1606 = vmatpush1.msra.mxu0 0.0
          %1607 = vmatprep.subr.mxu0 0.0
          %1608 = vmatpush1.msra.mxu0 0.0
          %1609 = vmatprep.subr.mxu0 0.0
          %1610 = vmatpush1.msra.mxu0 0.0
          %1611 = vmatprep.subr.mxu0 0.0
          %1612 = vmatpush1.msra.mxu0 0.0
          %1613 = vmatprep.subr.mxu0 0.0
          %1614 = vmatpush1.msra.mxu0 0.0
          %1615 = vmatprep.subr.mxu0 0.0
          %1616 = vmatpush1.msra.mxu0 0.0
          %1617 = vmatprep.subr.mxu0 0.0
          %1618 = vmatpush1.msra.mxu0 0.0
          %1619 = vmatprep.subr.mxu0 0.0
          %1620 = vmatpush1.msra.mxu0 0.0
          %1621 = vmatprep.subr.mxu0 0.0
          %1622 = vmatpush1.msra.mxu0 0.0
          %1623 = vmatprep.subr.mxu0 0.0
          %1624 = vmatpush1.msra.mxu0 0.0
          %1625 = vmatprep.subr.mxu0 0.0
          %1626 = vmatpush1.msra.mxu0 0.0
          %1627 = vmatprep.subr.mxu0 0.0
          %1628 = vmatpush1.msra.mxu0 0.0
          %1629 = vmatprep.subr.mxu0 0.0
          %1630 = vmatpush1.msra.mxu0 0.0
          %1631 = vmatprep.subr.mxu0 0.0
          %1632 = vmatpush1.msra.mxu0 0.0
          %1633 = vmatprep.subr.mxu0 0.0
          %1634 = vmatpush1.msra.mxu0 0.0
          %1635 = vmatprep.subr.mxu0 0.0
          %1636 = vmatpush1.msra.mxu0 0.0
          %1637 = vmatprep.subr.mxu0 0.0
          %1638 = vmatpush1.msra.mxu0 0.0
          %1639 = vmatprep.subr.mxu0 0.0
          %1640 = vmatpush1.msra.mxu0 0.0
          %1641 = vmatprep.subr.mxu0 0.0
          %1642 = vmatpush1.msra.mxu0 0.0
          %1643 = vmatprep.subr.mxu0 0.0
          %1644 = vmatpush1.msra.mxu0 0.0
          %1645 = vmatprep.subr.mxu0 0.0
          %1646 = vmatpush1.msra.mxu0 0.0
          %1647 = vmatprep.subr.mxu0 0.0
          %1648 = vmatpush1.msra.mxu0 0.0
          %1649 = vmatprep.subr.mxu0 0.0
          %1650 = vmatpush1.msra.mxu0 0.0
          %1651 = vmatprep.subr.mxu0 0.0
          %1652 = vmatpush1.msra.mxu0 0.0
          %1653 = vmatprep.subr.mxu0 0.0
          %1654 = vmatpush1.msra.mxu0 0.0
          %1655 = vmatprep.subr.mxu0 0.0
          %1656 = vmatpush1.msra.mxu0 0.0
          %1657 = vmatprep.subr.mxu0 0.0
          %1658 = vmatpush1.msra.mxu0 0.0
          %1659 = vmatprep.subr.mxu0 0.0
          %1660 = vmatpush1.msra.mxu0 0.0
          %1661 = vmatprep.subr.mxu0 0.0
          %1662 = vmatpush1.msra.mxu0 0.0
          %1663 = vmatprep.mubr.f32.mxu0 0.0
          %1664 = vmatmul.mubr.f32.gmra.mrb[0].mxu0 %v1597
          %v1665 = vpop.f32.mrb[0].mxu0
          %v1666 = vadd.f32 %v513, %v1665
          %v1667 = vpop.f32.mrb[0].mxu0
          %1668 = vdwg.mxu0
          %v1669 = vmax.f32 %v1666, 0.0
          %v1672 = vrot.slane %v1484, 2
          %v1673 = vrot.slane %v1487, 2
          %v1676 = vadd.f32 %v1495, %v1672
          %v1677 = vadd.f32 %v1496, %v1673
          %v1678 = vrot.slane %v1484, 3
          %v1679 = vrot.slane %v1487, 3
          %v1682 = vadd.f32 %v1676, %v1678
          %v1683 = vadd.f32 %v1677, %v1679
          %v1684 = vrot.slane %v1484, 4
          %v1685 = vrot.slane %v1487, 4
          %v1688 = vadd.f32 %v1682, %v1684
          %v1689 = vadd.f32 %v1683, %v1685
          %v1690 = vmul.f32 %v1688, 0.04
          %v1691 = vmul.f32 %v1689, 0.04
          %v1694 = vrot.slane %v1690, 6
          %v1695 = vrot.slane %v1691, 5
          %v1696 = vsel %vm518, %v1695, %v1694
          %v1697 = vsel %vm520, %v1696, 0
          %1699 = vmatprep.subr.mxu0 0.0
          %1700 = vmatpush1.msra.mxu0 %v455
          %1701 = vmatprep.subr.mxu0 0.0
          %1702 = vmatpush1.msra.mxu0 0.0
          %1703 = vmatprep.subr.mxu0 0.0
          %1704 = vmatpush1.msra.mxu0 0.0
          %1705 = vmatprep.subr.mxu0 0.0
          %1706 = vmatpush1.msra.mxu0 0.0
          %1707 = vmatprep.subr.mxu0 0.0
          %1708 = vmatpush1.msra.mxu0 0.0
          %1709 = vmatprep.subr.mxu0 0.0
          %1710 = vmatpush1.msra.mxu0 0.0
          %1711 = vmatprep.subr.mxu0 0.0
          %1712 = vmatpush1.msra.mxu0 0.0
          %1713 = vmatprep.subr.mxu0 0.0
          %1714 = vmatpush1.msra.mxu0 0.0
          %1715 = vmatprep.subr.mxu0 0.0
          %1716 = vmatpush1.msra.mxu0 0.0
          %1717 = vmatprep.subr.mxu0 0.0
          %1718 = vmatpush1.msra.mxu0 0.0
          %1719 = vmatprep.subr.mxu0 0.0
          %1720 = vmatpush1.msra.mxu0 0.0
          %1721 = vmatprep.subr.mxu0 0.0
          %1722 = vmatpush1.msra.mxu0 0.0
          %1723 = vmatprep.subr.mxu0 0.0
          %1724 = vmatpush1.msra.mxu0 0.0
          %1725 = vmatprep.subr.mxu0 0.0
          %1726 = vmatpush1.msra.mxu0 0.0
          %1727 = vmatprep.subr.mxu0 0.0
          %1728 = vmatpush1.msra.mxu0 0.0
          %1729 = vmatprep.subr.mxu0 0.0
          %1730 = vmatpush1.msra.mxu0 0.0
          %1731 = vmatprep.subr.mxu0 0.0
          %1732 = vmatpush1.msra.mxu0 0.0
          %1733 = vmatprep.subr.mxu0 0.0
          %1734 = vmatpush1.msra.mxu0 0.0
          %1735 = vmatprep.subr.mxu0 0.0
          %1736 = vmatpush1.msra.mxu0 0.0
          %1737 = vmatprep.subr.mxu0 0.0
          %1738 = vmatpush1.msra.mxu0 0.0
          %1739 = vmatprep.subr.mxu0 0.0
          %1740 = vmatpush1.msra.mxu0 0.0
          %1741 = vmatprep.subr.mxu0 0.0
          %1742 = vmatpush1.msra.mxu0 0.0
          %1743 = vmatprep.subr.mxu0 0.0
          %1744 = vmatpush1.msra.mxu0 0.0
          %1745 = vmatprep.subr.mxu0 0.0
          %1746 = vmatpush1.msra.mxu0 0.0
          %1747 = vmatprep.subr.mxu0 0.0
          %1748 = vmatpush1.msra.mxu0 0.0
          %1749 = vmatprep.subr.mxu0 0.0
          %1750 = vmatpush1.msra.mxu0 0.0
          %1751 = vmatprep.subr.mxu0 0.0
          %1752 = vmatpush1.msra.mxu0 0.0
          %1753 = vmatprep.subr.mxu0 0.0
          %1754 = vmatpush1.msra.mxu0 0.0
          %1755 = vmatprep.subr.mxu0 0.0
          %1756 = vmatpush1.msra.mxu0 0.0
          %1757 = vmatprep.subr.mxu0 0.0
          %1758 = vmatpush1.msra.mxu0 0.0
          %1759 = vmatprep.subr.mxu0 0.0
          %1760 = vmatpush1.msra.mxu0 0.0
          %1761 = vmatprep.subr.mxu0 0.0
          %1762 = vmatpush1.msra.mxu0 0.0
          %1763 = vmatprep.mubr.f32.mxu0 0.0
          %1764 = vmatmul.mubr.f32.gmra.mrb[0].mxu0 %v1697
          %v1765 = vpop.f32.mrb[0].mxu0
          %v1766 = vadd.f32 %v513, %v1765
          %v1767 = vpop.f32.mrb[0].mxu0
          %1768 = vdwg.mxu0
          %v1769 = vmax.f32 %v1766, 0.0
          %v1770 = vrot.slane %v1484, 1
          %v1771 = vrot.slane %v1487, 1
          %v1774 = vadd.f32 %v1484, %v1770
          %v1775 = vadd.f32 %v1487, %v1771
          %v1776 = vadd.f32 %v1774, %v1672
          %v1777 = vadd.f32 %v1775, %v1673
          %v1778 = vadd.f32 %v1776, %v1678
          %v1779 = vadd.f32 %v1777, %v1679
          %v1780 = vadd.f32 %v1778, %v1684
          %v1781 = vadd.f32 %v1779, %v1685
          %v1782 = vmul.f32 %v1780, 0.04
          %v1783 = vmul.f32 %v1781, 0.04
          %v1786 = vrot.slane %v1782, 1
          %v1787 = vsel %vm518, %v1783, %v1786
          %v1788 = vsel %vm520, %v1787, 0
          %1790 = vmatprep.subr.mxu0 0.0
          %1791 = vmatpush1.msra.mxu0 %v455
          %1792 = vmatprep.subr.mxu0 0.0
          %1793 = vmatpush1.msra.mxu0 0.0
          %1794 = vmatprep.subr.mxu0 0.0
          %1795 = vmatpush1.msra.mxu0 0.0
          %1796 = vmatprep.subr.mxu0 0.0
          %1797 = vmatpush1.msra.mxu0 0.0
          %1798 = vmatprep.subr.mxu0 0.0
          %1799 = vmatpush1.msra.mxu0 0.0
          %1800 = vmatprep.subr.mxu0 0.0
          %1801 = vmatpush1.msra.mxu0 0.0
          %1802 = vmatprep.subr.mxu0 0.0
          %1803 = vmatpush1.msra.mxu0 0.0
          %1804 = vmatprep.subr.mxu0 0.0
          %1805 = vmatpush1.msra.mxu0 0.0
          %1806 = vmatprep.subr.mxu0 0.0
          %1807 = vmatpush1.msra.mxu0 0.0
          %1808 = vmatprep.subr.mxu0 0.0
          %1809 = vmatpush1.msra.mxu0 0.0
          %1810 = vmatprep.subr.mxu0 0.0
          %1811 = vmatpush1.msra.mxu0 0.0
          %1812 = vmatprep.subr.mxu0 0.0
          %1813 = vmatpush1.msra.mxu0 0.0
          %1814 = vmatprep.subr.mxu0 0.0
          %1815 = vmatpush1.msra.mxu0 0.0
          %1816 = vmatprep.subr.mxu0 0.0
          %1817 = vmatpush1.msra.mxu0 0.0
          %1818 = vmatprep.subr.mxu0 0.0
          %1819 = vmatpush1.msra.mxu0 0.0
          %1820 = vmatprep.subr.mxu0 0.0
          %1821 = vmatpush1.msra.mxu0 0.0
          %1822 = vmatprep.subr.mxu0 0.0
          %1823 = vmatpush1.msra.mxu0 0.0
          %1824 = vmatprep.subr.mxu0 0.0
          %1825 = vmatpush1.msra.mxu0 0.0
          %1826 = vmatprep.subr.mxu0 0.0
          %1827 = vmatpush1.msra.mxu0 0.0
          %1828 = vmatprep.subr.mxu0 0.0
          %1829 = vmatpush1.msra.mxu0 0.0
          %1830 = vmatprep.subr.mxu0 0.0
          %1831 = vmatpush1.msra.mxu0 0.0
          %1832 = vmatprep.subr.mxu0 0.0
          %1833 = vmatpush1.msra.mxu0 0.0
          %1834 = vmatprep.subr.mxu0 0.0
          %1835 = vmatpush1.msra.mxu0 0.0
          %1836 = vmatprep.subr.mxu0 0.0
          %1837 = vmatpush1.msra.mxu0 0.0
          %1838 = vmatprep.subr.mxu0 0.0
          %1839 = vmatpush1.msra.mxu0 0.0
          %1840 = vmatprep.subr.mxu0 0.0
          %1841 = vmatpush1.msra.mxu0 0.0
          %1842 = vmatprep.subr.mxu0 0.0
          %1843 = vmatpush1.msra.mxu0 0.0
          %1844 = vmatprep.subr.mxu0 0.0
          %1845 = vmatpush1.msra.mxu0 0.0
          %1846 = vmatprep.subr.mxu0 0.0
          %1847 = vmatpush1.msra.mxu0 0.0
          %1848 = vmatprep.subr.mxu0 0.0
          %1849 = vmatpush1.msra.mxu0 0.0
          %1850 = vmatprep.subr.mxu0 0.0
          %1851 = vmatpush1.msra.mxu0 0.0
          %1852 = vmatprep.subr.mxu0 0.0
          %1853 = vmatpush1.msra.mxu0 0.0
          %1854 = vmatprep.mubr.f32.mxu0 0.0
          %1855 = vmatmul.mubr.f32.gmra.mrb[0].mxu0 %v1788
          %v1856 = vpop.f32.mrb[0].mxu0
          %v1857 = vadd.f32 %v513, %v1856
          %v1858 = vpop.f32.mrb[0].mxu0
          %1859 = vdwg.mxu0
          %v1860 = vmax.f32 %v1857, 0.0
          %v1863 = vrot.slane %v1485, 4
          %v1864 = vrot.slane %v1488, 4
          %v1867 = vadd.f32 %v1778, %v1863
          %v1868 = vadd.f32 %v1779, %v1864
          %v1869 = vmul.f32 %v1867, 0.04
          %v1870 = vmul.f32 %v1868, 0.04
          %v1873 = vrot.slane %v1869, 4
          %v1874 = vrot.slane %v1870, 3
          %v1875 = vsel %vm518, %v1874, %v1873
          %v1876 = vsel %vm520, %v1875, 0
          %1878 = vmatprep.subr.mxu0 0.0
          %1879 = vmatpush1.msra.mxu0 %v455
          %1880 = vmatprep.subr.mxu0 0.0
          %1881 = vmatpush1.msra.mxu0 0.0
          %1882 = vmatprep.subr.mxu0 0.0
          %1883 = vmatpush1.msra.mxu0 0.0
          %1884 = vmatprep.subr.mxu0 0.0
          %1885 = vmatpush1.msra.mxu0 0.0
          %1886 = vmatprep.subr.mxu0 0.0
          %1887 = vmatpush1.msra.mxu0 0.0
          %1888 = vmatprep.subr.mxu0 0.0
          %1889 = vmatpush1.msra.mxu0 0.0
          %1890 = vmatprep.subr.mxu0 0.0
          %1891 = vmatpush1.msra.mxu0 0.0
          %1892 = vmatprep.subr.mxu0 0.0
          %1893 = vmatpush1.msra.mxu0 0.0
          %1894 = vmatprep.subr.mxu0 0.0
          %1895 = vmatpush1.msra.mxu0 0.0
          %1896 = vmatprep.subr.mxu0 0.0
          %1897 = vmatpush1.msra.mxu0 0.0
          %1898 = vmatprep.subr.mxu0 0.0
          %1899 = vmatpush1.msra.mxu0 0.0
          %1900 = vmatprep.subr.mxu0 0.0
          %1901 = vmatpush1.msra.mxu0 0.0
          %1902 = vmatprep.subr.mxu0 0.0
          %1903 = vmatpush1.msra.mxu0 0.0
          %1904 = vmatprep.subr.mxu0 0.0
          %1905 = vmatpush1.msra.mxu0 0.0
          %1906 = vmatprep.subr.mxu0 0.0
          %1907 = vmatpush1.msra.mxu0 0.0
          %1908 = vmatprep.subr.mxu0 0.0
          %1909 = vmatpush1.msra.mxu0 0.0
          %1910 = vmatprep.subr.mxu0 0.0
          %1911 = vmatpush1.msra.mxu0 0.0
          %1912 = vmatprep.subr.mxu0 0.0
          %1913 = vmatpush1.msra.mxu0 0.0
          %1914 = vmatprep.subr.mxu0 0.0
          %1915 = vmatpush1.msra.mxu0 0.0
          %1916 = vmatprep.subr.mxu0 0.0
          %1917 = vmatpush1.msra.mxu0 0.0
          %1918 = vmatprep.subr.mxu0 0.0
          %1919 = vmatpush1.msra.mxu0 0.0
          %1920 = vmatprep.subr.mxu0 0.0
          %1921 = vmatpush1.msra.mxu0 0.0
          %1922 = vmatprep.subr.mxu0 0.0
          %1923 = vmatpush1.msra.mxu0 0.0
          %1924 = vmatprep.subr.mxu0 0.0
          %1925 = vmatpush1.msra.mxu0 0.0
          %1926 = vmatprep.subr.mxu0 0.0
          %1927 = vmatpush1.msra.mxu0 0.0
          %1928 = vmatprep.subr.mxu0 0.0
          %1929 = vmatpush1.msra.mxu0 0.0
          %1930 = vmatprep.subr.mxu0 0.0
          %1931 = vmatpush1.msra.mxu0 0.0
          %1932 = vmatprep.subr.mxu0 0.0
          %1933 = vmatpush1.msra.mxu0 0.0
          %1934 = vmatprep.subr.mxu0 0.0
          %1935 = vmatpush1.msra.mxu0 0.0
          %1936 = vmatprep.subr.mxu0 0.0
          %1937 = vmatpush1.msra.mxu0 0.0
          %1938 = vmatprep.subr.mxu0 0.0
          %1939 = vmatpush1.msra.mxu0 0.0
          %1940 = vmatprep.subr.mxu0 0.0
          %1941 = vmatpush1.msra.mxu0 0.0
          %1942 = vmatprep.mubr.f32.mxu0 0.0
          %1943 = vmatmul.mubr.f32.gmra.mrb[0].mxu0 %v1876
          %v1944 = vpop.f32.mrb[0].mxu0
          %v1945 = vadd.f32 %v513, %v1944
          %v1946 = vpop.f32.mrb[0].mxu0
          %1947 = vdwg.mxu0
          %v1948 = vmax.f32 %v1945, 0.0
          %v1949 = vsel %vm949, %v1593, 0.0
          %v1950 = vsel %vm949, %v1669, 0.0
          %v1951 = vsel %vm949, %v1769, 0.0
          %v1952 = vsel %vm949, %v1860, 0.0
          %v1953 = vsel %vm949, %v1948, 0.0
          %v1954 = vpack.c.bf16 0.0, %v1949
          %v1955 = vpack.c.bf16 0.0, %v1950
          %v1956 = vpack.c.bf16 0.0, %v1951
          %v1957 = vpack.c.bf16 0.0, %v1952
          %v1958 = vpack.c.bf16 0.0, %v1953
          %s1959 = scalar_lea.vmem [#allocation2], 80
          %1960 = vst [vmem:[%s1959] sm:$0xff] %v1954
          %1961 = vst [vmem:[%s1959 + $0x8] sm:$0xff] %v1955
          %1962 = vst [vmem:[%s1959 + $0x10] sm:$0xff] %v1956
          %1963 = vst [vmem:[%s1959 + $0x18] sm:$0xff] %v1957
          %1964 = vst [vmem:[%s1959 + $0x20] sm:$0xff] %v1958
          %v1965 = vadd.f32 %v380, %v383
          %v1966 = vadd.f32 %v381, %v384
          %v1967 = vadd.f32 %v382, %v385
          %v1968 = vadd.f32 %v431, %v434
          %v1969 = vadd.f32 %v432, %v435
          %v1970 = vadd.f32 %v433, %v436
          %v1971 = vadd.f32 %v1965, %v386
          %v1972 = vadd.f32 %v1966, %v387
          %v1973 = vadd.f32 %v1967, %v388
          %v1974 = vadd.f32 %v1968, %v437
          %v1975 = vadd.f32 %v1969, %v438
          %v1976 = vadd.f32 %v1970, %v439
          %v1977 = vadd.f32 %v1971, %v389
          %v1978 = vadd.f32 %v1972, %v390
          %v1979 = vadd.f32 %v1973, %v391
          %v1980 = vadd.f32 %v1974, %v440
          %v1981 = vadd.f32 %v1975, %v441
          %v1982 = vadd.f32 %v1976, %v442
          %v1983 = vadd.f32 %v1977, %v392
          %v1984 = vadd.f32 %v1978, %v393
          %v1985 = vadd.f32 %v1979, %v394
          %v1986 = vadd.f32 %v1980, %v443
          %v1987 = vadd.f32 %v1981, %v444
          %v1988 = vadd.f32 %v1982, %v445
          %v1991 = vrot.slane %v1983, 1
          %v1992 = vrot.slane %v1986, 1
          %v1995 = vadd.f32 %v1983, %v1991
          %v1996 = vadd.f32 %v1986, %v1992
          %v1997 = vrot.slane %v1983, 2
          %v1998 = vrot.slane %v1986, 2
          %v2001 = vadd.f32 %v1995, %v1997
          %v2002 = vadd.f32 %v1996, %v1998
          %v2003 = vrot.slane %v1983, 3
          %v2004 = vrot.slane %v1986, 3
          %v2007 = vadd.f32 %v2001, %v2003
          %v2008 = vadd.f32 %v2002, %v2004
          %v2009 = vrot.slane %v1983, 4
          %v2010 = vrot.slane %v1986, 4
          %v2013 = vadd.f32 %v2007, %v2009
          %v2014 = vadd.f32 %v2008, %v2010
          %v2015 = vmul.f32 %v2013, 0.04
          %v2016 = vmul.f32 %v2014, 0.04
          %v2019 = vrot.slane %v2016, 7
          %v2020 = vsel %vm518, %v2019, %v2015
          %v2021 = vsel %vm520, %v2020, 0
          %2023 = vmatprep.subr.mxu0 0.0
          %2024 = vmatpush1.msra.mxu0 %v455
          %2025 = vmatprep.subr.mxu0 0.0
          %2026 = vmatpush1.msra.mxu0 0.0
          %2027 = vmatprep.subr.mxu0 0.0
          %2028 = vmatpush1.msra.mxu0 0.0
          %2029 = vmatprep.subr.mxu0 0.0
          %2030 = vmatpush1.msra.mxu0 0.0
          %2031 = vmatprep.subr.mxu0 0.0
          %2032 = vmatpush1.msra.mxu0 0.0
          %2033 = vmatprep.subr.mxu0 0.0
          %2034 = vmatpush1.msra.mxu0 0.0
          %2035 = vmatprep.subr.mxu0 0.0
          %2036 = vmatpush1.msra.mxu0 0.0
          %2037 = vmatprep.subr.mxu0 0.0
          %2038 = vmatpush1.msra.mxu0 0.0
          %2039 = vmatprep.subr.mxu0 0.0
          %2040 = vmatpush1.msra.mxu0 0.0
          %2041 = vmatprep.subr.mxu0 0.0
          %2042 = vmatpush1.msra.mxu0 0.0
          %2043 = vmatprep.subr.mxu0 0.0
          %2044 = vmatpush1.msra.mxu0 0.0
          %2045 = vmatprep.subr.mxu0 0.0
          %2046 = vmatpush1.msra.mxu0 0.0
          %2047 = vmatprep.subr.mxu0 0.0
          %2048 = vmatpush1.msra.mxu0 0.0
          %2049 = vmatprep.subr.mxu0 0.0
          %2050 = vmatpush1.msra.mxu0 0.0
          %2051 = vmatprep.subr.mxu0 0.0
          %2052 = vmatpush1.msra.mxu0 0.0
          %2053 = vmatprep.subr.mxu0 0.0
          %2054 = vmatpush1.msra.mxu0 0.0
          %2055 = vmatprep.subr.mxu0 0.0
          %2056 = vmatpush1.msra.mxu0 0.0
          %2057 = vmatprep.subr.mxu0 0.0
          %2058 = vmatpush1.msra.mxu0 0.0
          %2059 = vmatprep.subr.mxu0 0.0
          %2060 = vmatpush1.msra.mxu0 0.0
          %2061 = vmatprep.subr.mxu0 0.0
          %2062 = vmatpush1.msra.mxu0 0.0
          %2063 = vmatprep.subr.mxu0 0.0
          %2064 = vmatpush1.msra.mxu0 0.0
          %2065 = vmatprep.subr.mxu0 0.0
          %2066 = vmatpush1.msra.mxu0 0.0
          %2067 = vmatprep.subr.mxu0 0.0
          %2068 = vmatpush1.msra.mxu0 0.0
          %2069 = vmatprep.subr.mxu0 0.0
          %2070 = vmatpush1.msra.mxu0 0.0
          %2071 = vmatprep.subr.mxu0 0.0
          %2072 = vmatpush1.msra.mxu0 0.0
          %2073 = vmatprep.subr.mxu0 0.0
          %2074 = vmatpush1.msra.mxu0 0.0
          %2075 = vmatprep.subr.mxu0 0.0
          %2076 = vmatpush1.msra.mxu0 0.0
          %2077 = vmatprep.subr.mxu0 0.0
          %2078 = vmatpush1.msra.mxu0 0.0
          %2079 = vmatprep.subr.mxu0 0.0
          %2080 = vmatpush1.msra.mxu0 0.0
          %2081 = vmatprep.subr.mxu0 0.0
          %2082 = vmatpush1.msra.mxu0 0.0
          %2083 = vmatprep.subr.mxu0 0.0
          %2084 = vmatpush1.msra.mxu0 0.0
          %2085 = vmatprep.subr.mxu0 0.0
          %2086 = vmatpush1.msra.mxu0 0.0
          %2087 = vmatprep.mubr.f32.mxu0 0.0
          %2088 = vmatmul.mubr.f32.gmra.mrb[0].mxu0 %v2021
          %v2089 = vpop.f32.mrb[0].mxu0
          %v2090 = vadd.f32 %v513, %v2089
          %v2091 = vpop.f32.mrb[0].mxu0
          %2092 = vdwg.mxu0
          %v2093 = vmax.f32 %v2090, 0.0
          %v2094 = vrot.slane %v2015, 3
          %v2095 = vrot.slane %v2016, 2
          %v2096 = vsel %vm518, %v2095, %v2094
          %v2097 = vsel %vm520, %v2096, 0
          %2099 = vmatprep.subr.mxu0 0.0
          %2100 = vmatpush1.msra.mxu0 %v455
          %2101 = vmatprep.subr.mxu0 0.0
          %2102 = vmatpush1.msra.mxu0 0.0
          %2103 = vmatprep.subr.mxu0 0.0
          %2104 = vmatpush1.msra.mxu0 0.0
          %2105 = vmatprep.subr.mxu0 0.0
          %2106 = vmatpush1.msra.mxu0 0.0
          %2107 = vmatprep.subr.mxu0 0.0
          %2108 = vmatpush1.msra.mxu0 0.0
          %2109 = vmatprep.subr.mxu0 0.0
          %2110 = vmatpush1.msra.mxu0 0.0
          %2111 = vmatprep.subr.mxu0 0.0
          %2112 = vmatpush1.msra.mxu0 0.0
          %2113 = vmatprep.subr.mxu0 0.0
          %2114 = vmatpush1.msra.mxu0 0.0
          %2115 = vmatprep.subr.mxu0 0.0
          %2116 = vmatpush1.msra.mxu0 0.0
          %2117 = vmatprep.subr.mxu0 0.0
          %2118 = vmatpush1.msra.mxu0 0.0
          %2119 = vmatprep.subr.mxu0 0.0
          %2120 = vmatpush1.msra.mxu0 0.0
          %2121 = vmatprep.subr.mxu0 0.0
          %2122 = vmatpush1.msra.mxu0 0.0
          %2123 = vmatprep.subr.mxu0 0.0
          %2124 = vmatpush1.msra.mxu0 0.0
          %2125 = vmatprep.subr.mxu0 0.0
          %2126 = vmatpush1.msra.mxu0 0.0
          %2127 = vmatprep.subr.mxu0 0.0
          %2128 = vmatpush1.msra.mxu0 0.0
          %2129 = vmatprep.subr.mxu0 0.0
          %2130 = vmatpush1.msra.mxu0 0.0
          %2131 = vmatprep.subr.mxu0 0.0
          %2132 = vmatpush1.msra.mxu0 0.0
          %2133 = vmatprep.subr.mxu0 0.0
          %2134 = vmatpush1.msra.mxu0 0.0
          %2135 = vmatprep.subr.mxu0 0.0
          %2136 = vmatpush1.msra.mxu0 0.0
          %2137 = vmatprep.subr.mxu0 0.0
          %2138 = vmatpush1.msra.mxu0 0.0
          %2139 = vmatprep.subr.mxu0 0.0
          %2140 = vmatpush1.msra.mxu0 0.0
          %2141 = vmatprep.subr.mxu0 0.0
          %2142 = vmatpush1.msra.mxu0 0.0
          %2143 = vmatprep.subr.mxu0 0.0
          %2144 = vmatpush1.msra.mxu0 0.0
          %2145 = vmatprep.subr.mxu0 0.0
          %2146 = vmatpush1.msra.mxu0 0.0
          %2147 = vmatprep.subr.mxu0 0.0
          %2148 = vmatpush1.msra.mxu0 0.0
          %2149 = vmatprep.subr.mxu0 0.0
          %2150 = vmatpush1.msra.mxu0 0.0
          %2151 = vmatprep.subr.mxu0 0.0
          %2152 = vmatpush1.msra.mxu0 0.0
          %2153 = vmatprep.subr.mxu0 0.0
          %2154 = vmatpush1.msra.mxu0 0.0
          %2155 = vmatprep.subr.mxu0 0.0
          %2156 = vmatpush1.msra.mxu0 0.0
          %2157 = vmatprep.subr.mxu0 0.0
          %2158 = vmatpush1.msra.mxu0 0.0
          %2159 = vmatprep.subr.mxu0 0.0
          %2160 = vmatpush1.msra.mxu0 0.0
          %2161 = vmatprep.subr.mxu0 0.0
          %2162 = vmatpush1.msra.mxu0 0.0
          %2163 = vmatprep.mubr.f32.mxu0 0.0
          %2164 = vmatmul.mubr.f32.gmra.mrb[0].mxu0 %v2097
          %v2165 = vpop.f32.mrb[0].mxu0
          %v2166 = vadd.f32 %v513, %v2165
          %v2167 = vpop.f32.mrb[0].mxu0
          %2168 = vdwg.mxu0
          %v2169 = vmax.f32 %v2166, 0.0
          %v2172 = vrot.slane %v1984, 2
          %v2173 = vrot.slane %v1987, 2
          %v2176 = vadd.f32 %v1995, %v2172
          %v2177 = vadd.f32 %v1996, %v2173
          %v2178 = vrot.slane %v1984, 3
          %v2179 = vrot.slane %v1987, 3
          %v2182 = vadd.f32 %v2176, %v2178
          %v2183 = vadd.f32 %v2177, %v2179
          %v2184 = vrot.slane %v1984, 4
          %v2185 = vrot.slane %v1987, 4
          %v2188 = vadd.f32 %v2182, %v2184
          %v2189 = vadd.f32 %v2183, %v2185
          %v2190 = vmul.f32 %v2188, 0.04
          %v2191 = vmul.f32 %v2189, 0.04
          %v2194 = vrot.slane %v2190, 6
          %v2195 = vrot.slane %v2191, 5
          %v2196 = vsel %vm518, %v2195, %v2194
          %v2197 = vsel %vm520, %v2196, 0
          %2199 = vmatprep.subr.mxu0 0.0
          %2200 = vmatpush1.msra.mxu0 %v455
          %2201 = vmatprep.subr.mxu0 0.0
          %2202 = vmatpush1.msra.mxu0 0.0
          %2203 = vmatprep.subr.mxu0 0.0
          %2204 = vmatpush1.msra.mxu0 0.0
          %2205 = vmatprep.subr.mxu0 0.0
          %2206 = vmatpush1.msra.mxu0 0.0
          %2207 = vmatprep.subr.mxu0 0.0
          %2208 = vmatpush1.msra.mxu0 0.0
          %2209 = vmatprep.subr.mxu0 0.0
          %2210 = vmatpush1.msra.mxu0 0.0
          %2211 = vmatprep.subr.mxu0 0.0
          %2212 = vmatpush1.msra.mxu0 0.0
          %2213 = vmatprep.subr.mxu0 0.0
          %2214 = vmatpush1.msra.mxu0 0.0
          %2215 = vmatprep.subr.mxu0 0.0
          %2216 = vmatpush1.msra.mxu0 0.0
          %2217 = vmatprep.subr.mxu0 0.0
          %2218 = vmatpush1.msra.mxu0 0.0
          %2219 = vmatprep.subr.mxu0 0.0
          %2220 = vmatpush1.msra.mxu0 0.0
          %2221 = vmatprep.subr.mxu0 0.0
          %2222 = vmatpush1.msra.mxu0 0.0
          %2223 = vmatprep.subr.mxu0 0.0
          %2224 = vmatpush1.msra.mxu0 0.0
          %2225 = vmatprep.subr.mxu0 0.0
          %2226 = vmatpush1.msra.mxu0 0.0
          %2227 = vmatprep.subr.mxu0 0.0
          %2228 = vmatpush1.msra.mxu0 0.0
          %2229 = vmatprep.subr.mxu0 0.0
          %2230 = vmatpush1.msra.mxu0 0.0
          %2231 = vmatprep.subr.mxu0 0.0
          %2232 = vmatpush1.msra.mxu0 0.0
          %2233 = vmatprep.subr.mxu0 0.0
          %2234 = vmatpush1.msra.mxu0 0.0
          %2235 = vmatprep.subr.mxu0 0.0
          %2236 = vmatpush1.msra.mxu0 0.0
          %2237 = vmatprep.subr.mxu0 0.0
          %2238 = vmatpush1.msra.mxu0 0.0
          %2239 = vmatprep.subr.mxu0 0.0
          %2240 = vmatpush1.msra.mxu0 0.0
          %2241 = vmatprep.subr.mxu0 0.0
          %2242 = vmatpush1.msra.mxu0 0.0
          %2243 = vmatprep.subr.mxu0 0.0
          %2244 = vmatpush1.msra.mxu0 0.0
          %2245 = vmatprep.subr.mxu0 0.0
          %2246 = vmatpush1.msra.mxu0 0.0
          %2247 = vmatprep.subr.mxu0 0.0
          %2248 = vmatpush1.msra.mxu0 0.0
          %2249 = vmatprep.subr.mxu0 0.0
          %2250 = vmatpush1.msra.mxu0 0.0
          %2251 = vmatprep.subr.mxu0 0.0
          %2252 = vmatpush1.msra.mxu0 0.0
          %2253 = vmatprep.subr.mxu0 0.0
          %2254 = vmatpush1.msra.mxu0 0.0
          %2255 = vmatprep.subr.mxu0 0.0
          %2256 = vmatpush1.msra.mxu0 0.0
          %2257 = vmatprep.subr.mxu0 0.0
          %2258 = vmatpush1.msra.mxu0 0.0
          %2259 = vmatprep.subr.mxu0 0.0
          %2260 = vmatpush1.msra.mxu0 0.0
          %2261 = vmatprep.subr.mxu0 0.0
          %2262 = vmatpush1.msra.mxu0 0.0
          %2263 = vmatprep.mubr.f32.mxu0 0.0
          %2264 = vmatmul.mubr.f32.gmra.mrb[0].mxu0 %v2197
          %v2265 = vpop.f32.mrb[0].mxu0
          %v2266 = vadd.f32 %v513, %v2265
          %v2267 = vpop.f32.mrb[0].mxu0
          %2268 = vdwg.mxu0
          %v2269 = vmax.f32 %v2266, 0.0
          %v2270 = vrot.slane %v1984, 1
          %v2271 = vrot.slane %v1987, 1
          %v2274 = vadd.f32 %v1984, %v2270
          %v2275 = vadd.f32 %v1987, %v2271
          %v2276 = vadd.f32 %v2274, %v2172
          %v2277 = vadd.f32 %v2275, %v2173
          %v2278 = vadd.f32 %v2276, %v2178
          %v2279 = vadd.f32 %v2277, %v2179
          %v2280 = vadd.f32 %v2278, %v2184
          %v2281 = vadd.f32 %v2279, %v2185
          %v2282 = vmul.f32 %v2280, 0.04
          %v2283 = vmul.f32 %v2281, 0.04
          %v2286 = vrot.slane %v2282, 1
          %v2287 = vsel %vm518, %v2283, %v2286
          %v2288 = vsel %vm520, %v2287, 0
          %2290 = vmatprep.subr.mxu0 0.0
          %2291 = vmatpush1.msra.mxu0 %v455
          %2292 = vmatprep.subr.mxu0 0.0
          %2293 = vmatpush1.msra.mxu0 0.0
          %2294 = vmatprep.subr.mxu0 0.0
          %2295 = vmatpush1.msra.mxu0 0.0
          %2296 = vmatprep.subr.mxu0 0.0
          %2297 = vmatpush1.msra.mxu0 0.0
          %2298 = vmatprep.subr.mxu0 0.0
          %2299 = vmatpush1.msra.mxu0 0.0
          %2300 = vmatprep.subr.mxu0 0.0
          %2301 = vmatpush1.msra.mxu0 0.0
          %2302 = vmatprep.subr.mxu0 0.0
          %2303 = vmatpush1.msra.mxu0 0.0
          %2304 = vmatprep.subr.mxu0 0.0
          %2305 = vmatpush1.msra.mxu0 0.0
          %2306 = vmatprep.subr.mxu0 0.0
          %2307 = vmatpush1.msra.mxu0 0.0
          %2308 = vmatprep.subr.mxu0 0.0
          %2309 = vmatpush1.msra.mxu0 0.0
          %2310 = vmatprep.subr.mxu0 0.0
          %2311 = vmatpush1.msra.mxu0 0.0
          %2312 = vmatprep.subr.mxu0 0.0
          %2313 = vmatpush1.msra.mxu0 0.0
          %2314 = vmatprep.subr.mxu0 0.0
          %2315 = vmatpush1.msra.mxu0 0.0
          %2316 = vmatprep.subr.mxu0 0.0
          %2317 = vmatpush1.msra.mxu0 0.0
          %2318 = vmatprep.subr.mxu0 0.0
          %2319 = vmatpush1.msra.mxu0 0.0
          %2320 = vmatprep.subr.mxu0 0.0
          %2321 = vmatpush1.msra.mxu0 0.0
          %2322 = vmatprep.subr.mxu0 0.0
          %2323 = vmatpush1.msra.mxu0 0.0
          %2324 = vmatprep.subr.mxu0 0.0
          %2325 = vmatpush1.msra.mxu0 0.0
          %2326 = vmatprep.subr.mxu0 0.0
          %2327 = vmatpush1.msra.mxu0 0.0
          %2328 = vmatprep.subr.mxu0 0.0
          %2329 = vmatpush1.msra.mxu0 0.0
          %2330 = vmatprep.subr.mxu0 0.0
          %2331 = vmatpush1.msra.mxu0 0.0
          %2332 = vmatprep.subr.mxu0 0.0
          %2333 = vmatpush1.msra.mxu0 0.0
          %2334 = vmatprep.subr.mxu0 0.0
          %2335 = vmatpush1.msra.mxu0 0.0
          %2336 = vmatprep.subr.mxu0 0.0
          %2337 = vmatpush1.msra.mxu0 0.0
          %2338 = vmatprep.subr.mxu0 0.0
          %2339 = vmatpush1.msra.mxu0 0.0
          %2340 = vmatprep.subr.mxu0 0.0
          %2341 = vmatpush1.msra.mxu0 0.0
          %2342 = vmatprep.subr.mxu0 0.0
          %2343 = vmatpush1.msra.mxu0 0.0
          %2344 = vmatprep.subr.mxu0 0.0
          %2345 = vmatpush1.msra.mxu0 0.0
          %2346 = vmatprep.subr.mxu0 0.0
          %2347 = vmatpush1.msra.mxu0 0.0
          %2348 = vmatprep.subr.mxu0 0.0
          %2349 = vmatpush1.msra.mxu0 0.0
          %2350 = vmatprep.subr.mxu0 0.0
          %2351 = vmatpush1.msra.mxu0 0.0
          %2352 = vmatprep.subr.mxu0 0.0
          %2353 = vmatpush1.msra.mxu0 0.0
          %2354 = vmatprep.mubr.f32.mxu0 0.0
          %2355 = vmatmul.mubr.f32.gmra.mrb[0].mxu0 %v2288
          %v2356 = vpop.f32.mrb[0].mxu0
          %v2357 = vadd.f32 %v513, %v2356
          %v2358 = vpop.f32.mrb[0].mxu0
          %2359 = vdwg.mxu0
          %v2360 = vmax.f32 %v2357, 0.0
          %v2363 = vrot.slane %v1985, 4
          %v2364 = vrot.slane %v1988, 4
          %v2367 = vadd.f32 %v2278, %v2363
          %v2368 = vadd.f32 %v2279, %v2364
          %v2369 = vmul.f32 %v2367, 0.04
          %v2370 = vmul.f32 %v2368, 0.04
          %v2373 = vrot.slane %v2369, 4
          %v2374 = vrot.slane %v2370, 3
          %v2375 = vsel %vm518, %v2374, %v2373
          %v2376 = vsel %vm520, %v2375, 0
          %2378 = vmatprep.subr.mxu0 0.0
          %2379 = vmatpush1.msra.mxu0 %v455
          %2380 = vmatprep.subr.mxu0 0.0
          %2381 = vmatpush1.msra.mxu0 0.0
          %2382 = vmatprep.subr.mxu0 0.0
          %2383 = vmatpush1.msra.mxu0 0.0
          %2384 = vmatprep.subr.mxu0 0.0
          %2385 = vmatpush1.msra.mxu0 0.0
          %2386 = vmatprep.subr.mxu0 0.0
          %2387 = vmatpush1.msra.mxu0 0.0
          %2388 = vmatprep.subr.mxu0 0.0
          %2389 = vmatpush1.msra.mxu0 0.0
          %2390 = vmatprep.subr.mxu0 0.0
          %2391 = vmatpush1.msra.mxu0 0.0
          %2392 = vmatprep.subr.mxu0 0.0
          %2393 = vmatpush1.msra.mxu0 0.0
          %2394 = vmatprep.subr.mxu0 0.0
          %2395 = vmatpush1.msra.mxu0 0.0
          %2396 = vmatprep.subr.mxu0 0.0
          %2397 = vmatpush1.msra.mxu0 0.0
          %2398 = vmatprep.subr.mxu0 0.0
          %2399 = vmatpush1.msra.mxu0 0.0
          %2400 = vmatprep.subr.mxu0 0.0
          %2401 = vmatpush1.msra.mxu0 0.0
          %2402 = vmatprep.subr.mxu0 0.0
          %2403 = vmatpush1.msra.mxu0 0.0
          %2404 = vmatprep.subr.mxu0 0.0
          %2405 = vmatpush1.msra.mxu0 0.0
          %2406 = vmatprep.subr.mxu0 0.0
          %2407 = vmatpush1.msra.mxu0 0.0
          %2408 = vmatprep.subr.mxu0 0.0
          %2409 = vmatpush1.msra.mxu0 0.0
          %2410 = vmatprep.subr.mxu0 0.0
          %2411 = vmatpush1.msra.mxu0 0.0
          %2412 = vmatprep.subr.mxu0 0.0
          %2413 = vmatpush1.msra.mxu0 0.0
          %2414 = vmatprep.subr.mxu0 0.0
          %2415 = vmatpush1.msra.mxu0 0.0
          %2416 = vmatprep.subr.mxu0 0.0
          %2417 = vmatpush1.msra.mxu0 0.0
          %2418 = vmatprep.subr.mxu0 0.0
          %2419 = vmatpush1.msra.mxu0 0.0
          %2420 = vmatprep.subr.mxu0 0.0
          %2421 = vmatpush1.msra.mxu0 0.0
          %2422 = vmatprep.subr.mxu0 0.0
          %2423 = vmatpush1.msra.mxu0 0.0
          %2424 = vmatprep.subr.mxu0 0.0
          %2425 = vmatpush1.msra.mxu0 0.0
          %2426 = vmatprep.subr.mxu0 0.0
          %2427 = vmatpush1.msra.mxu0 0.0
          %2428 = vmatprep.subr.mxu0 0.0
          %2429 = vmatpush1.msra.mxu0 0.0
          %2430 = vmatprep.subr.mxu0 0.0
          %2431 = vmatpush1.msra.mxu0 0.0
          %2432 = vmatprep.subr.mxu0 0.0
          %2433 = vmatpush1.msra.mxu0 0.0
          %2434 = vmatprep.subr.mxu0 0.0
          %2435 = vmatpush1.msra.mxu0 0.0
          %2436 = vmatprep.subr.mxu0 0.0
          %2437 = vmatpush1.msra.mxu0 0.0
          %2438 = vmatprep.subr.mxu0 0.0
          %2439 = vmatpush1.msra.mxu0 0.0
          %2440 = vmatprep.subr.mxu0 0.0
          %2441 = vmatpush1.msra.mxu0 0.0
          %2442 = vmatprep.mubr.f32.mxu0 0.0
          %2443 = vmatmul.mubr.f32.gmra.mrb[0].mxu0 %v2376
          %v2444 = vpop.f32.mrb[0].mxu0
          %v2445 = vadd.f32 %v513, %v2444
          %v2446 = vpop.f32.mrb[0].mxu0
          %2447 = vdwg.mxu0
          %v2448 = vmax.f32 %v2445, 0.0
          %v2449 = vsel %vm949, %v2093, 0.0
          %v2450 = vsel %vm949, %v2169, 0.0
          %v2451 = vsel %vm949, %v2269, 0.0
          %v2452 = vsel %vm949, %v2360, 0.0
          %v2453 = vsel %vm949, %v2448, 0.0
          %v2454 = vpack.c.bf16 0.0, %v2449
          %v2455 = vpack.c.bf16 0.0, %v2450
          %v2456 = vpack.c.bf16 0.0, %v2451
          %v2457 = vpack.c.bf16 0.0, %v2452
          %v2458 = vpack.c.bf16 0.0, %v2453
          %s2459 = scalar_lea.vmem [#allocation2], 120
          %2460 = vst [vmem:[%s2459] sm:$0xff] %v2454
          %2461 = vst [vmem:[%s2459 + $0x8] sm:$0xff] %v2455
          %2462 = vst [vmem:[%s2459 + $0x10] sm:$0xff] %v2456
          %2463 = vst [vmem:[%s2459 + $0x18] sm:$0xff] %v2457
          %2464 = vst [vmem:[%s2459 + $0x20] sm:$0xff] %v2458
          %v2465 = vadd.f32 %v389, %v392
          %v2466 = vadd.f32 %v390, %v393
          %v2467 = vadd.f32 %v391, %v394
          %v2468 = vadd.f32 %v440, %v443
          %v2469 = vadd.f32 %v441, %v444
          %v2470 = vadd.f32 %v442, %v445
          %v2471 = vadd.f32 %v2465, %v395
          %v2472 = vadd.f32 %v2466, %v396
          %v2473 = vadd.f32 %v2467, %v397
          %v2474 = vadd.f32 %v2468, %v446
          %v2475 = vadd.f32 %v2469, %v447
          %v2476 = vadd.f32 %v2470, %v448
          %v2477 = vadd.f32 %v2471, %v398
          %v2478 = vadd.f32 %v2472, %v399
          %v2479 = vadd.f32 %v2473, %v400
          %v2480 = vadd.f32 %v2474, %v449
          %v2481 = vadd.f32 %v2475, %v450
          %v2482 = vadd.f32 %v2476, %v451
          %v2483 = vadd.f32 %v2477, %v401
          %v2484 = vadd.f32 %v2478, %v402
          %v2485 = vadd.f32 %v2479, %v403
          %v2486 = vadd.f32 %v2480, %v452
          %v2487 = vadd.f32 %v2481, %v453
          %v2488 = vadd.f32 %v2482, %v454
          %v2491 = vrot.slane %v2483, 1
          %v2492 = vrot.slane %v2486, 1
          %v2495 = vadd.f32 %v2483, %v2491
          %v2496 = vadd.f32 %v2486, %v2492
          %v2497 = vrot.slane %v2483, 2
          %v2498 = vrot.slane %v2486, 2
          %v2501 = vadd.f32 %v2495, %v2497
          %v2502 = vadd.f32 %v2496, %v2498
          %v2503 = vrot.slane %v2483, 3
          %v2504 = vrot.slane %v2486, 3
          %v2507 = vadd.f32 %v2501, %v2503
          %v2508 = vadd.f32 %v2502, %v2504
          %v2509 = vrot.slane %v2483, 4
          %v2510 = vrot.slane %v2486, 4
          %v2513 = vadd.f32 %v2507, %v2509
          %v2514 = vadd.f32 %v2508, %v2510
          %v2515 = vmul.f32 %v2513, 0.04
          %v2516 = vmul.f32 %v2514, 0.04
          %v2519 = vrot.slane %v2516, 7
          %v2520 = vsel %vm518, %v2519, %v2515
          %v2521 = vsel %vm520, %v2520, 0
          %2523 = vmatprep.subr.mxu0 0.0
          %2524 = vmatpush1.msra.mxu0 %v455
          %2525 = vmatprep.subr.mxu0 0.0
          %2526 = vmatpush1.msra.mxu0 0.0
          %2527 = vmatprep.subr.mxu0 0.0
          %2528 = vmatpush1.msra.mxu0 0.0
          %2529 = vmatprep.subr.mxu0 0.0
          %2530 = vmatpush1.msra.mxu0 0.0
          %2531 = vmatprep.subr.mxu0 0.0
          %2532 = vmatpush1.msra.mxu0 0.0
          %2533 = vmatprep.subr.mxu0 0.0
          %2534 = vmatpush1.msra.mxu0 0.0
          %2535 = vmatprep.subr.mxu0 0.0
          %2536 = vmatpush1.msra.mxu0 0.0
          %2537 = vmatprep.subr.mxu0 0.0
          %2538 = vmatpush1.msra.mxu0 0.0
          %2539 = vmatprep.subr.mxu0 0.0
          %2540 = vmatpush1.msra.mxu0 0.0
          %2541 = vmatprep.subr.mxu0 0.0
          %2542 = vmatpush1.msra.mxu0 0.0
          %2543 = vmatprep.subr.mxu0 0.0
          %2544 = vmatpush1.msra.mxu0 0.0
          %2545 = vmatprep.subr.mxu0 0.0
          %2546 = vmatpush1.msra.mxu0 0.0
          %2547 = vmatprep.subr.mxu0 0.0
          %2548 = vmatpush1.msra.mxu0 0.0
          %2549 = vmatprep.subr.mxu0 0.0
          %2550 = vmatpush1.msra.mxu0 0.0
          %2551 = vmatprep.subr.mxu0 0.0
          %2552 = vmatpush1.msra.mxu0 0.0
          %2553 = vmatprep.subr.mxu0 0.0
          %2554 = vmatpush1.msra.mxu0 0.0
          %2555 = vmatprep.subr.mxu0 0.0
          %2556 = vmatpush1.msra.mxu0 0.0
          %2557 = vmatprep.subr.mxu0 0.0
          %2558 = vmatpush1.msra.mxu0 0.0
          %2559 = vmatprep.subr.mxu0 0.0
          %2560 = vmatpush1.msra.mxu0 0.0
          %2561 = vmatprep.subr.mxu0 0.0
          %2562 = vmatpush1.msra.mxu0 0.0
          %2563 = vmatprep.subr.mxu0 0.0
          %2564 = vmatpush1.msra.mxu0 0.0
          %2565 = vmatprep.subr.mxu0 0.0
          %2566 = vmatpush1.msra.mxu0 0.0
          %2567 = vmatprep.subr.mxu0 0.0
          %2568 = vmatpush1.msra.mxu0 0.0
          %2569 = vmatprep.subr.mxu0 0.0
          %2570 = vmatpush1.msra.mxu0 0.0
          %2571 = vmatprep.subr.mxu0 0.0
          %2572 = vmatpush1.msra.mxu0 0.0
          %2573 = vmatprep.subr.mxu0 0.0
          %2574 = vmatpush1.msra.mxu0 0.0
          %2575 = vmatprep.subr.mxu0 0.0
          %2576 = vmatpush1.msra.mxu0 0.0
          %2577 = vmatprep.subr.mxu0 0.0
          %2578 = vmatpush1.msra.mxu0 0.0
          %2579 = vmatprep.subr.mxu0 0.0
          %2580 = vmatpush1.msra.mxu0 0.0
          %2581 = vmatprep.subr.mxu0 0.0
          %2582 = vmatpush1.msra.mxu0 0.0
          %2583 = vmatprep.subr.mxu0 0.0
          %2584 = vmatpush1.msra.mxu0 0.0
          %2585 = vmatprep.subr.mxu0 0.0
          %2586 = vmatpush1.msra.mxu0 0.0
          %2587 = vmatprep.mubr.f32.mxu0 0.0
          %2588 = vmatmul.mubr.f32.gmra.mrb[0].mxu0 %v2521
          %v2589 = vpop.f32.mrb[0].mxu0
          %v2590 = vadd.f32 %v513, %v2589
          %v2591 = vpop.f32.mrb[0].mxu0
          %2592 = vdwg.mxu0
          %v2593 = vmax.f32 %v2590, 0.0
          %v2594 = vrot.slane %v2515, 3
          %v2595 = vrot.slane %v2516, 2
          %v2596 = vsel %vm518, %v2595, %v2594
          %v2597 = vsel %vm520, %v2596, 0
          %2599 = vmatprep.subr.mxu0 0.0
          %2600 = vmatpush1.msra.mxu0 %v455
          %2601 = vmatprep.subr.mxu0 0.0
          %2602 = vmatpush1.msra.mxu0 0.0
          %2603 = vmatprep.subr.mxu0 0.0
          %2604 = vmatpush1.msra.mxu0 0.0
          %2605 = vmatprep.subr.mxu0 0.0
          %2606 = vmatpush1.msra.mxu0 0.0
          %2607 = vmatprep.subr.mxu0 0.0
          %2608 = vmatpush1.msra.mxu0 0.0
          %2609 = vmatprep.subr.mxu0 0.0
          %2610 = vmatpush1.msra.mxu0 0.0
          %2611 = vmatprep.subr.mxu0 0.0
          %2612 = vmatpush1.msra.mxu0 0.0
          %2613 = vmatprep.subr.mxu0 0.0
          %2614 = vmatpush1.msra.mxu0 0.0
          %2615 = vmatprep.subr.mxu0 0.0
          %2616 = vmatpush1.msra.mxu0 0.0
          %2617 = vmatprep.subr.mxu0 0.0
          %2618 = vmatpush1.msra.mxu0 0.0
          %2619 = vmatprep.subr.mxu0 0.0
          %2620 = vmatpush1.msra.mxu0 0.0
          %2621 = vmatprep.subr.mxu0 0.0
          %2622 = vmatpush1.msra.mxu0 0.0
          %2623 = vmatprep.subr.mxu0 0.0
          %2624 = vmatpush1.msra.mxu0 0.0
          %2625 = vmatprep.subr.mxu0 0.0
          %2626 = vmatpush1.msra.mxu0 0.0
          %2627 = vmatprep.subr.mxu0 0.0
          %2628 = vmatpush1.msra.mxu0 0.0
          %2629 = vmatprep.subr.mxu0 0.0
          %2630 = vmatpush1.msra.mxu0 0.0
          %2631 = vmatprep.subr.mxu0 0.0
          %2632 = vmatpush1.msra.mxu0 0.0
          %2633 = vmatprep.subr.mxu0 0.0
          %2634 = vmatpush1.msra.mxu0 0.0
          %2635 = vmatprep.subr.mxu0 0.0
          %2636 = vmatpush1.msra.mxu0 0.0
          %2637 = vmatprep.subr.mxu0 0.0
          %2638 = vmatpush1.msra.mxu0 0.0
          %2639 = vmatprep.subr.mxu0 0.0
          %2640 = vmatpush1.msra.mxu0 0.0
          %2641 = vmatprep.subr.mxu0 0.0
          %2642 = vmatpush1.msra.mxu0 0.0
          %2643 = vmatprep.subr.mxu0 0.0
          %2644 = vmatpush1.msra.mxu0 0.0
          %2645 = vmatprep.subr.mxu0 0.0
          %2646 = vmatpush1.msra.mxu0 0.0
          %2647 = vmatprep.subr.mxu0 0.0
          %2648 = vmatpush1.msra.mxu0 0.0
          %2649 = vmatprep.subr.mxu0 0.0
          %2650 = vmatpush1.msra.mxu0 0.0
          %2651 = vmatprep.subr.mxu0 0.0
          %2652 = vmatpush1.msra.mxu0 0.0
          %2653 = vmatprep.subr.mxu0 0.0
          %2654 = vmatpush1.msra.mxu0 0.0
          %2655 = vmatprep.subr.mxu0 0.0
          %2656 = vmatpush1.msra.mxu0 0.0
          %2657 = vmatprep.subr.mxu0 0.0
          %2658 = vmatpush1.msra.mxu0 0.0
          %2659 = vmatprep.subr.mxu0 0.0
          %2660 = vmatpush1.msra.mxu0 0.0
          %2661 = vmatprep.subr.mxu0 0.0
          %2662 = vmatpush1.msra.mxu0 0.0
          %2663 = vmatprep.mubr.f32.mxu0 0.0
          %2664 = vmatmul.mubr.f32.gmra.mrb[0].mxu0 %v2597
          %v2665 = vpop.f32.mrb[0].mxu0
          %v2666 = vadd.f32 %v513, %v2665
          %v2667 = vpop.f32.mrb[0].mxu0
          %2668 = vdwg.mxu0
          %v2669 = vmax.f32 %v2666, 0.0
          %v2672 = vrot.slane %v2484, 2
          %v2673 = vrot.slane %v2487, 2
          %v2676 = vadd.f32 %v2495, %v2672
          %v2677 = vadd.f32 %v2496, %v2673
          %v2678 = vrot.slane %v2484, 3
          %v2679 = vrot.slane %v2487, 3
          %v2682 = vadd.f32 %v2676, %v2678
          %v2683 = vadd.f32 %v2677, %v2679
          %v2684 = vrot.slane %v2484, 4
          %v2685 = vrot.slane %v2487, 4
          %v2688 = vadd.f32 %v2682, %v2684
          %v2689 = vadd.f32 %v2683, %v2685
          %v2690 = vmul.f32 %v2688, 0.04
          %v2691 = vmul.f32 %v2689, 0.04
          %v2694 = vrot.slane %v2690, 6
          %v2695 = vrot.slane %v2691, 5
          %v2696 = vsel %vm518, %v2695, %v2694
          %v2697 = vsel %vm520, %v2696, 0
          %2699 = vmatprep.subr.mxu0 0.0
          %2700 = vmatpush1.msra.mxu0 %v455
          %2701 = vmatprep.subr.mxu0 0.0
          %2702 = vmatpush1.msra.mxu0 0.0
          %2703 = vmatprep.subr.mxu0 0.0
          %2704 = vmatpush1.msra.mxu0 0.0
          %2705 = vmatprep.subr.mxu0 0.0
          %2706 = vmatpush1.msra.mxu0 0.0
          %2707 = vmatprep.subr.mxu0 0.0
          %2708 = vmatpush1.msra.mxu0 0.0
          %2709 = vmatprep.subr.mxu0 0.0
          %2710 = vmatpush1.msra.mxu0 0.0
          %2711 = vmatprep.subr.mxu0 0.0
          %2712 = vmatpush1.msra.mxu0 0.0
          %2713 = vmatprep.subr.mxu0 0.0
          %2714 = vmatpush1.msra.mxu0 0.0
          %2715 = vmatprep.subr.mxu0 0.0
          %2716 = vmatpush1.msra.mxu0 0.0
          %2717 = vmatprep.subr.mxu0 0.0
          %2718 = vmatpush1.msra.mxu0 0.0
          %2719 = vmatprep.subr.mxu0 0.0
          %2720 = vmatpush1.msra.mxu0 0.0
          %2721 = vmatprep.subr.mxu0 0.0
          %2722 = vmatpush1.msra.mxu0 0.0
          %2723 = vmatprep.subr.mxu0 0.0
          %2724 = vmatpush1.msra.mxu0 0.0
          %2725 = vmatprep.subr.mxu0 0.0
          %2726 = vmatpush1.msra.mxu0 0.0
          %2727 = vmatprep.subr.mxu0 0.0
          %2728 = vmatpush1.msra.mxu0 0.0
          %2729 = vmatprep.subr.mxu0 0.0
          %2730 = vmatpush1.msra.mxu0 0.0
          %2731 = vmatprep.subr.mxu0 0.0
          %2732 = vmatpush1.msra.mxu0 0.0
          %2733 = vmatprep.subr.mxu0 0.0
          %2734 = vmatpush1.msra.mxu0 0.0
          %2735 = vmatprep.subr.mxu0 0.0
          %2736 = vmatpush1.msra.mxu0 0.0
          %2737 = vmatprep.subr.mxu0 0.0
          %2738 = vmatpush1.msra.mxu0 0.0
          %2739 = vmatprep.subr.mxu0 0.0
          %2740 = vmatpush1.msra.mxu0 0.0
          %2741 = vmatprep.subr.mxu0 0.0
          %2742 = vmatpush1.msra.mxu0 0.0
          %2743 = vmatprep.subr.mxu0 0.0
          %2744 = vmatpush1.msra.mxu0 0.0
          %2745 = vmatprep.subr.mxu0 0.0
          %2746 = vmatpush1.msra.mxu0 0.0
          %2747 = vmatprep.subr.mxu0 0.0
          %2748 = vmatpush1.msra.mxu0 0.0
          %2749 = vmatprep.subr.mxu0 0.0
          %2750 = vmatpush1.msra.mxu0 0.0
          %2751 = vmatprep.subr.mxu0 0.0
          %2752 = vmatpush1.msra.mxu0 0.0
          %2753 = vmatprep.subr.mxu0 0.0
          %2754 = vmatpush1.msra.mxu0 0.0
          %2755 = vmatprep.subr.mxu0 0.0
          %2756 = vmatpush1.msra.mxu0 0.0
          %2757 = vmatprep.subr.mxu0 0.0
          %2758 = vmatpush1.msra.mxu0 0.0
          %2759 = vmatprep.subr.mxu0 0.0
          %2760 = vmatpush1.msra.mxu0 0.0
          %2761 = vmatprep.subr.mxu0 0.0
          %2762 = vmatpush1.msra.mxu0 0.0
          %2763 = vmatprep.mubr.f32.mxu0 0.0
          %2764 = vmatmul.mubr.f32.gmra.mrb[0].mxu0 %v2697
          %v2765 = vpop.f32.mrb[0].mxu0
          %v2766 = vadd.f32 %v513, %v2765
          %v2767 = vpop.f32.mrb[0].mxu0
          %2768 = vdwg.mxu0
          %v2769 = vmax.f32 %v2766, 0.0
          %v2770 = vrot.slane %v2484, 1
          %v2771 = vrot.slane %v2487, 1
          %v2774 = vadd.f32 %v2484, %v2770
          %v2775 = vadd.f32 %v2487, %v2771
          %v2776 = vadd.f32 %v2774, %v2672
          %v2777 = vadd.f32 %v2775, %v2673
          %v2778 = vadd.f32 %v2776, %v2678
          %v2779 = vadd.f32 %v2777, %v2679
          %v2780 = vadd.f32 %v2778, %v2684
          %v2781 = vadd.f32 %v2779, %v2685
          %v2782 = vmul.f32 %v2780, 0.04
          %v2783 = vmul.f32 %v2781, 0.04
          %v2786 = vrot.slane %v2782, 1
          %v2787 = vsel %vm518, %v2783, %v2786
          %v2788 = vsel %vm520, %v2787, 0
          %2790 = vmatprep.subr.mxu0 0.0
          %2791 = vmatpush1.msra.mxu0 %v455
          %2792 = vmatprep.subr.mxu0 0.0
          %2793 = vmatpush1.msra.mxu0 0.0
          %2794 = vmatprep.subr.mxu0 0.0
          %2795 = vmatpush1.msra.mxu0 0.0
          %2796 = vmatprep.subr.mxu0 0.0
          %2797 = vmatpush1.msra.mxu0 0.0
          %2798 = vmatprep.subr.mxu0 0.0
          %2799 = vmatpush1.msra.mxu0 0.0
          %2800 = vmatprep.subr.mxu0 0.0
          %2801 = vmatpush1.msra.mxu0 0.0
          %2802 = vmatprep.subr.mxu0 0.0
          %2803 = vmatpush1.msra.mxu0 0.0
          %2804 = vmatprep.subr.mxu0 0.0
          %2805 = vmatpush1.msra.mxu0 0.0
          %2806 = vmatprep.subr.mxu0 0.0
          %2807 = vmatpush1.msra.mxu0 0.0
          %2808 = vmatprep.subr.mxu0 0.0
          %2809 = vmatpush1.msra.mxu0 0.0
          %2810 = vmatprep.subr.mxu0 0.0
          %2811 = vmatpush1.msra.mxu0 0.0
          %2812 = vmatprep.subr.mxu0 0.0
          %2813 = vmatpush1.msra.mxu0 0.0
          %2814 = vmatprep.subr.mxu0 0.0
          %2815 = vmatpush1.msra.mxu0 0.0
          %2816 = vmatprep.subr.mxu0 0.0
          %2817 = vmatpush1.msra.mxu0 0.0
          %2818 = vmatprep.subr.mxu0 0.0
          %2819 = vmatpush1.msra.mxu0 0.0
          %2820 = vmatprep.subr.mxu0 0.0
          %2821 = vmatpush1.msra.mxu0 0.0
          %2822 = vmatprep.subr.mxu0 0.0
          %2823 = vmatpush1.msra.mxu0 0.0
          %2824 = vmatprep.subr.mxu0 0.0
          %2825 = vmatpush1.msra.mxu0 0.0
          %2826 = vmatprep.subr.mxu0 0.0
          %2827 = vmatpush1.msra.mxu0 0.0
          %2828 = vmatprep.subr.mxu0 0.0
          %2829 = vmatpush1.msra.mxu0 0.0
          %2830 = vmatprep.subr.mxu0 0.0
          %2831 = vmatpush1.msra.mxu0 0.0
          %2832 = vmatprep.subr.mxu0 0.0
          %2833 = vmatpush1.msra.mxu0 0.0
          %2834 = vmatprep.subr.mxu0 0.0
          %2835 = vmatpush1.msra.mxu0 0.0
          %2836 = vmatprep.subr.mxu0 0.0
          %2837 = vmatpush1.msra.mxu0 0.0
          %2838 = vmatprep.subr.mxu0 0.0
          %2839 = vmatpush1.msra.mxu0 0.0
          %2840 = vmatprep.subr.mxu0 0.0
          %2841 = vmatpush1.msra.mxu0 0.0
          %2842 = vmatprep.subr.mxu0 0.0
          %2843 = vmatpush1.msra.mxu0 0.0
          %2844 = vmatprep.subr.mxu0 0.0
          %2845 = vmatpush1.msra.mxu0 0.0
          %2846 = vmatprep.subr.mxu0 0.0
          %2847 = vmatpush1.msra.mxu0 0.0
          %2848 = vmatprep.subr.mxu0 0.0
          %2849 = vmatpush1.msra.mxu0 0.0
          %2850 = vmatprep.subr.mxu0 0.0
          %2851 = vmatpush1.msra.mxu0 0.0
          %2852 = vmatprep.subr.mxu0 0.0
          %2853 = vmatpush1.msra.mxu0 0.0
          %2854 = vmatprep.mubr.f32.mxu0 0.0
          %2855 = vmatmul.mubr.f32.gmra.mrb[0].mxu0 %v2788
          %v2856 = vpop.f32.mrb[0].mxu0
          %v2857 = vadd.f32 %v513, %v2856
          %v2858 = vpop.f32.mrb[0].mxu0
          %2859 = vdwg.mxu0
          %v2860 = vmax.f32 %v2857, 0.0
          %v2863 = vrot.slane %v2485, 4
          %v2864 = vrot.slane %v2488, 4
          %v2867 = vadd.f32 %v2778, %v2863
          %v2868 = vadd.f32 %v2779, %v2864
          %v2869 = vmul.f32 %v2867, 0.04
          %v2870 = vmul.f32 %v2868, 0.04
          %v2873 = vrot.slane %v2869, 4
          %v2874 = vrot.slane %v2870, 3
          %v2875 = vsel %vm518, %v2874, %v2873
          %v2876 = vsel %vm520, %v2875, 0
          %2878 = vmatprep.subr.mxu0 0.0
          %2879 = vmatpush1.msra.mxu0 %v455
          %2880 = vmatprep.subr.mxu0 0.0
          %2881 = vmatpush1.msra.mxu0 0.0
          %2882 = vmatprep.subr.mxu0 0.0
          %2883 = vmatpush1.msra.mxu0 0.0
          %2884 = vmatprep.subr.mxu0 0.0
          %2885 = vmatpush1.msra.mxu0 0.0
          %2886 = vmatprep.subr.mxu0 0.0
          %2887 = vmatpush1.msra.mxu0 0.0
          %2888 = vmatprep.subr.mxu0 0.0
          %2889 = vmatpush1.msra.mxu0 0.0
          %2890 = vmatprep.subr.mxu0 0.0
          %2891 = vmatpush1.msra.mxu0 0.0
          %2892 = vmatprep.subr.mxu0 0.0
          %2893 = vmatpush1.msra.mxu0 0.0
          %2894 = vmatprep.subr.mxu0 0.0
          %2895 = vmatpush1.msra.mxu0 0.0
          %2896 = vmatprep.subr.mxu0 0.0
          %2897 = vmatpush1.msra.mxu0 0.0
          %2898 = vmatprep.subr.mxu0 0.0
          %2899 = vmatpush1.msra.mxu0 0.0
          %2900 = vmatprep.subr.mxu0 0.0
          %2901 = vmatpush1.msra.mxu0 0.0
          %2902 = vmatprep.subr.mxu0 0.0
          %2903 = vmatpush1.msra.mxu0 0.0
          %2904 = vmatprep.subr.mxu0 0.0
          %2905 = vmatpush1.msra.mxu0 0.0
          %2906 = vmatprep.subr.mxu0 0.0
          %2907 = vmatpush1.msra.mxu0 0.0
          %2908 = vmatprep.subr.mxu0 0.0
          %2909 = vmatpush1.msra.mxu0 0.0
          %2910 = vmatprep.subr.mxu0 0.0
          %2911 = vmatpush1.msra.mxu0 0.0
          %2912 = vmatprep.subr.mxu0 0.0
          %2913 = vmatpush1.msra.mxu0 0.0
          %2914 = vmatprep.subr.mxu0 0.0
          %2915 = vmatpush1.msra.mxu0 0.0
          %2916 = vmatprep.subr.mxu0 0.0
          %2917 = vmatpush1.msra.mxu0 0.0
          %2918 = vmatprep.subr.mxu0 0.0
          %2919 = vmatpush1.msra.mxu0 0.0
          %2920 = vmatprep.subr.mxu0 0.0
          %2921 = vmatpush1.msra.mxu0 0.0
          %2922 = vmatprep.subr.mxu0 0.0
          %2923 = vmatpush1.msra.mxu0 0.0
          %2924 = vmatprep.subr.mxu0 0.0
          %2925 = vmatpush1.msra.mxu0 0.0
          %2926 = vmatprep.subr.mxu0 0.0
          %2927 = vmatpush1.msra.mxu0 0.0
          %2928 = vmatprep.subr.mxu0 0.0
          %2929 = vmatpush1.msra.mxu0 0.0
          %2930 = vmatprep.subr.mxu0 0.0
          %2931 = vmatpush1.msra.mxu0 0.0
          %2932 = vmatprep.subr.mxu0 0.0
          %2933 = vmatpush1.msra.mxu0 0.0
          %2934 = vmatprep.subr.mxu0 0.0
          %2935 = vmatpush1.msra.mxu0 0.0
          %2936 = vmatprep.subr.mxu0 0.0
          %2937 = vmatpush1.msra.mxu0 0.0
          %2938 = vmatprep.subr.mxu0 0.0
          %2939 = vmatpush1.msra.mxu0 0.0
          %2940 = vmatprep.subr.mxu0 0.0
          %2941 = vmatpush1.msra.mxu0 0.0
          %2942 = vmatprep.mubr.f32.mxu0 0.0
          %2943 = vmatmul.mubr.f32.gmra.mrb[0].mxu0 %v2876
          %v2944 = vpop.f32.mrb[0].mxu0
          %v2945 = vadd.f32 %v513, %v2944
          %v2946 = vpop.f32.mrb[0].mxu0
          %2947 = vdwg.mxu0
          %v2948 = vmax.f32 %v2945, 0.0
          %v2949 = vsel %vm949, %v2593, 0.0
          %v2950 = vsel %vm949, %v2669, 0.0
          %v2951 = vsel %vm949, %v2769, 0.0
          %v2952 = vsel %vm949, %v2860, 0.0
          %v2953 = vsel %vm949, %v2948, 0.0
          %v2954 = vpack.c.bf16 0.0, %v2949
          %v2955 = vpack.c.bf16 0.0, %v2950
          %v2956 = vpack.c.bf16 0.0, %v2951
          %v2957 = vpack.c.bf16 0.0, %v2952
          %v2958 = vpack.c.bf16 0.0, %v2953
          %s2959 = scalar_lea.vmem [#allocation2], 160
          %2960 = vst [vmem:[%s2959] sm:$0xff] %v2954
          %2961 = vst [vmem:[%s2959 + $0x8] sm:$0xff] %v2955
          %2962 = vst [vmem:[%s2959 + $0x10] sm:$0xff] %v2956
          %2963 = vst [vmem:[%s2959 + $0x18] sm:$0xff] %v2957
          %2964 = vst [vmem:[%s2959 + $0x20] sm:$0xff] %v2958
          %2965 = vst [vmem:[#allocation3] sm:$0xff] 0.0
          %2966 = vst [vmem:[#allocation3 + $0x8] sm:$0xff] 0.0
          %2967 = vst [vmem:[#allocation3 + $0x10] sm:$0xff] 0.0
          %2968 = vst [vmem:[#allocation3 + $0x18] sm:$0xff] 0.0
          %2969 = vst [vmem:[#allocation3 + $0x20] sm:$0xff] 0.0
          %2970 = vst [vmem:[#allocation3 + $0x28] sm:$0xff] 0.0
          %2971 = vst [vmem:[#allocation3 + $0x30] sm:$0xff] 0.0
          %2972 = vst [vmem:[#allocation3 + $0x38] sm:$0xff] 0.0
          %2973 = vst [vmem:[#allocation3 + $0x40] sm:$0xff] 0.0
          %2974 = vst [vmem:[#allocation3 + $0x48] sm:$0xff] 0.0
          %2975 = vst [vmem:[#allocation3 + $0x50] sm:$0xff] 0.0
          %2976 = vst [vmem:[#allocation3 + $0x58] sm:$0xff] 0.0
        $region76: #{_lambda_.1} parent=47 // pred_fallthru
          _
        %v2977 = vld [vmem:[#allocation3] sm:$0xff]
        %v2978 = vld [vmem:[#allocation3 + $0x8] sm:$0xff]
        %v2979 = vld [vmem:[#allocation3 + $0x10] sm:$0xff]
        %v2980 = vld [vmem:[#allocation3 + $0x18] sm:$0xff]
        %v2981 = vld [vmem:[#allocation3 + $0x20] sm:$0xff]
        %v2982 = vld [vmem:[#allocation3 + $0x28] sm:$0xff]
        %v2983 = vld [vmem:[#allocation3 + $0x30] sm:$0xff]
        %v2984 = vld [vmem:[#allocation3 + $0x38] sm:$0xff]
        %v2985 = vld [vmem:[#allocation3 + $0x40] sm:$0xff]
        %v2986 = vld [vmem:[#allocation3 + $0x48] sm:$0xff]
        %v2987 = vld [vmem:[#allocation3 + $0x50] sm:$0xff]
        %v2988 = vld [vmem:[#allocation3 + $0x58] sm:$0xff]
        %s2989 = smul.u32 %s21, 5
        %s2990 = smul.addr %s2989, 8
        %s2991 = scalar_lea.vmem [#allocation2], %s2990
        %v2992 = vld [vmem:[%s2991] sm:$0xff]
        %v2993 = vld [vmem:[%s2991 + $0x8] sm:$0xff]
        %v2994 = vld [vmem:[%s2991 + $0x10] sm:$0xff]
        %v2995 = vld [vmem:[%s2991 + $0x18] sm:$0xff]
        %v2996 = vld [vmem:[%s2991 + $0x20] sm:$0xff]
        %v2997 = vld [vmem:[%s309] sm:$0xff]
        %v2998 = vld [vmem:[%s309 + $0x8] sm:$0xff]
        %v2999 = vld [vmem:[%s309 + $0x10] sm:$0xff]
        %v3000 = vld [vmem:[%s309 + $0x18] sm:$0xff]
        %v3001 = vld [vmem:[%s309 + $0x20] sm:$0xff]
        %v3002 = vld [vmem:[%s309 + $0x28] sm:$0xff]
        %v3003 = vld [vmem:[%s309 + $0x30] sm:$0xff]
        %v3004 = vld [vmem:[%s309 + $0x38] sm:$0xff]
        %v3005 = vld [vmem:[%s309 + $0x40] sm:$0xff]
        %v3006 = vld [vmem:[%s309 + $0x48] sm:$0xff]
        %v3007 = vld [vmem:[%s309 + $0x50] sm:$0xff]
        %v3008 = vld [vmem:[%s309 + $0x58] sm:$0xff]
        %v3009 = vld [vmem:[%s309 + $0x60] sm:$0xff]
        %v3010 = vld [vmem:[%s309 + $0x68] sm:$0xff]
        %v3011 = vld [vmem:[%s309 + $0x70] sm:$0xff]
        %v3012 = vld [vmem:[%s309 + $0x78] sm:$0xff]
        %v3013 = vld [vmem:[%s309 + $0x80] sm:$0xff]
        %v3014 = vld [vmem:[%s309 + $0x88] sm:$0xff]
        %v3015 = vld [vmem:[%s309 + $0x90] sm:$0xff]
        %v3016 = vld [vmem:[%s309 + $0x98] sm:$0xff]
        %v3017 = vld [vmem:[%s309 + $0xa0] sm:$0xff]
        %v3018 = vld [vmem:[%s309 + $0xa8] sm:$0xff]
        %v3019 = vld [vmem:[%s309 + $0xb0] sm:$0xff]
        %v3020 = vld [vmem:[%s309 + $0xb8] sm:$0xff]
        %v3021 = vld [vmem:[%s309 + $0xc0] sm:$0xff]
        %v3022 = vld [vmem:[%s309 + $0xc8] sm:$0xff]
        %v3023 = vld [vmem:[%s309 + $0xd0] sm:$0xff]
        %v3024 = vld [vmem:[%s309 + $0xd8] sm:$0xff]
        %v3025 = vld [vmem:[%s309 + $0xe0] sm:$0xff]
        %v3026 = vld [vmem:[%s309 + $0xe8] sm:$0xff]
        %v3027 = vld [vmem:[%s309 + $0xf0] sm:$0xff]
        %v3028 = vld [vmem:[%s309 + $0xf8] sm:$0xff]
        %v3029 = vld [vmem:[%s309 + $0x100] sm:$0xff]
        %v3030 = vld [vmem:[%s309 + $0x108] sm:$0xff]
        %v3031 = vld [vmem:[%s309 + $0x110] sm:$0xff]
        %v3032 = vld [vmem:[%s309 + $0x118] sm:$0xff]
        %v3033 = vld [vmem:[%s309 + $0x120] sm:$0xff]
        %v3034 = vld [vmem:[%s309 + $0x128] sm:$0xff]
        %v3035 = vld [vmem:[%s309 + $0x130] sm:$0xff]
        %v3036 = vld [vmem:[%s309 + $0x138] sm:$0xff]
        %v3037 = vld [vmem:[%s309 + $0x140] sm:$0xff]
        %v3038 = vld [vmem:[%s309 + $0x148] sm:$0xff]
        %v3039 = vld [vmem:[%s309 + $0x150] sm:$0xff]
        %v3040 = vld [vmem:[%s309 + $0x158] sm:$0xff]
        %v3041 = vld [vmem:[%s309 + $0x160] sm:$0xff]
        %v3042 = vld [vmem:[%s309 + $0x168] sm:$0xff]
        %v3043 = vld [vmem:[%s309 + $0x170] sm:$0xff]
        %v3044 = vld [vmem:[%s309 + $0x178] sm:$0xff]
        %v3045 = vld [vmem:[%s309 + $0x180] sm:$0xff]
        %v3046 = vld [vmem:[%s309 + $0x188] sm:$0xff]
        %v3047 = vld [vmem:[%s309 + $0x190] sm:$0xff]
        %v3048 = vld [vmem:[%s309 + $0x198] sm:$0xff]
        %v3049 = vld [vmem:[%s309 + $0x1a0] sm:$0xff]
        %v3050 = vld [vmem:[%s309 + $0x1a8] sm:$0xff]
        %v3051 = vld [vmem:[%s309 + $0x1b0] sm:$0xff]
        %v3052 = vld [vmem:[%s309 + $0x1b8] sm:$0xff]
        %v3053 = vld [vmem:[%s309 + $0x1c0] sm:$0xff]
        %v3054 = vld [vmem:[%s309 + $0x1c8] sm:$0xff]
        %v3055 = vld [vmem:[%s309 + $0x1d0] sm:$0xff]
        %v3056 = vld [vmem:[%s309 + $0x1d8] sm:$0xff]
        %v3057 = vld [vmem:[%s309 + $0x1e0] sm:$0xff]
        %v3058 = vld [vmem:[%s309 + $0x1e8] sm:$0xff]
        %v3059 = vld [vmem:[%s309 + $0x1f0] sm:$0xff]
        %v3060 = vld [vmem:[%s309 + $0x1f8] sm:$0xff]
        %v3061 = vld [vmem:[%s309 + $0x200] sm:$0xff]
        %v3062 = vld [vmem:[%s309 + $0x208] sm:$0xff]
        %v3063 = vld [vmem:[%s309 + $0x210] sm:$0xff]
        %v3064 = vld [vmem:[%s309 + $0x218] sm:$0xff]
        %v3065 = vld [vmem:[%s309 + $0x220] sm:$0xff]
        %v3066 = vld [vmem:[%s309 + $0x228] sm:$0xff]
        %v3067 = vld [vmem:[%s309 + $0x230] sm:$0xff]
        %v3068 = vld [vmem:[%s309 + $0x238] sm:$0xff]
        %v3069 = vld [vmem:[%s309 + $0x240] sm:$0xff]
        %v3070 = vld [vmem:[%s309 + $0x248] sm:$0xff]
        %v3071 = vld [vmem:[%s309 + $0x250] sm:$0xff]
        %v3072 = vld [vmem:[%s309 + $0x258] sm:$0xff]
        %v3073 = vld [vmem:[%s309 + $0x260] sm:$0xff]
        %v3074 = vld [vmem:[%s309 + $0x268] sm:$0xff]
        %v3075 = vld [vmem:[%s309 + $0x270] sm:$0xff]
        %v3076 = vld [vmem:[%s309 + $0x278] sm:$0xff]
        %v3077 = vld [vmem:[%s309 + $0x280] sm:$0xff]
        %v3078 = vld [vmem:[%s309 + $0x288] sm:$0xff]
        %v3079 = vld [vmem:[%s309 + $0x290] sm:$0xff]
        %v3080 = vld [vmem:[%s309 + $0x298] sm:$0xff]
        %v3081 = vld [vmem:[%s309 + $0x2a0] sm:$0xff]
        %v3082 = vld [vmem:[%s309 + $0x2a8] sm:$0xff]
        %v3083 = vld [vmem:[%s309 + $0x2b0] sm:$0xff]
        %v3084 = vld [vmem:[%s309 + $0x2b8] sm:$0xff]
        %v3085 = vld [vmem:[%s309 + $0x2c0] sm:$0xff]
        %v3086 = vld [vmem:[%s309 + $0x2c8] sm:$0xff]
        %v3087 = vld [vmem:[%s309 + $0x2d0] sm:$0xff]
        %v3088 = vld [vmem:[%s309 + $0x2d8] sm:$0xff]
        %v3089 = vld [vmem:[%s309 + $0x2e0] sm:$0xff]
        %v3090 = vld [vmem:[%s309 + $0x2e8] sm:$0xff]
        %v3091 = vld [vmem:[%s309 + $0x2f0] sm:$0xff]
        %v3092 = vld [vmem:[%s309 + $0x2f8] sm:$0xff]
        %v3093 = vld [vmem:[%s309 + $0x300] sm:$0xff]
        %v3094 = vld [vmem:[%s309 + $0x308] sm:$0xff]
        %v3095 = vld [vmem:[%s309 + $0x310] sm:$0xff]
        %v3096 = vld [vmem:[%s309 + $0x318] sm:$0xff]
        %v3097 = vld [vmem:[%s309 + $0x320] sm:$0xff]
        %v3098 = vld [vmem:[%s309 + $0x328] sm:$0xff]
        %v3099 = vld [vmem:[%s309 + $0x330] sm:$0xff]
        %v3100 = vld [vmem:[%s309 + $0x338] sm:$0xff]
        %v3101 = vld [vmem:[%s309 + $0x340] sm:$0xff]
        %v3102 = vld [vmem:[%s309 + $0x348] sm:$0xff]
        %v3103 = vld [vmem:[%s309 + $0x350] sm:$0xff]
        %v3104 = vld [vmem:[%s309 + $0x358] sm:$0xff]
        %v3105 = vld [vmem:[%s309 + $0x360] sm:$0xff]
        %v3106 = vld [vmem:[%s309 + $0x368] sm:$0xff]
        %v3107 = vld [vmem:[%s309 + $0x370] sm:$0xff]
        %v3108 = vld [vmem:[%s309 + $0x378] sm:$0xff]
        %v3109 = vld [vmem:[%s309 + $0x380] sm:$0xff]
        %v3110 = vld [vmem:[%s309 + $0x388] sm:$0xff]
        %v3111 = vld [vmem:[%s309 + $0x390] sm:$0xff]
        %v3112 = vld [vmem:[%s309 + $0x398] sm:$0xff]
        %v3113 = vld [vmem:[%s309 + $0x3a0] sm:$0xff]
        %v3114 = vld [vmem:[%s309 + $0x3a8] sm:$0xff]
        %v3115 = vld [vmem:[%s309 + $0x3b0] sm:$0xff]
        %v3116 = vld [vmem:[%s309 + $0x3b8] sm:$0xff]
        %v3117 = vld [vmem:[%s309 + $0x3c0] sm:$0xff]
        %v3118 = vld [vmem:[%s309 + $0x3c8] sm:$0xff]
        %v3119 = vld [vmem:[%s309 + $0x3d0] sm:$0xff]
        %v3120 = vld [vmem:[%s309 + $0x3d8] sm:$0xff]
        %v3121 = vld [vmem:[%s309 + $0x3e0] sm:$0xff]
        %v3122 = vld [vmem:[%s309 + $0x3e8] sm:$0xff]
        %v3123 = vld [vmem:[%s309 + $0x3f0] sm:$0xff]
        %v3124 = vld [vmem:[%s309 + $0x3f8] sm:$0xff]
        %v3125 = vld [vmem:[%s309 + $0x400] sm:$0xff]
        %v3126 = vld [vmem:[%s309 + $0x408] sm:$0xff]
        %v3127 = vld [vmem:[%s309 + $0x410] sm:$0xff]
        %v3128 = vld [vmem:[%s309 + $0x418] sm:$0xff]
        %v3129 = vld [vmem:[%s309 + $0x420] sm:$0xff]
        %v3130 = vld [vmem:[%s309 + $0x428] sm:$0xff]
        %v3131 = vld [vmem:[%s309 + $0x430] sm:$0xff]
        %v3132 = vld [vmem:[%s309 + $0x438] sm:$0xff]
        %v3133 = vld [vmem:[%s309 + $0x440] sm:$0xff]
        %v3134 = vld [vmem:[%s309 + $0x448] sm:$0xff]
        %v3135 = vld [vmem:[%s309 + $0x450] sm:$0xff]
        %v3136 = vld [vmem:[%s309 + $0x458] sm:$0xff]
        %v3137 = vld [vmem:[%s309 + $0x460] sm:$0xff]
        %v3138 = vld [vmem:[%s309 + $0x468] sm:$0xff]
        %v3139 = vld [vmem:[%s309 + $0x470] sm:$0xff]
        %v3140 = vld [vmem:[%s309 + $0x478] sm:$0xff]
        %v3141 = vld [vmem:[%s309 + $0x480] sm:$0xff]
        %v3142 = vld [vmem:[%s309 + $0x488] sm:$0xff]
        %v3143 = vld [vmem:[%s309 + $0x490] sm:$0xff]
        %v3144 = vld [vmem:[%s309 + $0x498] sm:$0xff]
        %v3145 = vld [vmem:[%s309 + $0x4a0] sm:$0xff]
        %v3146 = vld [vmem:[%s309 + $0x4a8] sm:$0xff]
        %v3147 = vld [vmem:[%s309 + $0x4b0] sm:$0xff]
        %v3148 = vld [vmem:[%s309 + $0x4b8] sm:$0xff]
        %v3149 = vld [vmem:[%s309 + $0x4c0] sm:$0xff]
        %v3150 = vld [vmem:[%s309 + $0x4c8] sm:$0xff]
        %v3151 = vld [vmem:[%s309 + $0x4d0] sm:$0xff]
        %v3152 = vld [vmem:[%s309 + $0x4d8] sm:$0xff]
        %v3153 = vld [vmem:[%s309 + $0x4e0] sm:$0xff]
        %v3154 = vld [vmem:[%s309 + $0x4e8] sm:$0xff]
        %v3155 = vld [vmem:[%s309 + $0x4f0] sm:$0xff]
        %v3156 = vld [vmem:[%s309 + $0x4f8] sm:$0xff]
        %v3157 = vld [vmem:[%s309 + $0x500] sm:$0xff]
        %v3158 = vld [vmem:[%s309 + $0x508] sm:$0xff]
        %v3159 = vld [vmem:[%s309 + $0x510] sm:$0xff]
        %v3160 = vld [vmem:[%s309 + $0x518] sm:$0xff]
        %v3161 = vld [vmem:[%s309 + $0x520] sm:$0xff]
        %v3162 = vld [vmem:[%s309 + $0x528] sm:$0xff]
        %v3163 = vld [vmem:[%s309 + $0x530] sm:$0xff]
        %v3164 = vld [vmem:[%s309 + $0x538] sm:$0xff]
        %v3165 = vld [vmem:[%s309 + $0x540] sm:$0xff]
        %v3166 = vld [vmem:[%s309 + $0x548] sm:$0xff]
        %v3167 = vld [vmem:[%s309 + $0x550] sm:$0xff]
        %v3168 = vld [vmem:[%s309 + $0x558] sm:$0xff]
        %v3169 = vld [vmem:[%s309 + $0x560] sm:$0xff]
        %v3170 = vld [vmem:[%s309 + $0x568] sm:$0xff]
        %v3171 = vld [vmem:[%s309 + $0x570] sm:$0xff]
        %v3172 = vld [vmem:[%s309 + $0x578] sm:$0xff]
        %v3173 = vld [vmem:[%s309 + $0x580] sm:$0xff]
        %v3174 = vld [vmem:[%s309 + $0x588] sm:$0xff]
        %v3175 = vld [vmem:[%s309 + $0x590] sm:$0xff]
        %v3176 = vld [vmem:[%s309 + $0x598] sm:$0xff]
        %v3177 = vld [vmem:[%s309 + $0x5a0] sm:$0xff]
        %v3178 = vld [vmem:[%s309 + $0x5a8] sm:$0xff]
        %v3179 = vld [vmem:[%s309 + $0x5b0] sm:$0xff]
        %v3180 = vld [vmem:[%s309 + $0x5b8] sm:$0xff]
        %v3181 = vld [vmem:[%s309 + $0x5c0] sm:$0xff]
        %v3182 = vld [vmem:[%s309 + $0x5c8] sm:$0xff]
        %v3183 = vld [vmem:[%s309 + $0x5d0] sm:$0xff]
        %v3184 = vld [vmem:[%s309 + $0x5d8] sm:$0xff]
        %v3185 = vld [vmem:[%s309 + $0x5e0] sm:$0xff]
        %v3186 = vld [vmem:[%s309 + $0x5e8] sm:$0xff]
        %v3187 = vld [vmem:[%s309 + $0x5f0] sm:$0xff]
        %v3188 = vld [vmem:[%s309 + $0x5f8] sm:$0xff]
        %v3189 = vld [vmem:[%s309 + $0x600] sm:$0xff]
        %v3190 = vld [vmem:[%s309 + $0x608] sm:$0xff]
        %v3191 = vld [vmem:[%s309 + $0x610] sm:$0xff]
        %v3192 = vld [vmem:[%s309 + $0x618] sm:$0xff]
        %v3193 = vld [vmem:[%s309 + $0x620] sm:$0xff]
        %v3194 = vld [vmem:[%s309 + $0x628] sm:$0xff]
        %v3195 = vld [vmem:[%s309 + $0x630] sm:$0xff]
        %v3196 = vld [vmem:[%s309 + $0x638] sm:$0xff]
        %v3197 = vld [vmem:[%s309 + $0x640] sm:$0xff]
        %v3198 = vld [vmem:[%s309 + $0x648] sm:$0xff]
        %v3199 = vld [vmem:[%s309 + $0x650] sm:$0xff]
        %v3200 = vld [vmem:[%s309 + $0x658] sm:$0xff]
        %v3201 = vld [vmem:[%s309 + $0x660] sm:$0xff]
        %v3202 = vld [vmem:[%s309 + $0x668] sm:$0xff]
        %v3203 = vld [vmem:[%s309 + $0x670] sm:$0xff]
        %v3204 = vld [vmem:[%s309 + $0x678] sm:$0xff]
        %v3205 = vld [vmem:[%s309 + $0x680] sm:$0xff]
        %v3206 = vld [vmem:[%s309 + $0x688] sm:$0xff]
        %v3207 = vld [vmem:[%s309 + $0x690] sm:$0xff]
        %v3208 = vld [vmem:[%s309 + $0x698] sm:$0xff]
        %v3209 = vld [vmem:[%s309 + $0x6a0] sm:$0xff]
        %v3210 = vld [vmem:[%s309 + $0x6a8] sm:$0xff]
        %v3211 = vld [vmem:[%s309 + $0x6b0] sm:$0xff]
        %v3212 = vld [vmem:[%s309 + $0x6b8] sm:$0xff]
        %v3213 = vld [vmem:[%s309 + $0x6c0] sm:$0xff]
        %v3214 = vld [vmem:[%s309 + $0x6c8] sm:$0xff]
        %v3215 = vld [vmem:[%s309 + $0x6d0] sm:$0xff]
        %v3216 = vld [vmem:[%s309 + $0x6d8] sm:$0xff]
        %v3217 = vld [vmem:[%s309 + $0x6e0] sm:$0xff]
        %v3218 = vld [vmem:[%s309 + $0x6e8] sm:$0xff]
        %v3219 = vld [vmem:[%s309 + $0x6f0] sm:$0xff]
        %v3220 = vld [vmem:[%s309 + $0x6f8] sm:$0xff]
        %v3221 = vld [vmem:[%s309 + $0x700] sm:$0xff]
        %v3222 = vld [vmem:[%s309 + $0x708] sm:$0xff]
        %v3223 = vld [vmem:[%s309 + $0x710] sm:$0xff]
        %v3224 = vld [vmem:[%s309 + $0x718] sm:$0xff]
        %v3225 = vld [vmem:[%s309 + $0x720] sm:$0xff]
        %v3226 = vld [vmem:[%s309 + $0x728] sm:$0xff]
        %v3227 = vld [vmem:[%s309 + $0x730] sm:$0xff]
        %v3228 = vld [vmem:[%s309 + $0x738] sm:$0xff]
        %v3229 = vld [vmem:[%s309 + $0x740] sm:$0xff]
        %v3230 = vld [vmem:[%s309 + $0x748] sm:$0xff]
        %v3231 = vld [vmem:[%s309 + $0x750] sm:$0xff]
        %v3232 = vld [vmem:[%s309 + $0x758] sm:$0xff]
        %v3233 = vld [vmem:[%s309 + $0x760] sm:$0xff]
        %v3234 = vld [vmem:[%s309 + $0x768] sm:$0xff]
        %v3235 = vld [vmem:[%s309 + $0x770] sm:$0xff]
        %v3236 = vld [vmem:[%s309 + $0x778] sm:$0xff]
        %v3477 = vunpack.c.l.b16 %v2997
        %v3478 = vunpack.c.h.b16 %v2997
        %v3479 = vunpack.c.l.b16 %v2998
        %v3480 = vunpack.c.h.b16 %v2998
        %v3481 = vunpack.c.l.b16 %v2999
        %v3482 = vunpack.c.h.b16 %v2999
        %v3483 = vunpack.c.l.b16 %v3000
        %v3484 = vunpack.c.h.b16 %v3000
        %v3485 = vunpack.c.l.b16 %v3001
        %v3486 = vunpack.c.h.b16 %v3001
        %v3487 = vunpack.c.l.b16 %v3002
        %v3488 = vunpack.c.h.b16 %v3002
        %v3489 = vunpack.c.l.b16 %v3003
        %v3490 = vunpack.c.h.b16 %v3003
        %v3491 = vunpack.c.l.b16 %v3004
        %v3492 = vunpack.c.h.b16 %v3004
        %v3493 = vunpack.c.l.b16 %v3005
        %v3494 = vunpack.c.h.b16 %v3005
        %v3495 = vunpack.c.l.b16 %v3006
        %v3496 = vunpack.c.h.b16 %v3006
        %v3497 = vunpack.c.l.b16 %v3007
        %v3498 = vunpack.c.h.b16 %v3007
        %v3499 = vunpack.c.l.b16 %v3008
        %v3500 = vunpack.c.h.b16 %v3008
        %v3501 = vunpack.c.l.b16 %v3009
        %v3502 = vunpack.c.h.b16 %v3009
        %v3503 = vunpack.c.l.b16 %v3010
        %v3504 = vunpack.c.h.b16 %v3010
        %v3505 = vunpack.c.l.b16 %v3011
        %v3506 = vunpack.c.h.b16 %v3011
        %v3507 = vunpack.c.l.b16 %v3012
        %v3508 = vunpack.c.h.b16 %v3012
        %v3509 = vunpack.c.l.b16 %v3013
        %v3510 = vunpack.c.h.b16 %v3013
        %v3511 = vunpack.c.l.b16 %v3014
        %v3512 = vunpack.c.h.b16 %v3014
        %v3513 = vunpack.c.l.b16 %v3015
        %v3514 = vunpack.c.h.b16 %v3015
        %v3515 = vunpack.c.l.b16 %v3016
        %v3516 = vunpack.c.h.b16 %v3016
        %v3517 = vunpack.c.l.b16 %v3017
        %v3518 = vunpack.c.h.b16 %v3017
        %v3519 = vunpack.c.l.b16 %v3018
        %v3520 = vunpack.c.h.b16 %v3018
        %v3521 = vunpack.c.l.b16 %v3019
        %v3522 = vunpack.c.h.b16 %v3019
        %v3523 = vunpack.c.l.b16 %v3020
        %v3524 = vunpack.c.h.b16 %v3020
        %v3525 = vunpack.c.l.b16 %v3021
        %v3526 = vunpack.c.h.b16 %v3021
        %v3527 = vunpack.c.l.b16 %v3022
        %v3528 = vunpack.c.h.b16 %v3022
        %v3529 = vunpack.c.l.b16 %v3023
        %v3530 = vunpack.c.h.b16 %v3023
        %v3531 = vunpack.c.l.b16 %v3024
        %v3532 = vunpack.c.h.b16 %v3024
        %v3533 = vunpack.c.l.b16 %v3025
        %v3534 = vunpack.c.h.b16 %v3025
        %v3535 = vunpack.c.l.b16 %v3026
        %v3536 = vunpack.c.h.b16 %v3026
        %v3537 = vunpack.c.l.b16 %v3027
        %v3538 = vunpack.c.h.b16 %v3027
        %v3539 = vunpack.c.l.b16 %v3028
        %v3540 = vunpack.c.h.b16 %v3028
        %v3541 = vunpack.c.l.b16 %v3029
        %v3542 = vunpack.c.h.b16 %v3029
        %v3543 = vunpack.c.l.b16 %v3030
        %v3544 = vunpack.c.h.b16 %v3030
        %v3545 = vunpack.c.l.b16 %v3031
        %v3546 = vunpack.c.h.b16 %v3031
        %v3547 = vunpack.c.l.b16 %v3032
        %v3548 = vunpack.c.h.b16 %v3032
        %v3549 = vunpack.c.l.b16 %v3033
        %v3550 = vunpack.c.h.b16 %v3033
        %v3551 = vunpack.c.l.b16 %v3034
        %v3552 = vunpack.c.h.b16 %v3034
        %v3553 = vunpack.c.l.b16 %v3035
        %v3554 = vunpack.c.h.b16 %v3035
        %v3555 = vunpack.c.l.b16 %v3036
        %v3556 = vunpack.c.h.b16 %v3036
        %v3557 = vunpack.c.l.b16 %v3037
        %v3558 = vunpack.c.h.b16 %v3037
        %v3559 = vunpack.c.l.b16 %v3038
        %v3560 = vunpack.c.h.b16 %v3038
        %v3561 = vunpack.c.l.b16 %v3039
        %v3562 = vunpack.c.h.b16 %v3039
        %v3563 = vunpack.c.l.b16 %v3040
        %v3564 = vunpack.c.h.b16 %v3040
        %v3565 = vunpack.c.l.b16 %v3041
        %v3566 = vunpack.c.h.b16 %v3041
        %v3567 = vunpack.c.l.b16 %v3042
        %v3568 = vunpack.c.h.b16 %v3042
        %v3569 = vunpack.c.l.b16 %v3043
        %v3570 = vunpack.c.h.b16 %v3043
        %v3571 = vunpack.c.l.b16 %v3044
        %v3572 = vunpack.c.h.b16 %v3044
        %v3573 = vunpack.c.l.b16 %v3045
        %v3574 = vunpack.c.h.b16 %v3045
        %v3575 = vunpack.c.l.b16 %v3046
        %v3576 = vunpack.c.h.b16 %v3046
        %v3577 = vunpack.c.l.b16 %v3047
        %v3578 = vunpack.c.h.b16 %v3047
        %v3579 = vunpack.c.l.b16 %v3048
        %v3580 = vunpack.c.h.b16 %v3048
        %v3581 = vunpack.c.l.b16 %v3049
        %v3582 = vunpack.c.h.b16 %v3049
        %v3583 = vunpack.c.l.b16 %v3050
        %v3584 = vunpack.c.h.b16 %v3050
        %v3585 = vunpack.c.l.b16 %v3051
        %v3586 = vunpack.c.h.b16 %v3051
        %v3587 = vunpack.c.l.b16 %v3052
        %v3588 = vunpack.c.h.b16 %v3052
        %v3589 = vunpack.c.l.b16 %v3053
        %v3590 = vunpack.c.h.b16 %v3053
        %v3591 = vunpack.c.l.b16 %v3054
        %v3592 = vunpack.c.h.b16 %v3054
        %v3593 = vunpack.c.l.b16 %v3055
        %v3594 = vunpack.c.h.b16 %v3055
        %v3595 = vunpack.c.l.b16 %v3056
        %v3596 = vunpack.c.h.b16 %v3056
        %v3597 = vunpack.c.l.b16 %v3057
        %v3598 = vunpack.c.h.b16 %v3057
        %v3599 = vunpack.c.l.b16 %v3058
        %v3600 = vunpack.c.h.b16 %v3058
        %v3601 = vunpack.c.l.b16 %v3059
        %v3602 = vunpack.c.h.b16 %v3059
        %v3603 = vunpack.c.l.b16 %v3060
        %v3604 = vunpack.c.h.b16 %v3060
        %v3605 = vunpack.c.l.b16 %v3061
        %v3606 = vunpack.c.h.b16 %v3061
        %v3607 = vunpack.c.l.b16 %v3062
        %v3608 = vunpack.c.h.b16 %v3062
        %v3609 = vunpack.c.l.b16 %v3063
        %v3610 = vunpack.c.h.b16 %v3063
        %v3611 = vunpack.c.l.b16 %v3064
        %v3612 = vunpack.c.h.b16 %v3064
        %v3613 = vunpack.c.l.b16 %v3065
        %v3614 = vunpack.c.h.b16 %v3065
        %v3615 = vunpack.c.l.b16 %v3066
        %v3616 = vunpack.c.h.b16 %v3066
        %v3617 = vunpack.c.l.b16 %v3067
        %v3618 = vunpack.c.h.b16 %v3067
        %v3619 = vunpack.c.l.b16 %v3068
        %v3620 = vunpack.c.h.b16 %v3068
        %v3621 = vunpack.c.l.b16 %v3069
        %v3622 = vunpack.c.h.b16 %v3069
        %v3623 = vunpack.c.l.b16 %v3070
        %v3624 = vunpack.c.h.b16 %v3070
        %v3625 = vunpack.c.l.b16 %v3071
        %v3626 = vunpack.c.h.b16 %v3071
        %v3627 = vunpack.c.l.b16 %v3072
        %v3628 = vunpack.c.h.b16 %v3072
        %v3629 = vunpack.c.l.b16 %v3073
        %v3630 = vunpack.c.h.b16 %v3073
        %v3631 = vunpack.c.l.b16 %v3074
        %v3632 = vunpack.c.h.b16 %v3074
        %v3633 = vunpack.c.l.b16 %v3075
        %v3634 = vunpack.c.h.b16 %v3075
        %v3635 = vunpack.c.l.b16 %v3076
        %v3636 = vunpack.c.h.b16 %v3076
        %v3637 = vunpack.c.l.b16 %v3077
        %v3638 = vunpack.c.h.b16 %v3077
        %v3639 = vunpack.c.l.b16 %v3078
        %v3640 = vunpack.c.h.b16 %v3078
        %v3641 = vunpack.c.l.b16 %v3079
        %v3642 = vunpack.c.h.b16 %v3079
        %v3643 = vunpack.c.l.b16 %v3080
        %v3644 = vunpack.c.h.b16 %v3080
        %v3645 = vunpack.c.l.b16 %v3081
        %v3646 = vunpack.c.h.b16 %v3081
        %v3647 = vunpack.c.l.b16 %v3082
        %v3648 = vunpack.c.h.b16 %v3082
        %v3649 = vunpack.c.l.b16 %v3083
        %v3650 = vunpack.c.h.b16 %v3083
        %v3651 = vunpack.c.l.b16 %v3084
        %v3652 = vunpack.c.h.b16 %v3084
        %v3653 = vunpack.c.l.b16 %v3085
        %v3654 = vunpack.c.h.b16 %v3085
        %v3655 = vunpack.c.l.b16 %v3086
        %v3656 = vunpack.c.h.b16 %v3086
        %v3657 = vunpack.c.l.b16 %v3087
        %v3658 = vunpack.c.h.b16 %v3087
        %v3659 = vunpack.c.l.b16 %v3088
        %v3660 = vunpack.c.h.b16 %v3088
        %v3661 = vunpack.c.l.b16 %v3089
        %v3662 = vunpack.c.h.b16 %v3089
        %v3663 = vunpack.c.l.b16 %v3090
        %v3664 = vunpack.c.h.b16 %v3090
        %v3665 = vunpack.c.l.b16 %v3091
        %v3666 = vunpack.c.h.b16 %v3091
        %v3667 = vunpack.c.l.b16 %v3092
        %v3668 = vunpack.c.h.b16 %v3092
        %v3669 = vunpack.c.l.b16 %v3093
        %v3670 = vunpack.c.h.b16 %v3093
        %v3671 = vunpack.c.l.b16 %v3094
        %v3672 = vunpack.c.h.b16 %v3094
        %v3673 = vunpack.c.l.b16 %v3095
        %v3674 = vunpack.c.h.b16 %v3095
        %v3675 = vunpack.c.l.b16 %v3096
        %v3676 = vunpack.c.h.b16 %v3096
        %v3677 = vunpack.c.l.b16 %v3097
        %v3678 = vunpack.c.h.b16 %v3097
        %v3679 = vunpack.c.l.b16 %v3098
        %v3680 = vunpack.c.h.b16 %v3098
        %v3681 = vunpack.c.l.b16 %v3099
        %v3682 = vunpack.c.h.b16 %v3099
        %v3683 = vunpack.c.l.b16 %v3100
        %v3684 = vunpack.c.h.b16 %v3100
        %v3685 = vunpack.c.l.b16 %v3101
        %v3686 = vunpack.c.h.b16 %v3101
        %v3687 = vunpack.c.l.b16 %v3102
        %v3688 = vunpack.c.h.b16 %v3102
        %v3689 = vunpack.c.l.b16 %v3103
        %v3690 = vunpack.c.h.b16 %v3103
        %v3691 = vunpack.c.l.b16 %v3104
        %v3692 = vunpack.c.h.b16 %v3104
        %v3693 = vunpack.c.l.b16 %v3105
        %v3694 = vunpack.c.h.b16 %v3105
        %v3695 = vunpack.c.l.b16 %v3106
        %v3696 = vunpack.c.h.b16 %v3106
        %v3697 = vunpack.c.l.b16 %v3107
        %v3698 = vunpack.c.h.b16 %v3107
        %v3699 = vunpack.c.l.b16 %v3108
        %v3700 = vunpack.c.h.b16 %v3108
        %v3701 = vunpack.c.l.b16 %v3109
        %v3702 = vunpack.c.h.b16 %v3109
        %v3703 = vunpack.c.l.b16 %v3110
        %v3704 = vunpack.c.h.b16 %v3110
        %v3705 = vunpack.c.l.b16 %v3111
        %v3706 = vunpack.c.h.b16 %v3111
        %v3707 = vunpack.c.l.b16 %v3112
        %v3708 = vunpack.c.h.b16 %v3112
        %v3709 = vunpack.c.l.b16 %v3113
        %v3710 = vunpack.c.h.b16 %v3113
        %v3711 = vunpack.c.l.b16 %v3114
        %v3712 = vunpack.c.h.b16 %v3114
        %v3713 = vunpack.c.l.b16 %v3115
        %v3714 = vunpack.c.h.b16 %v3115
        %v3715 = vunpack.c.l.b16 %v3116
        %v3716 = vunpack.c.h.b16 %v3116
        %v3717 = vunpack.c.l.b16 %v3117
        %v3718 = vunpack.c.h.b16 %v3117
        %v3719 = vunpack.c.l.b16 %v3118
        %v3720 = vunpack.c.h.b16 %v3118
        %v3721 = vunpack.c.l.b16 %v3119
        %v3722 = vunpack.c.h.b16 %v3119
        %v3723 = vunpack.c.l.b16 %v3120
        %v3724 = vunpack.c.h.b16 %v3120
        %v3725 = vunpack.c.l.b16 %v3121
        %v3726 = vunpack.c.h.b16 %v3121
        %v3727 = vunpack.c.l.b16 %v3122
        %v3728 = vunpack.c.h.b16 %v3122
        %v3729 = vunpack.c.l.b16 %v3123
        %v3730 = vunpack.c.h.b16 %v3123
        %v3731 = vunpack.c.l.b16 %v3124
        %v3732 = vunpack.c.h.b16 %v3124
        %v3733 = vunpack.c.l.b16 %v3125
        %v3734 = vunpack.c.h.b16 %v3125
        %v3735 = vunpack.c.l.b16 %v3126
        %v3736 = vunpack.c.h.b16 %v3126
        %v3737 = vunpack.c.l.b16 %v3127
        %v3738 = vunpack.c.h.b16 %v3127
        %v3739 = vunpack.c.l.b16 %v3128
        %v3740 = vunpack.c.h.b16 %v3128
        %v3741 = vunpack.c.l.b16 %v3129
        %v3742 = vunpack.c.h.b16 %v3129
        %v3743 = vunpack.c.l.b16 %v3130
        %v3744 = vunpack.c.h.b16 %v3130
        %v3745 = vunpack.c.l.b16 %v3131
        %v3746 = vunpack.c.h.b16 %v3131
        %v3747 = vunpack.c.l.b16 %v3132
        %v3748 = vunpack.c.h.b16 %v3132
        %v3749 = vunpack.c.l.b16 %v3133
        %v3750 = vunpack.c.h.b16 %v3133
        %v3751 = vunpack.c.l.b16 %v3134
        %v3752 = vunpack.c.h.b16 %v3134
        %v3753 = vunpack.c.l.b16 %v3135
        %v3754 = vunpack.c.h.b16 %v3135
        %v3755 = vunpack.c.l.b16 %v3136
        %v3756 = vunpack.c.h.b16 %v3136
        %v3757 = vunpack.c.l.b16 %v3137
        %v3758 = vunpack.c.h.b16 %v3137
        %v3759 = vunpack.c.l.b16 %v3138
        %v3760 = vunpack.c.h.b16 %v3138
        %v3761 = vunpack.c.l.b16 %v3139
        %v3762 = vunpack.c.h.b16 %v3139
        %v3763 = vunpack.c.l.b16 %v3140
        %v3764 = vunpack.c.h.b16 %v3140
        %v3765 = vunpack.c.l.b16 %v3141
        %v3766 = vunpack.c.h.b16 %v3141
        %v3767 = vunpack.c.l.b16 %v3142
        %v3768 = vunpack.c.h.b16 %v3142
        %v3769 = vunpack.c.l.b16 %v3143
        %v3770 = vunpack.c.h.b16 %v3143
        %v3771 = vunpack.c.l.b16 %v3144
        %v3772 = vunpack.c.h.b16 %v3144
        %v3773 = vunpack.c.l.b16 %v3145
        %v3774 = vunpack.c.h.b16 %v3145
        %v3775 = vunpack.c.l.b16 %v3146
        %v3776 = vunpack.c.h.b16 %v3146
        %v3777 = vunpack.c.l.b16 %v3147
        %v3778 = vunpack.c.h.b16 %v3147
        %v3779 = vunpack.c.l.b16 %v3148
        %v3780 = vunpack.c.h.b16 %v3148
        %v3781 = vunpack.c.l.b16 %v3149
        %v3782 = vunpack.c.h.b16 %v3149
        %v3783 = vunpack.c.l.b16 %v3150
        %v3784 = vunpack.c.h.b16 %v3150
        %v3785 = vunpack.c.l.b16 %v3151
        %v3786 = vunpack.c.h.b16 %v3151
        %v3787 = vunpack.c.l.b16 %v3152
        %v3788 = vunpack.c.h.b16 %v3152
        %v3789 = vunpack.c.l.b16 %v3153
        %v3790 = vunpack.c.h.b16 %v3153
        %v3791 = vunpack.c.l.b16 %v3154
        %v3792 = vunpack.c.h.b16 %v3154
        %v3793 = vunpack.c.l.b16 %v3155
        %v3794 = vunpack.c.h.b16 %v3155
        %v3795 = vunpack.c.l.b16 %v3156
        %v3796 = vunpack.c.h.b16 %v3156
        %v3797 = vunpack.c.l.b16 %v3157
        %v3798 = vunpack.c.h.b16 %v3157
        %v3799 = vunpack.c.l.b16 %v3158
        %v3800 = vunpack.c.h.b16 %v3158
        %v3801 = vunpack.c.l.b16 %v3159
        %v3802 = vunpack.c.h.b16 %v3159
        %v3803 = vunpack.c.l.b16 %v3160
        %v3804 = vunpack.c.h.b16 %v3160
        %v3805 = vunpack.c.l.b16 %v3161
        %v3806 = vunpack.c.h.b16 %v3161
        %v3807 = vunpack.c.l.b16 %v3162
        %v3808 = vunpack.c.h.b16 %v3162
        %v3809 = vunpack.c.l.b16 %v3163
        %v3810 = vunpack.c.h.b16 %v3163
        %v3811 = vunpack.c.l.b16 %v3164
        %v3812 = vunpack.c.h.b16 %v3164
        %v3813 = vunpack.c.l.b16 %v3165
        %v3814 = vunpack.c.h.b16 %v3165
        %v3815 = vunpack.c.l.b16 %v3166
        %v3816 = vunpack.c.h.b16 %v3166
        %v3817 = vunpack.c.l.b16 %v3167
        %v3818 = vunpack.c.h.b16 %v3167
        %v3819 = vunpack.c.l.b16 %v3168
        %v3820 = vunpack.c.h.b16 %v3168
        %v3821 = vunpack.c.l.b16 %v3169
        %v3822 = vunpack.c.h.b16 %v3169
        %v3823 = vunpack.c.l.b16 %v3170
        %v3824 = vunpack.c.h.b16 %v3170
        %v3825 = vunpack.c.l.b16 %v3171
        %v3826 = vunpack.c.h.b16 %v3171
        %v3827 = vunpack.c.l.b16 %v3172
        %v3828 = vunpack.c.h.b16 %v3172
        %v3829 = vunpack.c.l.b16 %v3173
        %v3830 = vunpack.c.h.b16 %v3173
        %v3831 = vunpack.c.l.b16 %v3174
        %v3832 = vunpack.c.h.b16 %v3174
        %v3833 = vunpack.c.l.b16 %v3175
        %v3834 = vunpack.c.h.b16 %v3175
        %v3835 = vunpack.c.l.b16 %v3176
        %v3836 = vunpack.c.h.b16 %v3176
        %v3837 = vunpack.c.l.b16 %v3177
        %v3838 = vunpack.c.h.b16 %v3177
        %v3839 = vunpack.c.l.b16 %v3178
        %v3840 = vunpack.c.h.b16 %v3178
        %v3841 = vunpack.c.l.b16 %v3179
        %v3842 = vunpack.c.h.b16 %v3179
        %v3843 = vunpack.c.l.b16 %v3180
        %v3844 = vunpack.c.h.b16 %v3180
        %v3845 = vunpack.c.l.b16 %v3181
        %v3846 = vunpack.c.h.b16 %v3181
        %v3847 = vunpack.c.l.b16 %v3182
        %v3848 = vunpack.c.h.b16 %v3182
        %v3849 = vunpack.c.l.b16 %v3183
        %v3850 = vunpack.c.h.b16 %v3183
        %v3851 = vunpack.c.l.b16 %v3184
        %v3852 = vunpack.c.h.b16 %v3184
        %v3853 = vunpack.c.l.b16 %v3185
        %v3854 = vunpack.c.h.b16 %v3185
        %v3855 = vunpack.c.l.b16 %v3186
        %v3856 = vunpack.c.h.b16 %v3186
        %v3857 = vunpack.c.l.b16 %v3187
        %v3858 = vunpack.c.h.b16 %v3187
        %v3859 = vunpack.c.l.b16 %v3188
        %v3860 = vunpack.c.h.b16 %v3188
        %v3861 = vunpack.c.l.b16 %v3189
        %v3862 = vunpack.c.h.b16 %v3189
        %v3863 = vunpack.c.l.b16 %v3190
        %v3864 = vunpack.c.h.b16 %v3190
        %v3865 = vunpack.c.l.b16 %v3191
        %v3866 = vunpack.c.h.b16 %v3191
        %v3867 = vunpack.c.l.b16 %v3192
        %v3868 = vunpack.c.h.b16 %v3192
        %v3869 = vunpack.c.l.b16 %v3193
        %v3870 = vunpack.c.h.b16 %v3193
        %v3871 = vunpack.c.l.b16 %v3194
        %v3872 = vunpack.c.h.b16 %v3194
        %v3873 = vunpack.c.l.b16 %v3195
        %v3874 = vunpack.c.h.b16 %v3195
        %v3875 = vunpack.c.l.b16 %v3196
        %v3876 = vunpack.c.h.b16 %v3196
        %v3877 = vunpack.c.l.b16 %v3197
        %v3878 = vunpack.c.h.b16 %v3197
        %v3879 = vunpack.c.l.b16 %v3198
        %v3880 = vunpack.c.h.b16 %v3198
        %v3881 = vunpack.c.l.b16 %v3199
        %v3882 = vunpack.c.h.b16 %v3199
        %v3883 = vunpack.c.l.b16 %v3200
        %v3884 = vunpack.c.h.b16 %v3200
        %v3885 = vunpack.c.l.b16 %v3201
        %v3886 = vunpack.c.h.b16 %v3201
        %v3887 = vunpack.c.l.b16 %v3202
        %v3888 = vunpack.c.h.b16 %v3202
        %v3889 = vunpack.c.l.b16 %v3203
        %v3890 = vunpack.c.h.b16 %v3203
        %v3891 = vunpack.c.l.b16 %v3204
        %v3892 = vunpack.c.h.b16 %v3204
        %v3893 = vunpack.c.l.b16 %v3205
        %v3894 = vunpack.c.h.b16 %v3205
        %v3895 = vunpack.c.l.b16 %v3206
        %v3896 = vunpack.c.h.b16 %v3206
        %v3897 = vunpack.c.l.b16 %v3207
        %v3898 = vunpack.c.h.b16 %v3207
        %v3899 = vunpack.c.l.b16 %v3208
        %v3900 = vunpack.c.h.b16 %v3208
        %v3901 = vunpack.c.l.b16 %v3209
        %v3902 = vunpack.c.h.b16 %v3209
        %v3903 = vunpack.c.l.b16 %v3210
        %v3904 = vunpack.c.h.b16 %v3210
        %v3905 = vunpack.c.l.b16 %v3211
        %v3906 = vunpack.c.h.b16 %v3211
        %v3907 = vunpack.c.l.b16 %v3212
        %v3908 = vunpack.c.h.b16 %v3212
        %v3909 = vunpack.c.l.b16 %v3213
        %v3910 = vunpack.c.h.b16 %v3213
        %v3911 = vunpack.c.l.b16 %v3214
        %v3912 = vunpack.c.h.b16 %v3214
        %v3913 = vunpack.c.l.b16 %v3215
        %v3914 = vunpack.c.h.b16 %v3215
        %v3915 = vunpack.c.l.b16 %v3216
        %v3916 = vunpack.c.h.b16 %v3216
        %v3917 = vunpack.c.l.b16 %v3217
        %v3918 = vunpack.c.h.b16 %v3217
        %v3919 = vunpack.c.l.b16 %v3218
        %v3920 = vunpack.c.h.b16 %v3218
        %v3921 = vunpack.c.l.b16 %v3219
        %v3922 = vunpack.c.h.b16 %v3219
        %v3923 = vunpack.c.l.b16 %v3220
        %v3924 = vunpack.c.h.b16 %v3220
        %v3925 = vunpack.c.l.b16 %v3221
        %v3926 = vunpack.c.h.b16 %v3221
        %v3927 = vunpack.c.l.b16 %v3222
        %v3928 = vunpack.c.h.b16 %v3222
        %v3929 = vunpack.c.l.b16 %v3223
        %v3930 = vunpack.c.h.b16 %v3223
        %v3931 = vunpack.c.l.b16 %v3224
        %v3932 = vunpack.c.h.b16 %v3224
        %v3933 = vunpack.c.l.b16 %v3225
        %v3934 = vunpack.c.h.b16 %v3225
        %v3935 = vunpack.c.l.b16 %v3226
        %v3936 = vunpack.c.h.b16 %v3226
        %v3937 = vunpack.c.l.b16 %v3227
        %v3938 = vunpack.c.h.b16 %v3227
        %v3939 = vunpack.c.l.b16 %v3228
        %v3940 = vunpack.c.h.b16 %v3228
        %v3941 = vunpack.c.l.b16 %v3229
        %v3942 = vunpack.c.h.b16 %v3229
        %v3943 = vunpack.c.l.b16 %v3230
        %v3944 = vunpack.c.h.b16 %v3230
        %v3945 = vunpack.c.l.b16 %v3231
        %v3946 = vunpack.c.h.b16 %v3231
        %v3947 = vunpack.c.l.b16 %v3232
        %v3948 = vunpack.c.h.b16 %v3232
        %v3949 = vunpack.c.l.b16 %v3233
        %v3950 = vunpack.c.h.b16 %v3233
        %v3951 = vunpack.c.l.b16 %v3234
        %v3952 = vunpack.c.h.b16 %v3234
        %v3953 = vunpack.c.l.b16 %v3235
        %v3954 = vunpack.c.h.b16 %v3235
        %v3955 = vunpack.c.l.b16 %v3236
        %v3956 = vunpack.c.h.b16 %v3236
        %v3957 = vpack.c.b16 %v3483, %v3477
        %v3958 = vpack.c.b16 %v3484, %v3478
        %v3959 = vpack.c.b16 %v3485, %v3479
        %v3960 = vpack.c.b16 %v3486, %v3480
        %v3961 = vpack.c.b16 %v3487, %v3481
        %v3962 = vpack.c.b16 %v3488, %v3482
        %v3963 = vpack.c.b16 %v3495, %v3489
        %v3964 = vpack.c.b16 %v3496, %v3490
        %v3965 = vpack.c.b16 %v3497, %v3491
        %v3966 = vpack.c.b16 %v3498, %v3492
        %v3967 = vpack.c.b16 %v3499, %v3493
        %v3968 = vpack.c.b16 %v3500, %v3494
        %v3969 = vpack.c.b16 %v3507, %v3501
        %v3970 = vpack.c.b16 %v3508, %v3502
        %v3971 = vpack.c.b16 %v3509, %v3503
        %v3972 = vpack.c.b16 %v3510, %v3504
        %v3973 = vpack.c.b16 %v3511, %v3505
        %v3974 = vpack.c.b16 %v3512, %v3506
        %v3975 = vpack.c.b16 %v3519, %v3513
        %v3976 = vpack.c.b16 %v3520, %v3514
        %v3977 = vpack.c.b16 %v3521, %v3515
        %v3978 = vpack.c.b16 %v3522, %v3516
        %v3979 = vpack.c.b16 %v3523, %v3517
        %v3980 = vpack.c.b16 %v3524, %v3518
        %v3981 = vpack.c.b16 %v3531, %v3525
        %v3982 = vpack.c.b16 %v3532, %v3526
        %v3983 = vpack.c.b16 %v3533, %v3527
        %v3984 = vpack.c.b16 %v3534, %v3528
        %v3985 = vpack.c.b16 %v3535, %v3529
        %v3986 = vpack.c.b16 %v3536, %v3530
        %v3987 = vpack.c.b16 %v3543, %v3537
        %v3988 = vpack.c.b16 %v3544, %v3538
        %v3989 = vpack.c.b16 %v3545, %v3539
        %v3990 = vpack.c.b16 %v3546, %v3540
        %v3991 = vpack.c.b16 %v3547, %v3541
        %v3992 = vpack.c.b16 %v3548, %v3542
        %v3993 = vpack.c.b16 %v3555, %v3549
        %v3994 = vpack.c.b16 %v3556, %v3550
        %v3995 = vpack.c.b16 %v3557, %v3551
        %v3996 = vpack.c.b16 %v3558, %v3552
        %v3997 = vpack.c.b16 %v3559, %v3553
        %v3998 = vpack.c.b16 %v3560, %v3554
        %v3999 = vpack.c.b16 %v3567, %v3561
        %v4000 = vpack.c.b16 %v3568, %v3562
        %v4001 = vpack.c.b16 %v3569, %v3563
        %v4002 = vpack.c.b16 %v3570, %v3564
        %v4003 = vpack.c.b16 %v3571, %v3565
        %v4004 = vpack.c.b16 %v3572, %v3566
        %v4005 = vpack.c.b16 %v3579, %v3573
        %v4006 = vpack.c.b16 %v3580, %v3574
        %v4007 = vpack.c.b16 %v3581, %v3575
        %v4008 = vpack.c.b16 %v3582, %v3576
        %v4009 = vpack.c.b16 %v3583, %v3577
        %v4010 = vpack.c.b16 %v3584, %v3578
        %v4011 = vpack.c.b16 %v3591, %v3585
        %v4012 = vpack.c.b16 %v3592, %v3586
        %v4013 = vpack.c.b16 %v3593, %v3587
        %v4014 = vpack.c.b16 %v3594, %v3588
        %v4015 = vpack.c.b16 %v3595, %v3589
        %v4016 = vpack.c.b16 %v3596, %v3590
        %v4017 = vpack.c.b16 %v3603, %v3597
        %v4018 = vpack.c.b16 %v3604, %v3598
        %v4019 = vpack.c.b16 %v3605, %v3599
        %v4020 = vpack.c.b16 %v3606, %v3600
        %v4021 = vpack.c.b16 %v3607, %v3601
        %v4022 = vpack.c.b16 %v3608, %v3602
        %v4023 = vpack.c.b16 %v3615, %v3609
        %v4024 = vpack.c.b16 %v3616, %v3610
        %v4025 = vpack.c.b16 %v3617, %v3611
        %v4026 = vpack.c.b16 %v3618, %v3612
        %v4027 = vpack.c.b16 %v3619, %v3613
        %v4028 = vpack.c.b16 %v3620, %v3614
        %v4029 = vpack.c.b16 %v3627, %v3621
        %v4030 = vpack.c.b16 %v3628, %v3622
        %v4031 = vpack.c.b16 %v3629, %v3623
        %v4032 = vpack.c.b16 %v3630, %v3624
        %v4033 = vpack.c.b16 %v3631, %v3625
        %v4034 = vpack.c.b16 %v3632, %v3626
        %v4035 = vpack.c.b16 %v3639, %v3633
        %v4036 = vpack.c.b16 %v3640, %v3634
        %v4037 = vpack.c.b16 %v3641, %v3635
        %v4038 = vpack.c.b16 %v3642, %v3636
        %v4039 = vpack.c.b16 %v3643, %v3637
        %v4040 = vpack.c.b16 %v3644, %v3638
        %v4041 = vpack.c.b16 %v3651, %v3645
        %v4042 = vpack.c.b16 %v3652, %v3646
        %v4043 = vpack.c.b16 %v3653, %v3647
        %v4044 = vpack.c.b16 %v3654, %v3648
        %v4045 = vpack.c.b16 %v3655, %v3649
        %v4046 = vpack.c.b16 %v3656, %v3650
        %v4047 = vpack.c.b16 %v3663, %v3657
        %v4048 = vpack.c.b16 %v3664, %v3658
        %v4049 = vpack.c.b16 %v3665, %v3659
        %v4050 = vpack.c.b16 %v3666, %v3660
        %v4051 = vpack.c.b16 %v3667, %v3661
        %v4052 = vpack.c.b16 %v3668, %v3662
        %v4053 = vpack.c.b16 %v3675, %v3669
        %v4054 = vpack.c.b16 %v3676, %v3670
        %v4055 = vpack.c.b16 %v3677, %v3671
        %v4056 = vpack.c.b16 %v3678, %v3672
        %v4057 = vpack.c.b16 %v3679, %v3673
        %v4058 = vpack.c.b16 %v3680, %v3674
        %v4059 = vpack.c.b16 %v3687, %v3681
        %v4060 = vpack.c.b16 %v3688, %v3682
        %v4061 = vpack.c.b16 %v3689, %v3683
        %v4062 = vpack.c.b16 %v3690, %v3684
        %v4063 = vpack.c.b16 %v3691, %v3685
        %v4064 = vpack.c.b16 %v3692, %v3686
        %v4065 = vpack.c.b16 %v3699, %v3693
        %v4066 = vpack.c.b16 %v3700, %v3694
        %v4067 = vpack.c.b16 %v3701, %v3695
        %v4068 = vpack.c.b16 %v3702, %v3696
        %v4069 = vpack.c.b16 %v3703, %v3697
        %v4070 = vpack.c.b16 %v3704, %v3698
        %v4071 = vpack.c.b16 %v3711, %v3705
        %v4072 = vpack.c.b16 %v3712, %v3706
        %v4073 = vpack.c.b16 %v3713, %v3707
        %v4074 = vpack.c.b16 %v3714, %v3708
        %v4075 = vpack.c.b16 %v3715, %v3709
        %v4076 = vpack.c.b16 %v3716, %v3710
        %v4077 = vpack.c.b16 %v3723, %v3717
        %v4078 = vpack.c.b16 %v3724, %v3718
        %v4079 = vpack.c.b16 %v3725, %v3719
        %v4080 = vpack.c.b16 %v3726, %v3720
        %v4081 = vpack.c.b16 %v3727, %v3721
        %v4082 = vpack.c.b16 %v3728, %v3722
        %v4083 = vpack.c.b16 %v3735, %v3729
        %v4084 = vpack.c.b16 %v3736, %v3730
        %v4085 = vpack.c.b16 %v3737, %v3731
        %v4086 = vpack.c.b16 %v3738, %v3732
        %v4087 = vpack.c.b16 %v3739, %v3733
        %v4088 = vpack.c.b16 %v3740, %v3734
        %v4089 = vpack.c.b16 %v3747, %v3741
        %v4090 = vpack.c.b16 %v3748, %v3742
        %v4091 = vpack.c.b16 %v3749, %v3743
        %v4092 = vpack.c.b16 %v3750, %v3744
        %v4093 = vpack.c.b16 %v3751, %v3745
        %v4094 = vpack.c.b16 %v3752, %v3746
        %v4095 = vpack.c.b16 %v3759, %v3753
        %v4096 = vpack.c.b16 %v3760, %v3754
        %v4097 = vpack.c.b16 %v3761, %v3755
        %v4098 = vpack.c.b16 %v3762, %v3756
        %v4099 = vpack.c.b16 %v3763, %v3757
        %v4100 = vpack.c.b16 %v3764, %v3758
        %v4101 = vpack.c.b16 %v3771, %v3765
        %v4102 = vpack.c.b16 %v3772, %v3766
        %v4103 = vpack.c.b16 %v3773, %v3767
        %v4104 = vpack.c.b16 %v3774, %v3768
        %v4105 = vpack.c.b16 %v3775, %v3769
        %v4106 = vpack.c.b16 %v3776, %v3770
        %v4107 = vpack.c.b16 %v3783, %v3777
        %v4108 = vpack.c.b16 %v3784, %v3778
        %v4109 = vpack.c.b16 %v3785, %v3779
        %v4110 = vpack.c.b16 %v3786, %v3780
        %v4111 = vpack.c.b16 %v3787, %v3781
        %v4112 = vpack.c.b16 %v3788, %v3782
        %v4113 = vpack.c.b16 %v3795, %v3789
        %v4114 = vpack.c.b16 %v3796, %v3790
        %v4115 = vpack.c.b16 %v3797, %v3791
        %v4116 = vpack.c.b16 %v3798, %v3792
        %v4117 = vpack.c.b16 %v3799, %v3793
        %v4118 = vpack.c.b16 %v3800, %v3794
        %v4119 = vpack.c.b16 %v3807, %v3801
        %v4120 = vpack.c.b16 %v3808, %v3802
        %v4121 = vpack.c.b16 %v3809, %v3803
        %v4122 = vpack.c.b16 %v3810, %v3804
        %v4123 = vpack.c.b16 %v3811, %v3805
        %v4124 = vpack.c.b16 %v3812, %v3806
        %v4125 = vpack.c.b16 %v3819, %v3813
        %v4126 = vpack.c.b16 %v3820, %v3814
        %v4127 = vpack.c.b16 %v3821, %v3815
        %v4128 = vpack.c.b16 %v3822, %v3816
        %v4129 = vpack.c.b16 %v3823, %v3817
        %v4130 = vpack.c.b16 %v3824, %v3818
        %v4131 = vpack.c.b16 %v3831, %v3825
        %v4132 = vpack.c.b16 %v3832, %v3826
        %v4133 = vpack.c.b16 %v3833, %v3827
        %v4134 = vpack.c.b16 %v3834, %v3828
        %v4135 = vpack.c.b16 %v3835, %v3829
        %v4136 = vpack.c.b16 %v3836, %v3830
        %v4137 = vpack.c.b16 %v3843, %v3837
        %v4138 = vpack.c.b16 %v3844, %v3838
        %v4139 = vpack.c.b16 %v3845, %v3839
        %v4140 = vpack.c.b16 %v3846, %v3840
        %v4141 = vpack.c.b16 %v3847, %v3841
        %v4142 = vpack.c.b16 %v3848, %v3842
        %v4143 = vpack.c.b16 %v3855, %v3849
        %v4144 = vpack.c.b16 %v3856, %v3850
        %v4145 = vpack.c.b16 %v3857, %v3851
        %v4146 = vpack.c.b16 %v3858, %v3852
        %v4147 = vpack.c.b16 %v3859, %v3853
        %v4148 = vpack.c.b16 %v3860, %v3854
        %v4149 = vpack.c.b16 %v3867, %v3861
        %v4150 = vpack.c.b16 %v3868, %v3862
        %v4151 = vpack.c.b16 %v3869, %v3863
        %v4152 = vpack.c.b16 %v3870, %v3864
        %v4153 = vpack.c.b16 %v3871, %v3865
        %v4154 = vpack.c.b16 %v3872, %v3866
        %v4155 = vpack.c.b16 %v3879, %v3873
        %v4156 = vpack.c.b16 %v3880, %v3874
        %v4157 = vpack.c.b16 %v3881, %v3875
        %v4158 = vpack.c.b16 %v3882, %v3876
        %v4159 = vpack.c.b16 %v3883, %v3877
        %v4160 = vpack.c.b16 %v3884, %v3878
        %v4161 = vpack.c.b16 %v3891, %v3885
        %v4162 = vpack.c.b16 %v3892, %v3886
        %v4163 = vpack.c.b16 %v3893, %v3887
        %v4164 = vpack.c.b16 %v3894, %v3888
        %v4165 = vpack.c.b16 %v3895, %v3889
        %v4166 = vpack.c.b16 %v3896, %v3890
        %v4167 = vpack.c.b16 %v3903, %v3897
        %v4168 = vpack.c.b16 %v3904, %v3898
        %v4169 = vpack.c.b16 %v3905, %v3899
        %v4170 = vpack.c.b16 %v3906, %v3900
        %v4171 = vpack.c.b16 %v3907, %v3901
        %v4172 = vpack.c.b16 %v3908, %v3902
        %v4173 = vpack.c.b16 %v3915, %v3909
        %v4174 = vpack.c.b16 %v3916, %v3910
        %v4175 = vpack.c.b16 %v3917, %v3911
        %v4176 = vpack.c.b16 %v3918, %v3912
        %v4177 = vpack.c.b16 %v3919, %v3913
        %v4178 = vpack.c.b16 %v3920, %v3914
        %v4179 = vpack.c.b16 %v3927, %v3921
        %v4180 = vpack.c.b16 %v3928, %v3922
        %v4181 = vpack.c.b16 %v3929, %v3923
        %v4182 = vpack.c.b16 %v3930, %v3924
        %v4183 = vpack.c.b16 %v3931, %v3925
        %v4184 = vpack.c.b16 %v3932, %v3926
        %v4185 = vpack.c.b16 %v3939, %v3933
        %v4186 = vpack.c.b16 %v3940, %v3934
        %v4187 = vpack.c.b16 %v3941, %v3935
        %v4188 = vpack.c.b16 %v3942, %v3936
        %v4189 = vpack.c.b16 %v3943, %v3937
        %v4190 = vpack.c.b16 %v3944, %v3938
        %v4191 = vpack.c.b16 %v3951, %v3945
        %v4192 = vpack.c.b16 %v3952, %v3946
        %v4193 = vpack.c.b16 %v3953, %v3947
        %v4194 = vpack.c.b16 %v3954, %v3948
        %v4195 = vpack.c.b16 %v3955, %v3949
        %v4196 = vpack.c.b16 %v3956, %v3950
        %4437 = vmatprep.subr.bf16.mxu0 %v3958
        %4438 = vmatpush1.bf16.msra.mxu0 %v3957
        %4439 = vmatprep.subr.bf16.mxu0 %v3964
        %4440 = vmatpush1.bf16.msra.mxu0 %v3963
        %4441 = vmatprep.subr.bf16.mxu0 %v3970
        %4442 = vmatpush1.bf16.msra.mxu0 %v3969
        %4443 = vmatprep.subr.bf16.mxu0 %v3976
        %4444 = vmatpush1.bf16.msra.mxu0 %v3975
        %4445 = vmatprep.subr.bf16.mxu0 %v3982
        %4446 = vmatpush1.bf16.msra.mxu0 %v3981
        %4447 = vmatprep.subr.bf16.mxu0 %v3988
        %4448 = vmatpush1.bf16.msra.mxu0 %v3987
        %4449 = vmatprep.subr.bf16.mxu0 %v3994
        %4450 = vmatpush1.bf16.msra.mxu0 %v3993
        %4451 = vmatprep.subr.bf16.mxu0 %v4000
        %4452 = vmatpush1.bf16.msra.mxu0 %v3999
        %4453 = vmatprep.subr.bf16.mxu0 %v4006
        %4454 = vmatpush1.bf16.msra.mxu0 %v4005
        %4455 = vmatprep.subr.bf16.mxu0 %v4012
        %4456 = vmatpush1.bf16.msra.mxu0 %v4011
        %4457 = vmatprep.subr.bf16.mxu0 %v4018
        %4458 = vmatpush1.bf16.msra.mxu0 %v4017
        %4459 = vmatprep.subr.bf16.mxu0 %v4024
        %4460 = vmatpush1.bf16.msra.mxu0 %v4023
        %4461 = vmatprep.subr.bf16.mxu0 %v4030
        %4462 = vmatpush1.bf16.msra.mxu0 %v4029
        %4463 = vmatprep.subr.bf16.mxu0 %v4036
        %4464 = vmatpush1.bf16.msra.mxu0 %v4035
        %4465 = vmatprep.subr.bf16.mxu0 %v4042
        %4466 = vmatpush1.bf16.msra.mxu0 %v4041
        %4467 = vmatprep.subr.bf16.mxu0 %v4048
        %4468 = vmatpush1.bf16.msra.mxu0 %v4047
        %4469 = vmatprep.mubr.bf16.mxu0 %v2993
        %4470 = vmatmul.mubr.bf16.gmra.mrb[0].mxu0 %v2992
        %v4471 = vpop.f32.mrb[0].mxu0
        %v4472 = vadd.f32 0.0, %v4471
        %v4473 = vpop.f32.mrb[0].mxu0
        %v4474 = vadd.f32 0.0, %v4473
        %v4475 = vpop.f32.mrb[0].mxu0
        %v4476 = vadd.f32 0.0, %v4475
        %v4477 = vpop.f32.mrb[0].mxu0
        %v4478 = vadd.f32 0.0, %v4477
        %4479 = vdwg.mxu0
        %4480 = vmatprep.subr.bf16.mxu0 %v4054
        %4481 = vmatpush1.bf16.msra.mxu0 %v4053
        %4482 = vmatprep.subr.bf16.mxu0 %v4060
        %4483 = vmatpush1.bf16.msra.mxu0 %v4059
        %4484 = vmatprep.subr.bf16.mxu0 %v4066
        %4485 = vmatpush1.bf16.msra.mxu0 %v4065
        %4486 = vmatprep.subr.bf16.mxu0 %v4072
        %4487 = vmatpush1.bf16.msra.mxu0 %v4071
        %4488 = vmatprep.subr.bf16.mxu0 %v4078
        %4489 = vmatpush1.bf16.msra.mxu0 %v4077
        %4490 = vmatprep.subr.bf16.mxu0 %v4084
        %4491 = vmatpush1.bf16.msra.mxu0 %v4083
        %4492 = vmatprep.subr.bf16.mxu0 %v4090
        %4493 = vmatpush1.bf16.msra.mxu0 %v4089
        %4494 = vmatprep.subr.bf16.mxu0 %v4096
        %4495 = vmatpush1.bf16.msra.mxu0 %v4095
        %4496 = vmatprep.subr.bf16.mxu0 %v4102
        %4497 = vmatpush1.bf16.msra.mxu0 %v4101
        %4498 = vmatprep.subr.bf16.mxu0 %v4108
        %4499 = vmatpush1.bf16.msra.mxu0 %v4107
        %4500 = vmatprep.subr.bf16.mxu0 %v4114
        %4501 = vmatpush1.bf16.msra.mxu0 %v4113
        %4502 = vmatprep.subr.bf16.mxu0 %v4120
        %4503 = vmatpush1.bf16.msra.mxu0 %v4119
        %4504 = vmatprep.subr.bf16.mxu0 %v4126
        %4505 = vmatpush1.bf16.msra.mxu0 %v4125
        %4506 = vmatprep.subr.bf16.mxu0 %v4132
        %4507 = vmatpush1.bf16.msra.mxu0 %v4131
        %4508 = vmatprep.subr.bf16.mxu0 %v4138
        %4509 = vmatpush1.bf16.msra.mxu0 %v4137
        %4510 = vmatprep.subr.bf16.mxu0 %v4144
        %4511 = vmatpush1.bf16.msra.mxu0 %v4143
        %4512 = vmatprep.mubr.bf16.mxu0 %v2995
        %4513 = vmatmul.mubr.bf16.gmra.mrb[0].mxu0 %v2994
        %v4514 = vpop.f32.mrb[0].mxu0
        %v4515 = vadd.f32 %v4472, %v4514
        %v4516 = vpop.f32.mrb[0].mxu0
        %v4517 = vadd.f32 %v4474, %v4516
        %v4518 = vpop.f32.mrb[0].mxu0
        %v4519 = vadd.f32 %v4476, %v4518
        %v4520 = vpop.f32.mrb[0].mxu0
        %v4521 = vadd.f32 %v4478, %v4520
        %4522 = vdwg.mxu0
        %4523 = vmatprep.subr.bf16.mxu0 %v4150
        %4524 = vmatpush1.bf16.msra.mxu0 %v4149
        %4525 = vmatprep.subr.bf16.mxu0 %v4156
        %4526 = vmatpush1.bf16.msra.mxu0 %v4155
        %4527 = vmatprep.subr.bf16.mxu0 %v4162
        %4528 = vmatpush1.bf16.msra.mxu0 %v4161
        %4529 = vmatprep.subr.bf16.mxu0 %v4168
        %4530 = vmatpush1.bf16.msra.mxu0 %v4167
        %4531 = vmatprep.subr.bf16.mxu0 %v4174
        %4532 = vmatpush1.bf16.msra.mxu0 %v4173
        %4533 = vmatprep.subr.bf16.mxu0 %v4180
        %4534 = vmatpush1.bf16.msra.mxu0 %v4179
        %4535 = vmatprep.subr.bf16.mxu0 %v4186
        %4536 = vmatpush1.bf16.msra.mxu0 %v4185
        %4537 = vmatprep.subr.bf16.mxu0 %v4192
        %4538 = vmatpush1.bf16.msra.mxu0 %v4191
        %4539 = vmatprep.subr.bf16.mxu0 0
        %4540 = vmatpush1.bf16.msra.mxu0 0
        %4541 = vmatprep.subr.bf16.mxu0 0
        %4542 = vmatpush1.bf16.msra.mxu0 0
        %4543 = vmatprep.subr.bf16.mxu0 0
        %4544 = vmatpush1.bf16.msra.mxu0 0
        %4545 = vmatprep.subr.bf16.mxu0 0
        %4546 = vmatpush1.bf16.msra.mxu0 0
        %4547 = vmatprep.subr.bf16.mxu0 0
        %4548 = vmatpush1.bf16.msra.mxu0 0
        %4549 = vmatprep.subr.bf16.mxu0 0
        %4550 = vmatpush1.bf16.msra.mxu0 0
        %4551 = vmatprep.subr.bf16.mxu0 0
        %4552 = vmatpush1.bf16.msra.mxu0 0
        %4553 = vmatprep.subr.bf16.mxu0 0
        %4554 = vmatpush1.bf16.msra.mxu0 0
        %4555 = vmatprep.mubr.bf16.mxu0 0
        %4556 = vmatmul.mubr.bf16.gmra.mrb[0].mxu0 %v2996
        %v4557 = vpop.f32.mrb[0].mxu0
        %v4558 = vadd.f32 %v4515, %v4557
        %v4559 = vpop.f32.mrb[0].mxu0
        %v4560 = vadd.f32 %v4517, %v4559
        %v4561 = vpop.f32.mrb[0].mxu0
        %v4562 = vadd.f32 %v4519, %v4561
        %v4563 = vpop.f32.mrb[0].mxu0
        %v4564 = vadd.f32 %v4521, %v4563
        %4565 = vdwg.mxu0
        %4566 = vmatprep.subr.bf16.mxu0 %v3960
        %4567 = vmatpush1.bf16.msra.mxu0 %v3959
        %4568 = vmatprep.subr.bf16.mxu0 %v3966
        %4569 = vmatpush1.bf16.msra.mxu0 %v3965
        %4570 = vmatprep.subr.bf16.mxu0 %v3972
        %4571 = vmatpush1.bf16.msra.mxu0 %v3971
        %4572 = vmatprep.subr.bf16.mxu0 %v3978
        %4573 = vmatpush1.bf16.msra.mxu0 %v3977
        %4574 = vmatprep.subr.bf16.mxu0 %v3984
        %4575 = vmatpush1.bf16.msra.mxu0 %v3983
        %4576 = vmatprep.subr.bf16.mxu0 %v3990
        %4577 = vmatpush1.bf16.msra.mxu0 %v3989
        %4578 = vmatprep.subr.bf16.mxu0 %v3996
        %4579 = vmatpush1.bf16.msra.mxu0 %v3995
        %4580 = vmatprep.subr.bf16.mxu0 %v4002
        %4581 = vmatpush1.bf16.msra.mxu0 %v4001
        %4582 = vmatprep.subr.bf16.mxu0 %v4008
        %4583 = vmatpush1.bf16.msra.mxu0 %v4007
        %4584 = vmatprep.subr.bf16.mxu0 %v4014
        %4585 = vmatpush1.bf16.msra.mxu0 %v4013
        %4586 = vmatprep.subr.bf16.mxu0 %v4020
        %4587 = vmatpush1.bf16.msra.mxu0 %v4019
        %4588 = vmatprep.subr.bf16.mxu0 %v4026
        %4589 = vmatpush1.bf16.msra.mxu0 %v4025
        %4590 = vmatprep.subr.bf16.mxu0 %v4032
        %4591 = vmatpush1.bf16.msra.mxu0 %v4031
        %4592 = vmatprep.subr.bf16.mxu0 %v4038
        %4593 = vmatpush1.bf16.msra.mxu0 %v4037
        %4594 = vmatprep.subr.bf16.mxu0 %v4044
        %4595 = vmatpush1.bf16.msra.mxu0 %v4043
        %4596 = vmatprep.subr.bf16.mxu0 %v4050
        %4597 = vmatpush1.bf16.msra.mxu0 %v4049
        %4598 = vmatprep.mubr.bf16.mxu0 %v2993
        %4599 = vmatmul.mubr.bf16.gmra.mrb[0].mxu0 %v2992
        %v4600 = vpop.f32.mrb[0].mxu0
        %v4601 = vadd.f32 0.0, %v4600
        %v4602 = vpop.f32.mrb[0].mxu0
        %v4603 = vadd.f32 0.0, %v4602
        %v4604 = vpop.f32.mrb[0].mxu0
        %v4605 = vadd.f32 0.0, %v4604
        %v4606 = vpop.f32.mrb[0].mxu0
        %v4607 = vadd.f32 0.0, %v4606
        %4608 = vdwg.mxu0
        %4609 = vmatprep.subr.bf16.mxu0 %v4056
        %4610 = vmatpush1.bf16.msra.mxu0 %v4055
        %4611 = vmatprep.subr.bf16.mxu0 %v4062
        %4612 = vmatpush1.bf16.msra.mxu0 %v4061
        %4613 = vmatprep.subr.bf16.mxu0 %v4068
        %4614 = vmatpush1.bf16.msra.mxu0 %v4067
        %4615 = vmatprep.subr.bf16.mxu0 %v4074
        %4616 = vmatpush1.bf16.msra.mxu0 %v4073
        %4617 = vmatprep.subr.bf16.mxu0 %v4080
        %4618 = vmatpush1.bf16.msra.mxu0 %v4079
        %4619 = vmatprep.subr.bf16.mxu0 %v4086
        %4620 = vmatpush1.bf16.msra.mxu0 %v4085
        %4621 = vmatprep.subr.bf16.mxu0 %v4092
        %4622 = vmatpush1.bf16.msra.mxu0 %v4091
        %4623 = vmatprep.subr.bf16.mxu0 %v4098
        %4624 = vmatpush1.bf16.msra.mxu0 %v4097
        %4625 = vmatprep.subr.bf16.mxu0 %v4104
        %4626 = vmatpush1.bf16.msra.mxu0 %v4103
        %4627 = vmatprep.subr.bf16.mxu0 %v4110
        %4628 = vmatpush1.bf16.msra.mxu0 %v4109
        %4629 = vmatprep.subr.bf16.mxu0 %v4116
        %4630 = vmatpush1.bf16.msra.mxu0 %v4115
        %4631 = vmatprep.subr.bf16.mxu0 %v4122
        %4632 = vmatpush1.bf16.msra.mxu0 %v4121
        %4633 = vmatprep.subr.bf16.mxu0 %v4128
        %4634 = vmatpush1.bf16.msra.mxu0 %v4127
        %4635 = vmatprep.subr.bf16.mxu0 %v4134
        %4636 = vmatpush1.bf16.msra.mxu0 %v4133
        %4637 = vmatprep.subr.bf16.mxu0 %v4140
        %4638 = vmatpush1.bf16.msra.mxu0 %v4139
        %4639 = vmatprep.subr.bf16.mxu0 %v4146
        %4640 = vmatpush1.bf16.msra.mxu0 %v4145
        %4641 = vmatprep.mubr.bf16.mxu0 %v2995
        %4642 = vmatmul.mubr.bf16.gmra.mrb[0].mxu0 %v2994
        %v4643 = vpop.f32.mrb[0].mxu0
        %v4644 = vadd.f32 %v4601, %v4643
        %v4645 = vpop.f32.mrb[0].mxu0
        %v4646 = vadd.f32 %v4603, %v4645
        %v4647 = vpop.f32.mrb[0].mxu0
        %v4648 = vadd.f32 %v4605, %v4647
        %v4649 = vpop.f32.mrb[0].mxu0
        %v4650 = vadd.f32 %v4607, %v4649
        %4651 = vdwg.mxu0
        %4652 = vmatprep.subr.bf16.mxu0 %v4152
        %4653 = vmatpush1.bf16.msra.mxu0 %v4151
        %4654 = vmatprep.subr.bf16.mxu0 %v4158
        %4655 = vmatpush1.bf16.msra.mxu0 %v4157
        %4656 = vmatprep.subr.bf16.mxu0 %v4164
        %4657 = vmatpush1.bf16.msra.mxu0 %v4163
        %4658 = vmatprep.subr.bf16.mxu0 %v4170
        %4659 = vmatpush1.bf16.msra.mxu0 %v4169
        %4660 = vmatprep.subr.bf16.mxu0 %v4176
        %4661 = vmatpush1.bf16.msra.mxu0 %v4175
        %4662 = vmatprep.subr.bf16.mxu0 %v4182
        %4663 = vmatpush1.bf16.msra.mxu0 %v4181
        %4664 = vmatprep.subr.bf16.mxu0 %v4188
        %4665 = vmatpush1.bf16.msra.mxu0 %v4187
        %4666 = vmatprep.subr.bf16.mxu0 %v4194
        %4667 = vmatpush1.bf16.msra.mxu0 %v4193
        %4668 = vmatprep.subr.bf16.mxu0 0
        %4669 = vmatpush1.bf16.msra.mxu0 0
        %4670 = vmatprep.subr.bf16.mxu0 0
        %4671 = vmatpush1.bf16.msra.mxu0 0
        %4672 = vmatprep.subr.bf16.mxu0 0
        %4673 = vmatpush1.bf16.msra.mxu0 0
        %4674 = vmatprep.subr.bf16.mxu0 0
        %4675 = vmatpush1.bf16.msra.mxu0 0
        %4676 = vmatprep.subr.bf16.mxu0 0
        %4677 = vmatpush1.bf16.msra.mxu0 0
        %4678 = vmatprep.subr.bf16.mxu0 0
        %4679 = vmatpush1.bf16.msra.mxu0 0
        %4680 = vmatprep.subr.bf16.mxu0 0
        %4681 = vmatpush1.bf16.msra.mxu0 0
        %4682 = vmatprep.subr.bf16.mxu0 0
        %4683 = vmatpush1.bf16.msra.mxu0 0
        %4684 = vmatprep.mubr.bf16.mxu0 0
        %4685 = vmatmul.mubr.bf16.gmra.mrb[0].mxu0 %v2996
        %v4686 = vpop.f32.mrb[0].mxu0
        %v4687 = vadd.f32 %v4644, %v4686
        %v4688 = vpop.f32.mrb[0].mxu0
        %v4689 = vadd.f32 %v4646, %v4688
        %v4690 = vpop.f32.mrb[0].mxu0
        %v4691 = vadd.f32 %v4648, %v4690
        %v4692 = vpop.f32.mrb[0].mxu0
        %v4693 = vadd.f32 %v4650, %v4692
        %4694 = vdwg.mxu0
        %4695 = vmatprep.subr.bf16.mxu0 %v3962
        %4696 = vmatpush1.bf16.msra.mxu0 %v3961
        %4697 = vmatprep.subr.bf16.mxu0 %v3968
        %4698 = vmatpush1.bf16.msra.mxu0 %v3967
        %4699 = vmatprep.subr.bf16.mxu0 %v3974
        %4700 = vmatpush1.bf16.msra.mxu0 %v3973
        %4701 = vmatprep.subr.bf16.mxu0 %v3980
        %4702 = vmatpush1.bf16.msra.mxu0 %v3979
        %4703 = vmatprep.subr.bf16.mxu0 %v3986
        %4704 = vmatpush1.bf16.msra.mxu0 %v3985
        %4705 = vmatprep.subr.bf16.mxu0 %v3992
        %4706 = vmatpush1.bf16.msra.mxu0 %v3991
        %4707 = vmatprep.subr.bf16.mxu0 %v3998
        %4708 = vmatpush1.bf16.msra.mxu0 %v3997
        %4709 = vmatprep.subr.bf16.mxu0 %v4004
        %4710 = vmatpush1.bf16.msra.mxu0 %v4003
        %4711 = vmatprep.subr.bf16.mxu0 %v4010
        %4712 = vmatpush1.bf16.msra.mxu0 %v4009
        %4713 = vmatprep.subr.bf16.mxu0 %v4016
        %4714 = vmatpush1.bf16.msra.mxu0 %v4015
        %4715 = vmatprep.subr.bf16.mxu0 %v4022
        %4716 = vmatpush1.bf16.msra.mxu0 %v4021
        %4717 = vmatprep.subr.bf16.mxu0 %v4028
        %4718 = vmatpush1.bf16.msra.mxu0 %v4027
        %4719 = vmatprep.subr.bf16.mxu0 %v4034
        %4720 = vmatpush1.bf16.msra.mxu0 %v4033
        %4721 = vmatprep.subr.bf16.mxu0 %v4040
        %4722 = vmatpush1.bf16.msra.mxu0 %v4039
        %4723 = vmatprep.subr.bf16.mxu0 %v4046
        %4724 = vmatpush1.bf16.msra.mxu0 %v4045
        %4725 = vmatprep.subr.bf16.mxu0 %v4052
        %4726 = vmatpush1.bf16.msra.mxu0 %v4051
        %4727 = vmatprep.mubr.bf16.mxu0 %v2993
        %4728 = vmatmul.mubr.bf16.gmra.mrb[0].mxu0 %v2992
        %v4729 = vpop.f32.mrb[0].mxu0
        %v4730 = vadd.f32 0.0, %v4729
        %v4731 = vpop.f32.mrb[0].mxu0
        %v4732 = vadd.f32 0.0, %v4731
        %v4733 = vpop.f32.mrb[0].mxu0
        %v4734 = vadd.f32 0.0, %v4733
        %v4735 = vpop.f32.mrb[0].mxu0
        %v4736 = vadd.f32 0.0, %v4735
        %4737 = vdwg.mxu0
        %4738 = vmatprep.subr.bf16.mxu0 %v4058
        %4739 = vmatpush1.bf16.msra.mxu0 %v4057
        %4740 = vmatprep.subr.bf16.mxu0 %v4064
        %4741 = vmatpush1.bf16.msra.mxu0 %v4063
        %4742 = vmatprep.subr.bf16.mxu0 %v4070
        %4743 = vmatpush1.bf16.msra.mxu0 %v4069
        %4744 = vmatprep.subr.bf16.mxu0 %v4076
        %4745 = vmatpush1.bf16.msra.mxu0 %v4075
        %4746 = vmatprep.subr.bf16.mxu0 %v4082
        %4747 = vmatpush1.bf16.msra.mxu0 %v4081
        %4748 = vmatprep.subr.bf16.mxu0 %v4088
        %4749 = vmatpush1.bf16.msra.mxu0 %v4087
        %4750 = vmatprep.subr.bf16.mxu0 %v4094
        %4751 = vmatpush1.bf16.msra.mxu0 %v4093
        %4752 = vmatprep.subr.bf16.mxu0 %v4100
        %4753 = vmatpush1.bf16.msra.mxu0 %v4099
        %4754 = vmatprep.subr.bf16.mxu0 %v4106
        %4755 = vmatpush1.bf16.msra.mxu0 %v4105
        %4756 = vmatprep.subr.bf16.mxu0 %v4112
        %4757 = vmatpush1.bf16.msra.mxu0 %v4111
        %4758 = vmatprep.subr.bf16.mxu0 %v4118
        %4759 = vmatpush1.bf16.msra.mxu0 %v4117
        %4760 = vmatprep.subr.bf16.mxu0 %v4124
        %4761 = vmatpush1.bf16.msra.mxu0 %v4123
        %4762 = vmatprep.subr.bf16.mxu0 %v4130
        %4763 = vmatpush1.bf16.msra.mxu0 %v4129
        %4764 = vmatprep.subr.bf16.mxu0 %v4136
        %4765 = vmatpush1.bf16.msra.mxu0 %v4135
        %4766 = vmatprep.subr.bf16.mxu0 %v4142
        %4767 = vmatpush1.bf16.msra.mxu0 %v4141
        %4768 = vmatprep.subr.bf16.mxu0 %v4148
        %4769 = vmatpush1.bf16.msra.mxu0 %v4147
        %4770 = vmatprep.mubr.bf16.mxu0 %v2995
        %4771 = vmatmul.mubr.bf16.gmra.mrb[0].mxu0 %v2994
        %v4772 = vpop.f32.mrb[0].mxu0
        %v4773 = vadd.f32 %v4730, %v4772
        %v4774 = vpop.f32.mrb[0].mxu0
        %v4775 = vadd.f32 %v4732, %v4774
        %v4776 = vpop.f32.mrb[0].mxu0
        %v4777 = vadd.f32 %v4734, %v4776
        %v4778 = vpop.f32.mrb[0].mxu0
        %v4779 = vadd.f32 %v4736, %v4778
        %4780 = vdwg.mxu0
        %4781 = vmatprep.subr.bf16.mxu0 %v4154
        %4782 = vmatpush1.bf16.msra.mxu0 %v4153
        %4783 = vmatprep.subr.bf16.mxu0 %v4160
        %4784 = vmatpush1.bf16.msra.mxu0 %v4159
        %4785 = vmatprep.subr.bf16.mxu0 %v4166
        %4786 = vmatpush1.bf16.msra.mxu0 %v4165
        %4787 = vmatprep.subr.bf16.mxu0 %v4172
        %4788 = vmatpush1.bf16.msra.mxu0 %v4171
        %4789 = vmatprep.subr.bf16.mxu0 %v4178
        %4790 = vmatpush1.bf16.msra.mxu0 %v4177
        %4791 = vmatprep.subr.bf16.mxu0 %v4184
        %4792 = vmatpush1.bf16.msra.mxu0 %v4183
        %4793 = vmatprep.subr.bf16.mxu0 %v4190
        %4794 = vmatpush1.bf16.msra.mxu0 %v4189
        %4795 = vmatprep.subr.bf16.mxu0 %v4196
        %4796 = vmatpush1.bf16.msra.mxu0 %v4195
        %4797 = vmatprep.subr.bf16.mxu0 0
        %4798 = vmatpush1.bf16.msra.mxu0 0
        %4799 = vmatprep.subr.bf16.mxu0 0
        %4800 = vmatpush1.bf16.msra.mxu0 0
        %4801 = vmatprep.subr.bf16.mxu0 0
        %4802 = vmatpush1.bf16.msra.mxu0 0
        %4803 = vmatprep.subr.bf16.mxu0 0
        %4804 = vmatpush1.bf16.msra.mxu0 0
        %4805 = vmatprep.subr.bf16.mxu0 0
        %4806 = vmatpush1.bf16.msra.mxu0 0
        %4807 = vmatprep.subr.bf16.mxu0 0
        %4808 = vmatpush1.bf16.msra.mxu0 0
        %4809 = vmatprep.subr.bf16.mxu0 0
        %4810 = vmatpush1.bf16.msra.mxu0 0
        %4811 = vmatprep.subr.bf16.mxu0 0
        %4812 = vmatpush1.bf16.msra.mxu0 0
        %4813 = vmatprep.mubr.bf16.mxu0 0
        %4814 = vmatmul.mubr.bf16.gmra.mrb[0].mxu0 %v2996
        %v4815 = vpop.f32.mrb[0].mxu0
        %v4816 = vadd.f32 %v4773, %v4815
        %v4817 = vpop.f32.mrb[0].mxu0
        %v4818 = vadd.f32 %v4775, %v4817
        %v4819 = vpop.f32.mrb[0].mxu0
        %v4820 = vadd.f32 %v4777, %v4819
        %v4821 = vpop.f32.mrb[0].mxu0
        %v4822 = vadd.f32 %v4779, %v4821
        %4823 = vdwg.mxu0
        %v4824 = vadd.f32 %v2977, %v4558
        %v4825 = vadd.f32 %v2978, %v4560
        %v4826 = vadd.f32 %v2979, %v4687
        %v4827 = vadd.f32 %v2980, %v4689
        %v4828 = vadd.f32 %v2981, %v4816
        %v4829 = vadd.f32 %v2982, %v4818
        %v4830 = vadd.f32 %v2983, %v4562
        %v4831 = vadd.f32 %v2984, %v4564
        %v4832 = vadd.f32 %v2985, %v4691
        %v4833 = vadd.f32 %v2986, %v4693
        %v4834 = vadd.f32 %v2987, %v4820
        %v4835 = vadd.f32 %v2988, %v4822
        %4836 = vst [vmem:[#allocation3] sm:$0xff] %v4824
        %4837 = vst [vmem:[#allocation3 + $0x8] sm:$0xff] %v4825
        %4838 = vst [vmem:[#allocation3 + $0x10] sm:$0xff] %v4826
        %4839 = vst [vmem:[#allocation3 + $0x18] sm:$0xff] %v4827
        %4840 = vst [vmem:[#allocation3 + $0x20] sm:$0xff] %v4828
        %4841 = vst [vmem:[#allocation3 + $0x28] sm:$0xff] %v4829
        %4842 = vst [vmem:[#allocation3 + $0x30] sm:$0xff] %v4830
        %4843 = vst [vmem:[#allocation3 + $0x38] sm:$0xff] %v4831
        %4844 = vst [vmem:[#allocation3 + $0x40] sm:$0xff] %v4832
        %4845 = vst [vmem:[#allocation3 + $0x48] sm:$0xff] %v4833
        %4846 = vst [vmem:[#allocation3 + $0x50] sm:$0xff] %v4834
        %4847 = vst [vmem:[#allocation3 + $0x58] sm:$0xff] %v4835
        %p4848 = scmp.eq.s32.totalorder %s21, 4
        // Predicated region
        $region77: #{_lambda_.1} parent=47 // pred_check
          %p4849 = pneg %p4848
        $region78: #{_lambda_.1} parent=47 // pred_check_branch
          %4851 = sbr.rel (%p4849) target = $region80
        $region79: #{_lambda_.1} parent=47 // pred_region
          %v4852 = vld [vmem:[#allocation3] sm:$0xff]
          %v4853 = vld [vmem:[#allocation3 + $0x8] sm:$0xff]
          %v4854 = vld [vmem:[#allocation3 + $0x10] sm:$0xff]
          %v4855 = vld [vmem:[#allocation3 + $0x18] sm:$0xff]
          %v4856 = vld [vmem:[#allocation3 + $0x20] sm:$0xff]
          %v4857 = vld [vmem:[#allocation3 + $0x28] sm:$0xff]
          %v4858 = vld [vmem:[#allocation3 + $0x30] sm:$0xff]
          %v4859 = vld [vmem:[#allocation3 + $0x38] sm:$0xff]
          %v4860 = vld [vmem:[#allocation3 + $0x40] sm:$0xff]
          %v4861 = vld [vmem:[#allocation3 + $0x48] sm:$0xff]
          %v4862 = vld [vmem:[#allocation3 + $0x50] sm:$0xff]
          %v4863 = vld [vmem:[#allocation3 + $0x58] sm:$0xff]
          %v4864 = vld [vmem:[#allocation9] sm:$0x3f]
          %v4866 = vlaneseq
          %v4867 = vshrl.u32 %v4866, 7
          %v4868 = vsub.s32 0, %v4867
          %v4869 = vrot.slane %v4864, %v4868
          %v4870 = vlaneseq
          %v4871 = vshrl.u32 %v4870, 7
          %v4872 = vsub.s32 1, %v4871
          %v4873 = vrot.slane %v4864, %v4872
          %v4874 = vlaneseq
          %v4875 = vshrl.u32 %v4874, 7
          %v4876 = vsub.s32 2, %v4875
          %v4877 = vrot.slane %v4864, %v4876
          %v4878 = vlaneseq
          %v4879 = vshrl.u32 %v4878, 7
          %v4880 = vsub.s32 3, %v4879
          %v4881 = vrot.slane %v4864, %v4880
          %v4882 = vlaneseq
          %v4883 = vshrl.u32 %v4882, 7
          %v4884 = vsub.s32 4, %v4883
          %v4885 = vrot.slane %v4864, %v4884
          %v4886 = vlaneseq
          %v4887 = vshrl.u32 %v4886, 7
          %v4888 = vsub.s32 5, %v4887
          %v4889 = vrot.slane %v4864, %v4888
          %v4896 = vadd.f32 %v4852, %v4869
          %v4897 = vadd.f32 %v4853, %v4873
          %v4898 = vadd.f32 %v4854, %v4877
          %v4899 = vadd.f32 %v4855, %v4881
          %v4900 = vadd.f32 %v4856, %v4885
          %v4901 = vadd.f32 %v4857, %v4889
          %v4902 = vadd.f32 %v4858, %v4869
          %v4903 = vadd.f32 %v4859, %v4873
          %v4904 = vadd.f32 %v4860, %v4877
          %v4905 = vadd.f32 %v4861, %v4881
          %v4906 = vadd.f32 %v4862, %v4885
          %v4907 = vadd.f32 %v4863, %v4889
          %v4908 = vmax.f32 %v4896, 0.0
          %v4909 = vmax.f32 %v4897, 0.0
          %v4910 = vmax.f32 %v4898, 0.0
          %v4911 = vmax.f32 %v4899, 0.0
          %v4912 = vmax.f32 %v4900, 0.0
          %v4913 = vmax.f32 %v4901, 0.0
          %v4914 = vmax.f32 %v4902, 0.0
          %v4915 = vmax.f32 %v4903, 0.0
          %v4916 = vmax.f32 %v4904, 0.0
          %v4917 = vmax.f32 %v4905, 0.0
          %v4918 = vmax.f32 %v4906, 0.0
          %v4919 = vmax.f32 %v4907, 0.0
          %v4920 = vpack.c.bf16 %v4914, %v4908
          %v4921 = vpack.c.bf16 %v4915, %v4909
          %v4922 = vpack.c.bf16 %v4916, %v4910
          %v4923 = vpack.c.bf16 %v4917, %v4911
          %v4924 = vpack.c.bf16 %v4918, %v4912
          %v4925 = vpack.c.bf16 %v4919, %v4913
          %v4926 = vld [vmem:[#allocation10] sm:$0xf]
          %v4927 = vld [vmem:[#allocation10 + $0x4] sm:$0xf]
          %v4928 = vld [vmem:[#allocation10 + $0x8] sm:$0xf]
          %v4929 = vld [vmem:[#allocation10 + $0xc] sm:$0xf]
          %v4930 = vld [vmem:[#allocation10 + $0x10] sm:$0xf]
          %v4931 = vld [vmem:[#allocation10 + $0x14] sm:$0xf]
          %v4932 = vld [vmem:[#allocation10 + $0x18] sm:$0xf]
          %v4933 = vld [vmem:[#allocation10 + $0x1c] sm:$0xf]
          %v4934 = vld [vmem:[#allocation10 + $0x20] sm:$0xf]
          %v4935 = vld [vmem:[#allocation10 + $0x24] sm:$0xf]
          %v4936 = vld [vmem:[#allocation10 + $0x28] sm:$0xf]
          %v4937 = vld [vmem:[#allocation10 + $0x2c] sm:$0xf]
          %v4938 = vld [vmem:[#allocation10 + $0x30] sm:$0xf]
          %v4939 = vld [vmem:[#allocation10 + $0x34] sm:$0xf]
          %v4940 = vld [vmem:[#allocation10 + $0x38] sm:$0xf]
          %v4941 = vld [vmem:[#allocation10 + $0x3c] sm:$0xf]
          %v4942 = vld [vmem:[#allocation10 + $0x40] sm:$0xf]
          %v4943 = vld [vmem:[#allocation10 + $0x44] sm:$0xf]
          %v4944 = vld [vmem:[#allocation10 + $0x48] sm:$0xf]
          %v4945 = vld [vmem:[#allocation10 + $0x4c] sm:$0xf]
          %v4946 = vld [vmem:[#allocation10 + $0x50] sm:$0xf]
          %v4947 = vld [vmem:[#allocation10 + $0x54] sm:$0xf]
          %v4948 = vld [vmem:[#allocation10 + $0x58] sm:$0xf]
          %v4949 = vld [vmem:[#allocation10 + $0x5c] sm:$0xf]
          %v4950 = vld [vmem:[#allocation10 + $0x60] sm:$0xf]
          %v4951 = vld [vmem:[#allocation10 + $0x64] sm:$0xf]
          %v4952 = vld [vmem:[#allocation10 + $0x68] sm:$0xf]
          %v4953 = vld [vmem:[#allocation10 + $0x6c] sm:$0xf]
          %v4954 = vld [vmem:[#allocation10 + $0x70] sm:$0xf]
          %v4955 = vld [vmem:[#allocation10 + $0x74] sm:$0xf]
          %v4956 = vld [vmem:[#allocation10 + $0x78] sm:$0xf]
          %v4957 = vld [vmem:[#allocation10 + $0x7c] sm:$0xf]
          %v4958 = vld [vmem:[#allocation10 + $0x80] sm:$0xf]
          %v4959 = vld [vmem:[#allocation10 + $0x84] sm:$0xf]
          %v4960 = vld [vmem:[#allocation10 + $0x88] sm:$0xf]
          %v4961 = vld [vmem:[#allocation10 + $0x8c] sm:$0xf]
          %v4962 = vld [vmem:[#allocation10 + $0x90] sm:$0xf]
          %v4963 = vld [vmem:[#allocation10 + $0x94] sm:$0xf]
          %v4964 = vld [vmem:[#allocation10 + $0x98] sm:$0xf]
          %v4965 = vld [vmem:[#allocation10 + $0x9c] sm:$0xf]
          %v4966 = vld [vmem:[#allocation10 + $0xa0] sm:$0xf]
          %v4967 = vld [vmem:[#allocation10 + $0xa4] sm:$0xf]
          %v4968 = vld [vmem:[#allocation10 + $0xa8] sm:$0xf]
          %v4969 = vld [vmem:[#allocation10 + $0xac] sm:$0xf]
          %v4970 = vld [vmem:[#allocation10 + $0xb0] sm:$0xf]
          %v4971 = vld [vmem:[#allocation10 + $0xb4] sm:$0xf]
          %v4972 = vld [vmem:[#allocation10 + $0xb8] sm:$0xf]
          %v4973 = vld [vmem:[#allocation10 + $0xbc] sm:$0xf]
          %v4974 = vld [vmem:[#allocation10 + $0xc0] sm:$0xf]
          %v4975 = vld [vmem:[#allocation10 + $0xc4] sm:$0xf]
          %v4976 = vld [vmem:[#allocation10 + $0xc8] sm:$0xf]
          %v4977 = vld [vmem:[#allocation10 + $0xcc] sm:$0xf]
          %v4978 = vld [vmem:[#allocation10 + $0xd0] sm:$0xf]
          %v4979 = vld [vmem:[#allocation10 + $0xd4] sm:$0xf]
          %v4980 = vld [vmem:[#allocation10 + $0xd8] sm:$0xf]
          %v4981 = vld [vmem:[#allocation10 + $0xdc] sm:$0xf]
          %v4982 = vld [vmem:[#allocation10 + $0xe0] sm:$0xf]
          %v4983 = vld [vmem:[#allocation10 + $0xe4] sm:$0xf]
          %v4984 = vld [vmem:[#allocation10 + $0xe8] sm:$0xf]
          %v4985 = vld [vmem:[#allocation10 + $0xec] sm:$0xf]
          %v4986 = vld [vmem:[#allocation10 + $0xf0] sm:$0xf]
          %v4987 = vld [vmem:[#allocation10 + $0xf4] sm:$0xf]
          %v4988 = vld [vmem:[#allocation10 + $0xf8] sm:$0xf]
          %v4989 = vld [vmem:[#allocation10 + $0xfc] sm:$0xf]
          %v4990 = vld [vmem:[#allocation10 + $0x100] sm:$0xf]
          %v4991 = vld [vmem:[#allocation10 + $0x104] sm:$0xf]
          %v4992 = vld [vmem:[#allocation10 + $0x108] sm:$0xf]
          %v4993 = vld [vmem:[#allocation10 + $0x10c] sm:$0xf]
          %v4994 = vld [vmem:[#allocation10 + $0x110] sm:$0xf]
          %v4995 = vld [vmem:[#allocation10 + $0x114] sm:$0xf]
          %v4996 = vld [vmem:[#allocation10 + $0x118] sm:$0xf]
          %v4997 = vld [vmem:[#allocation10 + $0x11c] sm:$0xf]
          %v4998 = vld [vmem:[#allocation10 + $0x120] sm:$0xf]
          %v4999 = vld [vmem:[#allocation10 + $0x124] sm:$0xf]
          %v5000 = vld [vmem:[#allocation10 + $0x128] sm:$0xf]
          %v5001 = vld [vmem:[#allocation10 + $0x12c] sm:$0xf]
          %v5002 = vld [vmem:[#allocation10 + $0x130] sm:$0xf]
          %v5003 = vld [vmem:[#allocation10 + $0x134] sm:$0xf]
          %v5004 = vld [vmem:[#allocation10 + $0x138] sm:$0xf]
          %v5005 = vld [vmem:[#allocation10 + $0x13c] sm:$0xf]
          %v5006 = vld [vmem:[#allocation10 + $0x140] sm:$0xf]
          %v5007 = vld [vmem:[#allocation10 + $0x144] sm:$0xf]
          %v5008 = vld [vmem:[#allocation10 + $0x148] sm:$0xf]
          %v5009 = vld [vmem:[#allocation10 + $0x14c] sm:$0xf]
          %v5010 = vld [vmem:[#allocation10 + $0x150] sm:$0xf]
          %v5011 = vld [vmem:[#allocation10 + $0x154] sm:$0xf]
          %v5012 = vld [vmem:[#allocation10 + $0x158] sm:$0xf]
          %v5013 = vld [vmem:[#allocation10 + $0x15c] sm:$0xf]
          %v5014 = vld [vmem:[#allocation10 + $0x160] sm:$0xf]
          %v5015 = vld [vmem:[#allocation10 + $0x164] sm:$0xf]
          %v5016 = vld [vmem:[#allocation10 + $0x168] sm:$0xf]
          %v5017 = vld [vmem:[#allocation10 + $0x16c] sm:$0xf]
          %v5018 = vld [vmem:[#allocation10 + $0x170] sm:$0xf]
          %v5019 = vld [vmem:[#allocation10 + $0x174] sm:$0xf]
          %v5020 = vld [vmem:[#allocation10 + $0x178] sm:$0xf]
          %v5021 = vld [vmem:[#allocation10 + $0x17c] sm:$0xf]
          %v5022 = vld [vmem:[#allocation12] sm:$0x1]
          %v5024 = vlaneseq
          %v5025 = vshrl.u32 %v5024, 7
          %v5026 = vsub.s32 0, %v5025
          %v5027 = vrot.slane %v5022, %v5026
          %v5125 = vunpack.c.l.b16 %v4926
          %v5126 = vunpack.c.l.b16 %v4927
          %v5127 = vunpack.c.l.b16 %v4928
          %v5128 = vunpack.c.l.b16 %v4929
          %v5129 = vunpack.c.l.b16 %v4930
          %v5130 = vunpack.c.l.b16 %v4931
          %v5131 = vunpack.c.l.b16 %v4932
          %v5132 = vunpack.c.l.b16 %v4933
          %v5133 = vunpack.c.l.b16 %v4934
          %v5134 = vunpack.c.l.b16 %v4935
          %v5135 = vunpack.c.l.b16 %v4936
          %v5136 = vunpack.c.l.b16 %v4937
          %v5137 = vunpack.c.l.b16 %v4938
          %v5138 = vunpack.c.l.b16 %v4939
          %v5139 = vunpack.c.l.b16 %v4940
          %v5140 = vunpack.c.l.b16 %v4941
          %v5141 = vunpack.c.l.b16 %v4942
          %v5142 = vunpack.c.l.b16 %v4943
          %v5143 = vunpack.c.l.b16 %v4944
          %v5144 = vunpack.c.l.b16 %v4945
          %v5145 = vunpack.c.l.b16 %v4946
          %v5146 = vunpack.c.l.b16 %v4947
          %v5147 = vunpack.c.l.b16 %v4948
          %v5148 = vunpack.c.l.b16 %v4949
          %v5149 = vunpack.c.l.b16 %v4950
          %v5150 = vunpack.c.l.b16 %v4951
          %v5151 = vunpack.c.l.b16 %v4952
          %v5152 = vunpack.c.l.b16 %v4953
          %v5153 = vunpack.c.l.b16 %v4954
          %v5154 = vunpack.c.l.b16 %v4955
          %v5155 = vunpack.c.l.b16 %v4956
          %v5156 = vunpack.c.l.b16 %v4957
          %v5157 = vunpack.c.l.b16 %v4958
          %v5158 = vunpack.c.l.b16 %v4959
          %v5159 = vunpack.c.l.b16 %v4960
          %v5160 = vunpack.c.l.b16 %v4961
          %v5161 = vunpack.c.l.b16 %v4962
          %v5162 = vunpack.c.l.b16 %v4963
          %v5163 = vunpack.c.l.b16 %v4964
          %v5164 = vunpack.c.l.b16 %v4965
          %v5165 = vunpack.c.l.b16 %v4966
          %v5166 = vunpack.c.l.b16 %v4967
          %v5167 = vunpack.c.l.b16 %v4968
          %v5168 = vunpack.c.l.b16 %v4969
          %v5169 = vunpack.c.l.b16 %v4970
          %v5170 = vunpack.c.l.b16 %v4971
          %v5171 = vunpack.c.l.b16 %v4972
          %v5172 = vunpack.c.l.b16 %v4973
          %v5173 = vunpack.c.l.b16 %v4974
          %v5174 = vunpack.c.l.b16 %v4975
          %v5175 = vunpack.c.l.b16 %v4976
          %v5176 = vunpack.c.l.b16 %v4977
          %v5177 = vunpack.c.l.b16 %v4978
          %v5178 = vunpack.c.l.b16 %v4979
          %v5179 = vunpack.c.l.b16 %v4980
          %v5180 = vunpack.c.l.b16 %v4981
          %v5181 = vunpack.c.l.b16 %v4982
          %v5182 = vunpack.c.l.b16 %v4983
          %v5183 = vunpack.c.l.b16 %v4984
          %v5184 = vunpack.c.l.b16 %v4985
          %v5185 = vunpack.c.l.b16 %v4986
          %v5186 = vunpack.c.l.b16 %v4987
          %v5187 = vunpack.c.l.b16 %v4988
          %v5188 = vunpack.c.l.b16 %v4989
          %v5189 = vunpack.c.l.b16 %v4990
          %v5190 = vunpack.c.l.b16 %v4991
          %v5191 = vunpack.c.l.b16 %v4992
          %v5192 = vunpack.c.l.b16 %v4993
          %v5193 = vunpack.c.l.b16 %v4994
          %v5194 = vunpack.c.l.b16 %v4995
          %v5195 = vunpack.c.l.b16 %v4996
          %v5196 = vunpack.c.l.b16 %v4997
          %v5197 = vunpack.c.l.b16 %v4998
          %v5198 = vunpack.c.l.b16 %v4999
          %v5199 = vunpack.c.l.b16 %v5000
          %v5200 = vunpack.c.l.b16 %v5001
          %v5201 = vunpack.c.l.b16 %v5002
          %v5202 = vunpack.c.l.b16 %v5003
          %v5203 = vunpack.c.l.b16 %v5004
          %v5204 = vunpack.c.l.b16 %v5005
          %v5205 = vunpack.c.l.b16 %v5006
          %v5206 = vunpack.c.l.b16 %v5007
          %v5207 = vunpack.c.l.b16 %v5008
          %v5208 = vunpack.c.l.b16 %v5009
          %v5209 = vunpack.c.l.b16 %v5010
          %v5210 = vunpack.c.l.b16 %v5011
          %v5211 = vunpack.c.l.b16 %v5012
          %v5212 = vunpack.c.l.b16 %v5013
          %v5213 = vunpack.c.l.b16 %v5014
          %v5214 = vunpack.c.l.b16 %v5015
          %v5215 = vunpack.c.l.b16 %v5016
          %v5216 = vunpack.c.l.b16 %v5017
          %v5217 = vunpack.c.l.b16 %v5018
          %v5218 = vunpack.c.l.b16 %v5019
          %v5219 = vunpack.c.l.b16 %v5020
          %v5220 = vunpack.c.l.b16 %v5021
          %v5221 = vpack.c.b16 %v5126, %v5125
          %v5222 = vpack.c.b16 %v5128, %v5127
          %v5223 = vpack.c.b16 %v5130, %v5129
          %v5224 = vpack.c.b16 %v5132, %v5131
          %v5225 = vpack.c.b16 %v5134, %v5133
          %v5226 = vpack.c.b16 %v5136, %v5135
          %v5227 = vpack.c.b16 %v5138, %v5137
          %v5228 = vpack.c.b16 %v5140, %v5139
          %v5229 = vpack.c.b16 %v5142, %v5141
          %v5230 = vpack.c.b16 %v5144, %v5143
          %v5231 = vpack.c.b16 %v5146, %v5145
          %v5232 = vpack.c.b16 %v5148, %v5147
          %v5233 = vpack.c.b16 %v5150, %v5149
          %v5234 = vpack.c.b16 %v5152, %v5151
          %v5235 = vpack.c.b16 %v5154, %v5153
          %v5236 = vpack.c.b16 %v5156, %v5155
          %v5237 = vpack.c.b16 %v5158, %v5157
          %v5238 = vpack.c.b16 %v5160, %v5159
          %v5239 = vpack.c.b16 %v5162, %v5161
          %v5240 = vpack.c.b16 %v5164, %v5163
          %v5241 = vpack.c.b16 %v5166, %v5165
          %v5242 = vpack.c.b16 %v5168, %v5167
          %v5243 = vpack.c.b16 %v5170, %v5169
          %v5244 = vpack.c.b16 %v5172, %v5171
          %v5245 = vpack.c.b16 %v5174, %v5173
          %v5246 = vpack.c.b16 %v5176, %v5175
          %v5247 = vpack.c.b16 %v5178, %v5177
          %v5248 = vpack.c.b16 %v5180, %v5179
          %v5249 = vpack.c.b16 %v5182, %v5181
          %v5250 = vpack.c.b16 %v5184, %v5183
          %v5251 = vpack.c.b16 %v5186, %v5185
          %v5252 = vpack.c.b16 %v5188, %v5187
          %v5253 = vpack.c.b16 %v5190, %v5189
          %v5254 = vpack.c.b16 %v5192, %v5191
          %v5255 = vpack.c.b16 %v5194, %v5193
          %v5256 = vpack.c.b16 %v5196, %v5195
          %v5257 = vpack.c.b16 %v5198, %v5197
          %v5258 = vpack.c.b16 %v5200, %v5199
          %v5259 = vpack.c.b16 %v5202, %v5201
          %v5260 = vpack.c.b16 %v5204, %v5203
          %v5261 = vpack.c.b16 %v5206, %v5205
          %v5262 = vpack.c.b16 %v5208, %v5207
          %v5263 = vpack.c.b16 %v5210, %v5209
          %v5264 = vpack.c.b16 %v5212, %v5211
          %v5265 = vpack.c.b16 %v5214, %v5213
          %v5266 = vpack.c.b16 %v5216, %v5215
          %v5267 = vpack.c.b16 %v5218, %v5217
          %v5268 = vpack.c.b16 %v5220, %v5219
          %5317 = vmatprep.subr.bf16.mxu0 0
          %5318 = vmatpush1.bf16.msra.mxu0 %v5221
          %5319 = vmatprep.subr.bf16.mxu0 0
          %5320 = vmatpush1.bf16.msra.mxu0 %v5222
          %5321 = vmatprep.subr.bf16.mxu0 0
          %5322 = vmatpush1.bf16.msra.mxu0 %v5223
          %5323 = vmatprep.subr.bf16.mxu0 0
          %5324 = vmatpush1.bf16.msra.mxu0 %v5224
          %5325 = vmatprep.subr.bf16.mxu0 0
          %5326 = vmatpush1.bf16.msra.mxu0 %v5225
          %5327 = vmatprep.subr.bf16.mxu0 0
          %5328 = vmatpush1.bf16.msra.mxu0 %v5226
          %5329 = vmatprep.subr.bf16.mxu0 0
          %5330 = vmatpush1.bf16.msra.mxu0 %v5227
          %5331 = vmatprep.subr.bf16.mxu0 0
          %5332 = vmatpush1.bf16.msra.mxu0 %v5228
          %5333 = vmatprep.subr.bf16.mxu0 0
          %5334 = vmatpush1.bf16.msra.mxu0 %v5229
          %5335 = vmatprep.subr.bf16.mxu0 0
          %5336 = vmatpush1.bf16.msra.mxu0 %v5230
          %5337 = vmatprep.subr.bf16.mxu0 0
          %5338 = vmatpush1.bf16.msra.mxu0 %v5231
          %5339 = vmatprep.subr.bf16.mxu0 0
          %5340 = vmatpush1.bf16.msra.mxu0 %v5232
          %5341 = vmatprep.subr.bf16.mxu0 0
          %5342 = vmatpush1.bf16.msra.mxu0 %v5233
          %5343 = vmatprep.subr.bf16.mxu0 0
          %5344 = vmatpush1.bf16.msra.mxu0 %v5234
          %5345 = vmatprep.subr.bf16.mxu0 0
          %5346 = vmatpush1.bf16.msra.mxu0 %v5235
          %5347 = vmatprep.subr.bf16.mxu0 0
          %5348 = vmatpush1.bf16.msra.mxu0 %v5236
          %5349 = vmatprep.mubr.bf16.mxu0 %v4921
          %5350 = vmatmul.mubr.bf16.gmra.mrb[0].mxu0 %v4920
          %v5351 = vpop.f32.mrb[0].mxu0
          %v5352 = vadd.f32 %v5027, %v5351
          %v5353 = vpop.f32.mrb[0].mxu0
          %v5354 = vpop.f32.mrb[0].mxu0
          %v5355 = vadd.f32 %v5027, %v5354
          %v5356 = vpop.f32.mrb[0].mxu0
          %5357 = vdwg.mxu0
          %5358 = vmatprep.subr.bf16.mxu0 0
          %5359 = vmatpush1.bf16.msra.mxu0 %v5237
          %5360 = vmatprep.subr.bf16.mxu0 0
          %5361 = vmatpush1.bf16.msra.mxu0 %v5238
          %5362 = vmatprep.subr.bf16.mxu0 0
          %5363 = vmatpush1.bf16.msra.mxu0 %v5239
          %5364 = vmatprep.subr.bf16.mxu0 0
          %5365 = vmatpush1.bf16.msra.mxu0 %v5240
          %5366 = vmatprep.subr.bf16.mxu0 0
          %5367 = vmatpush1.bf16.msra.mxu0 %v5241
          %5368 = vmatprep.subr.bf16.mxu0 0
          %5369 = vmatpush1.bf16.msra.mxu0 %v5242
          %5370 = vmatprep.subr.bf16.mxu0 0
          %5371 = vmatpush1.bf16.msra.mxu0 %v5243
          %5372 = vmatprep.subr.bf16.mxu0 0
          %5373 = vmatpush1.bf16.msra.mxu0 %v5244
          %5374 = vmatprep.subr.bf16.mxu0 0
          %5375 = vmatpush1.bf16.msra.mxu0 %v5245
          %5376 = vmatprep.subr.bf16.mxu0 0
          %5377 = vmatpush1.bf16.msra.mxu0 %v5246
          %5378 = vmatprep.subr.bf16.mxu0 0
          %5379 = vmatpush1.bf16.msra.mxu0 %v5247
          %5380 = vmatprep.subr.bf16.mxu0 0
          %5381 = vmatpush1.bf16.msra.mxu0 %v5248
          %5382 = vmatprep.subr.bf16.mxu0 0
          %5383 = vmatpush1.bf16.msra.mxu0 %v5249
          %5384 = vmatprep.subr.bf16.mxu0 0
          %5385 = vmatpush1.bf16.msra.mxu0 %v5250
          %5386 = vmatprep.subr.bf16.mxu0 0
          %5387 = vmatpush1.bf16.msra.mxu0 %v5251
          %5388 = vmatprep.subr.bf16.mxu0 0
          %5389 = vmatpush1.bf16.msra.mxu0 %v5252
          %5390 = vmatprep.mubr.bf16.mxu0 %v4923
          %5391 = vmatmul.mubr.bf16.gmra.mrb[0].mxu0 %v4922
          %v5392 = vpop.f32.mrb[0].mxu0
          %v5393 = vadd.f32 %v5352, %v5392
          %v5394 = vpop.f32.mrb[0].mxu0
          %v5395 = vpop.f32.mrb[0].mxu0
          %v5396 = vadd.f32 %v5355, %v5395
          %v5397 = vpop.f32.mrb[0].mxu0
          %5398 = vdwg.mxu0
          %5399 = vmatprep.subr.bf16.mxu0 0
          %5400 = vmatpush1.bf16.msra.mxu0 %v5253
          %5401 = vmatprep.subr.bf16.mxu0 0
          %5402 = vmatpush1.bf16.msra.mxu0 %v5254
          %5403 = vmatprep.subr.bf16.mxu0 0
          %5404 = vmatpush1.bf16.msra.mxu0 %v5255
          %5405 = vmatprep.subr.bf16.mxu0 0
          %5406 = vmatpush1.bf16.msra.mxu0 %v5256
          %5407 = vmatprep.subr.bf16.mxu0 0
          %5408 = vmatpush1.bf16.msra.mxu0 %v5257
          %5409 = vmatprep.subr.bf16.mxu0 0
          %5410 = vmatpush1.bf16.msra.mxu0 %v5258
          %5411 = vmatprep.subr.bf16.mxu0 0
          %5412 = vmatpush1.bf16.msra.mxu0 %v5259
          %5413 = vmatprep.subr.bf16.mxu0 0
          %5414 = vmatpush1.bf16.msra.mxu0 %v5260
          %5415 = vmatprep.subr.bf16.mxu0 0
          %5416 = vmatpush1.bf16.msra.mxu0 %v5261
          %5417 = vmatprep.subr.bf16.mxu0 0
          %5418 = vmatpush1.bf16.msra.mxu0 %v5262
          %5419 = vmatprep.subr.bf16.mxu0 0
          %5420 = vmatpush1.bf16.msra.mxu0 %v5263
          %5421 = vmatprep.subr.bf16.mxu0 0
          %5422 = vmatpush1.bf16.msra.mxu0 %v5264
          %5423 = vmatprep.subr.bf16.mxu0 0
          %5424 = vmatpush1.bf16.msra.mxu0 %v5265
          %5425 = vmatprep.subr.bf16.mxu0 0
          %5426 = vmatpush1.bf16.msra.mxu0 %v5266
          %5427 = vmatprep.subr.bf16.mxu0 0
          %5428 = vmatpush1.bf16.msra.mxu0 %v5267
          %5429 = vmatprep.subr.bf16.mxu0 0
          %5430 = vmatpush1.bf16.msra.mxu0 %v5268
          %5431 = vmatprep.mubr.bf16.mxu0 %v4925
          %5432 = vmatmul.mubr.bf16.gmra.mrb[0].mxu0 %v4924
          %v5433 = vpop.f32.mrb[0].mxu0
          %v5434 = vadd.f32 %v5393, %v5433
          %v5435 = vpop.f32.mrb[0].mxu0
          %v5436 = vpop.f32.mrb[0].mxu0
          %v5437 = vadd.f32 %v5396, %v5436
          %v5438 = vpop.f32.mrb[0].mxu0
          %5439 = vdwg.mxu0
          %5440 = vst [vmem:[%s7] sm:$0xff] %v5434
          %5441 = vst [vmem:[%s7 + $0x8] sm:$0xff] %v5437
        $region80: #{_lambda_.1} parent=47 // pred_fallthru
          _
        // Predicated region
        $region81: #{_lambda_.1} parent=47 // pred_check
          %p5442 = pneg %p186
        $region82: #{_lambda_.1} parent=47 // pred_check_branch
          %5444 = sbr.rel (%p5442) target = $region84
        $region83: #{_lambda_.1} parent=47 // pred_region
          _
        $region84: #{_lambda_.1} parent=47 // pred_fallthru
          _
        // Predicated region
        $region85: #{_lambda_.1} parent=47 // pred_check
          %p5445 = pneg %p186
        $region86: #{_lambda_.1} parent=47 // pred_check_branch
          %5447 = sbr.rel (%p5445) target = $region88
        $region87: #{_lambda_.1} parent=47 // pred_region
          _
        $region88: #{_lambda_.1} parent=47 // pred_fallthru
          _
      $region48: #{_lambda_.1} parent=5 // pred_fallthru
        _
      %p5448 = scmp.le.s32.totalorder 2, %s16
      // Predicated region
      $region89: #{_lambda_.1} parent=5 // pred_check
        %p5449 = pneg %p5448
      $region90: #{_lambda_.1} parent=5 // pred_check_branch
        %5451 = sbr.rel (%p5449) target = $region92
      $region91: #{_lambda_.1} parent=5 // pred_region
        %s5452 = ssub.s32 %s16, 2
      $region92: #{_lambda_.1} parent=5 // pred_fallthru
        _
    $region6: #{_lambda_.1} parent=1 // loop_footer
      %s20 = sadd.s32 1, %s16
    $region7: #{_lambda_.1} parent=1 // loop_footer_branch
      %15 = sbr.rel target = $region3
    $region8: #{_lambda_.1} parent=1 // loop_exit
      _
    %5453 = vsyncpa [#allocation5], 1
    %s5454 = scalar_lea.sflag [#allocation5], 1
    %5455 = vsyncpa %s5454, 1
    %5456 = vsyncpa [#allocation7], 1
    %5457 = vsyncpa [#allocation11], 1

</llo_original>
